<compile_context>
chip_gen: v7x
topology: tpu7x:2x2x1
jax: 0.10.0
libtpu: 0.0.40
codegen_flags: <defaults>
</compile_context>

<pallas_src>
import functools

import jax
import jax.numpy as jnp
from jax.experimental import pallas as pl
from jax.experimental.pallas import tpu as pltpu

NEG_SLOPE = 0.01      # nn.LeakyReLU default
BN_EPS = 1e-5         # nn.BatchNorm1d default

# Branch hyper-parameters straight from the nn.Sequential definitions.
_CFG_F1 = dict(k1=64, s1=8, conv1_pad=24, p1_k=8, p1_pad=4,
               k2=8, c_pad=4, p2_k=4, p2_pad=2)
_CFG_F2 = dict(k1=512, s1=64, conv1_pad=24, p1_k=4, p1_pad=2,
               k2=6, c_pad=4, p2_k=2, p2_pad=1)


# --------------------------- in-kernel building blocks ---------------------------

def _leaky_relu(y):
    return jnp.where(y >= 0.0, y, NEG_SLOPE * y)


def _conv1d_s1(h, w_ref, b, *, k, pad):
    """Stride-1 Conv1d + folded-BN shift + LeakyReLU, time-major (T, C_in).

    All k taps are fused into ONE MXU matmul by lane-concatenating the k shifted
    row-slices of the zero-padded activation:  (t_out, k*C_in) @ (k*C_in, C_out).
    Weight rows are tap-major (row = tap*C_in + ci), folded in the wrapper.
    """
    t_in, c_in = h.shape
    t_out = t_in + 2 * pad - k + 1
    zp = jnp.zeros((pad, c_in), h.dtype)
    hp = jnp.concatenate([zp, h, zp], axis=0)                     # (t_in + 2p, C_in)
    cat = jnp.concatenate([hp[kk:kk + t_out, :] for kk in range(k)], axis=1)
    acc = jnp.dot(cat.astype(jnp.bfloat16), w_ref[...],
                  preferred_element_type=jnp.float32)
    return _leaky_relu(acc + b)


def _maxpool_time(h, buf, *, kernel, pad):
    """MaxPool1d(kernel, stride=kernel, padding=pad), PyTorch ceil_mode=False.

    Stages the -inf padded buffer (exactly n_out*kernel rows) in the VMEM
    scratch `buf`, then max-reduces the `kernel` phases with strided row loads
    -- no per-output-row slicing or N-way concatenation.
    """
    t_in, c = h.shape
    n_out = (t_in + 2 * pad - kernel) // kernel + 1
    total = n_out * kernel                    # padded rows the windows touch
    take = min(total - pad, t_in)             # rows of h actually used
    if pad > 0:
        buf[0:pad, 0:c] = jnp.full((pad, c), -jnp.inf, jnp.float32)
    buf[pad:pad + take, 0:c] = h[0:take, :]
    tail = total - pad - take
    if tail > 0:
        buf[pad + take:total, 0:c] = jnp.full((tail, c), -jnp.inf, jnp.float32)
    out = buf[pl.ds(0, n_out, stride=kernel), :]
    for j in range(1, kernel):
        out = jnp.maximum(out, buf[pl.ds(j, n_out, stride=kernel), :])
    return out[:, 0:c]


def _branch(xp, params, buf, cfg):
    """One features1/features2 branch for one batch element, VMEM-resident."""
    w1, b1, w2, b2, w3, b3, w4, b4 = params
    # Conv1 (stride s1) was im2col'ed in the wrapper -> one lane-dense matmul.
    h = jnp.dot(xp, w1[...], preferred_element_type=jnp.float32)
    h = _leaky_relu(h + b1[...])
    h = _maxpool_time(h, buf, kernel=cfg["p1_k"], pad=cfg["p1_pad"])
    # Dropout(0.5): identity in eval mode.
    h = _conv1d_s1(h, w2, b2[...], k=cfg["k2"], pad=cfg["c_pad"])
    h = _conv1d_s1(h, w3, b3[...], k=cfg["k2"], pad=cfg["c_pad"])
    h = _conv1d_s1(h, w4, b4[...], k=cfg["k2"], pad=cfg["c_pad"])
    return _maxpool_time(h, buf, kernel=cfg["p2_k"], pad=cfg["p2_pad"])


def _fused_kernel(cfg1, cfg2, t1,
                  x1_ref, x2_ref,
                  w11, b11, w12, b12, w13, b13, w14, b14,
                  w21, b21, w22, b22, w23, b23, w24, b24,
                  o_ref, buf):
    h1 = _branch(x1_ref[0], (w11, b11, w12, b12, w13, b13, w14, b14), buf, cfg1)
    h2 = _branch(x2_ref[0], (w21, b21, w22, b22, w23, b23, w24, b24), buf, cfg2)
    # torch.cat((y1, y2), dim=2)  ==  stacking along the time (row) axis here.
    o_ref[0, 0:t1, :] = h1
    o_ref[0, t1:, :] = h2


# ------------------------------ wrappers / plumbing ------------------------------

def _branch_dims(length, cfg):
    """Output-length bookkeeping: conv1 -> pool1 -> 3x conv -> pool2."""
    l1 = (length + 2 * cfg["conv1_pad"] - cfg["k1"]) // cfg["s1"] + 1
    p1_rows = ((l1 + 2 * cfg["p1_pad"] - cfg["p1_k"]) // cfg["p1_k"] + 1) * cfg["p1_k"]
    t = p1_rows // cfg["p1_k"]
    for _ in range(3):
        t = t + 2 * cfg["c_pad"] - cfg["k2"] + 1
    p2_rows = ((t + 2 * cfg["p2_pad"] - cfg["p2_k"]) // cfg["p2_k"] + 1) * cfg["p2_k"]
    t_final = p2_rows // cfg["p2_k"]
    return l1, t_final, max(p1_rows, p2_rows)


def _im2col(x, k, s, pad):
    """x: (B, C_in, L) -> (B, l_out, C_in*k) patches; column index = ci*k + j."""
    b, c_in, length = x.shape
    l_out = (length + 2 * pad - k) // s + 1
    xp = jnp.pad(x, ((0, 0), (0, 0), (pad, pad)))
    idx = jnp.arange(l_out)[:, None] * s + jnp.arange(k)[None, :]    # (l_out, k)
    patches = xp[:, :, idx]                                          # (B, C_in, l_out, k)
    return jnp.transpose(patches, (0, 2, 1, 3)).reshape(b, l_out, c_in * k)


def _fold_bn_into_conv(p, order):
    """Fold BatchNorm1d(eval) scale into the (bias=False) conv weights.

    Returns (W_2d bf16, shift f32).  `order` picks the row layout:
      (1, 2, 0): rows = ci*k + j   (matches im2col patches for conv1)
      (2, 1, 0): rows = tap*C_in + ci (matches lane-concatenated taps)
    """
    inv_std = 1.0 / jnp.sqrt(p["var"] + BN_EPS)
    scale = p["gamma"] * inv_std                                     # (C_out,)
    shift = (p["beta"] - p["mean"] * scale).reshape(1, -1).astype(jnp.float32)
    c_out = p["w"].shape[0]
    w = (jnp.transpose(p["w"], order) * scale).reshape(-1, c_out)
    return w.astype(jnp.bfloat16), shift


def _const_spec(a):
    n = a.ndim
    return pl.BlockSpec(a.shape, lambda i, _n=n: (0,) * _n)


def temporal_feature_eeg(params, y):
    # TODO(synk): Dropout layers are identity (eval/inference semantics);
    # training-mode stochastic dropout is not implemented.
    if y.ndim == 2:
        y = y[:, None, :]
    y = y.astype(jnp.float32)
    b, c_in, length = y.shape

    _, t1, rows1 = _branch_dims(length, _CFG_F1)
    _, t2, rows2 = _branch_dims(length, _CFG_F2)
    t_cat = t1 + t2
    buf_rows = -(-max(rows1, rows2) // 8) * 8

    # im2col for the strided first convs (tiny duplication of a ~12 KB signal);
    # bf16 so the per-step input DMA is lane-dense and half-size.
    x1p = _im2col(y, _CFG_F1["k1"], _CFG_F1["s1"],
                  _CFG_F1["conv1_pad"]).astype(jnp.bfloat16)
    x2p = _im2col(y, _CFG_F2["k1"], _CFG_F2["s1"],
                  _CFG_F2["conv1_pad"]).astype(jnp.bfloat16)

    f1, f2 = params["f1"], params["f2"]
    w11, b11 = _fold_bn_into_conv(f1[0], (1, 2, 0))
    w12, b12 = _fold_bn_into_conv(f1[1], (2, 1, 0))
    w13, b13 = _fold_bn_into_conv(f1[2], (2, 1, 0))
    w14, b14 = _fold_bn_into_conv(f1[3], (2, 1, 0))
    w21, b21 = _fold_bn_into_conv(f2[0], (1, 2, 0))
    w22, b22 = _fold_bn_into_conv(f2[1], (2, 1, 0))
    w23, b23 = _fold_bn_into_conv(f2[2], (2, 1, 0))
    w24, b24 = _fold_bn_into_conv(f2[3], (2, 1, 0))
    consts = (w11, b11, w12, b12, w13, b13, w14, b14,
              w21, b21, w22, b22, w23, b23, w24, b24)

    kernel = functools.partial(_fused_kernel, _CFG_F1, _CFG_F2, t1)

    out = pl.pallas_call(
        kernel,
        grid=(b,),
        in_specs=[pl.BlockSpec((1,) + x1p.shape[1:], lambda i: (i, 0, 0)),
                  pl.BlockSpec((1,) + x2p.shape[1:], lambda i: (i, 0, 0))]
                 + [_const_spec(a) for a in consts],
        out_specs=pl.BlockSpec((1, t_cat, 128), lambda i: (i, 0, 0)),
        out_shape=jax.ShapeDtypeStruct((b, t_cat, 128), jnp.float32),
        scratch_shapes=[pltpu.VMEM((buf_rows, 128), jnp.float32)],
        compiler_params=pltpu.CompilerParams(
            dimension_semantics=("parallel",)),
    )(x1p, x2p, *consts)

    # Branch concat already done along the time axis in-kernel;
    # final Dropout(0.5) is identity in eval mode.
    return jnp.transpose(out, (0, 2, 1))                 # (B, 128, t1+t2) NCL


# ------------------------------ parameter init ------------------------------

def _conv_layer_params(key, c_in, c_out, k):
    k1, k2, k3, k4, k5 = jax.random.split(key, 5)
    return dict(
        w=0.05 * jax.random.normal(k1, (c_out, c_in, k), jnp.float32),
        gamma=1.0 + 0.1 * jax.random.normal(k2, (c_out,), jnp.float32),
        beta=0.1 * jax.random.normal(k3, (c_out,), jnp.float32),
        mean=0.1 * jax.random.normal(k4, (c_out,), jnp.float32),
        var=1.0 + 0.1 * jnp.abs(jax.random.normal(k5, (c_out,), jnp.float32)),
    )


def init_params(key, channels):
    ks = jax.random.split(key, 8)
    return {
        "f1": [
            _conv_layer_params(ks[0], channels, 64, 64),
            _conv_layer_params(ks[1], 64, 128, 8),
            _conv_layer_params(ks[2], 128, 128, 8),
            _conv_layer_params(ks[3], 128, 128, 8),
        ],
        "f2": [
            _conv_layer_params(ks[4], channels, 64, 512),
            _conv_layer_params(ks[5], 64, 128, 6),
            _conv_layer_params(ks[6], 128, 128, 6),
            _conv_layer_params(ks[7], 128, 128, 6),
        ],
    }


# ----------------------------------- main ------------------------------------

if __name__ == "__main__":
    key = jax.random.PRNGKey(0)
    k_in, k_par = jax.random.split(key)

    channels = 1
    batch, length = 2, 3000   # 30 s EEG epoch @ 100 Hz (typical for this model)
    y = jax.random.normal(k_in, (batch, channels, length), jnp.float32)
    params = init_params(k_par, channels)

    fwd = jax.jit(functools.partial(temporal_feature_eeg, params))
    out = fwd(y)
    jax.block_until_ready(out)

    # Expected PyTorch output shape for L=3000: branch1 -> (B,128,13),
    # branch2 -> (B,128,11), concat along length -> (B,128,24).
    assert out.shape == (batch, 128, 24), out.shape
    assert out.dtype == jnp.float32
    assert bool(jnp.all(jnp.isfinite(out)))
    print("KERNEL_OK")
</pallas_src>

<mosaic_0001>
module attributes {stable_mosaic.version = 11 : i64} {
  func.func @_fused_kernel(%arg0: i32, %arg1: memref<1x374x64xbf16, #tpu.memory_space<vmem>>, %arg2: memref<1x40x512xbf16, #tpu.memory_space<vmem>>, %arg3: memref<64x64xbf16, #tpu.memory_space<vmem>>, %arg4: memref<1x64xf32, #tpu.memory_space<vmem>>, %arg5: memref<512x128xbf16, #tpu.memory_space<vmem>>, %arg6: memref<1x128xf32, #tpu.memory_space<vmem>>, %arg7: memref<1024x128xbf16, #tpu.memory_space<vmem>>, %arg8: memref<1x128xf32, #tpu.memory_space<vmem>>, %arg9: memref<1024x128xbf16, #tpu.memory_space<vmem>>, %arg10: memref<1x128xf32, #tpu.memory_space<vmem>>, %arg11: memref<512x64xbf16, #tpu.memory_space<vmem>>, %arg12: memref<1x64xf32, #tpu.memory_space<vmem>>, %arg13: memref<384x128xbf16, #tpu.memory_space<vmem>>, %arg14: memref<1x128xf32, #tpu.memory_space<vmem>>, %arg15: memref<768x128xbf16, #tpu.memory_space<vmem>>, %arg16: memref<1x128xf32, #tpu.memory_space<vmem>>, %arg17: memref<768x128xbf16, #tpu.memory_space<vmem>>, %arg18: memref<1x128xf32, #tpu.memory_space<vmem>>, %arg19: memref<1x24x128xf32, #tpu.memory_space<vmem>>, %arg20: memref<376x128xf32, #tpu.memory_space<vmem>>) attributes {dimension_semantics = [#tpu.dimension_semantics<parallel>], iteration_bounds = array<i64: 2>, scalar_prefetch = 0 : i64, scratch_operands = 1 : i64, tpu.core_type = #tpu.core_type<tc>, window_params = [{transform_indices = @transform_0, window_bounds = array<i64: 1, 374, 64>}, {transform_indices = @transform_1, window_bounds = array<i64: 1, 40, 512>}, {pipeline_mode = #tpu.pipeline_mode<synchronous>, transform_indices = @transform_2, window_bounds = array<i64: 64, 64>}, {pipeline_mode = #tpu.pipeline_mode<synchronous>, transform_indices = @transform_3, window_bounds = array<i64: 1, 64>}, {pipeline_mode = #tpu.pipeline_mode<synchronous>, transform_indices = @transform_4, window_bounds = array<i64: 512, 128>}, {pipeline_mode = #tpu.pipeline_mode<synchronous>, transform_indices = @transform_5, window_bounds = array<i64: 1, 128>}, {pipeline_mode = #tpu.pipeline_mode<synchronous>, transform_indices = @transform_6, window_bounds = array<i64: 1024, 128>}, {pipeline_mode = #tpu.pipeline_mode<synchronous>, transform_indices = @transform_7, window_bounds = array<i64: 1, 128>}, {pipeline_mode = #tpu.pipeline_mode<synchronous>, transform_indices = @transform_8, window_bounds = array<i64: 1024, 128>}, {pipeline_mode = #tpu.pipeline_mode<synchronous>, transform_indices = @transform_9, window_bounds = array<i64: 1, 128>}, {pipeline_mode = #tpu.pipeline_mode<synchronous>, transform_indices = @transform_10, window_bounds = array<i64: 512, 64>}, {pipeline_mode = #tpu.pipeline_mode<synchronous>, transform_indices = @transform_11, window_bounds = array<i64: 1, 64>}, {pipeline_mode = #tpu.pipeline_mode<synchronous>, transform_indices = @transform_12, window_bounds = array<i64: 384, 128>}, {pipeline_mode = #tpu.pipeline_mode<synchronous>, transform_indices = @transform_13, window_bounds = array<i64: 1, 128>}, {pipeline_mode = #tpu.pipeline_mode<synchronous>, transform_indices = @transform_14, window_bounds = array<i64: 768, 128>}, {pipeline_mode = #tpu.pipeline_mode<synchronous>, transform_indices = @transform_15, window_bounds = array<i64: 1, 128>}, {pipeline_mode = #tpu.pipeline_mode<synchronous>, transform_indices = @transform_16, window_bounds = array<i64: 768, 128>}, {pipeline_mode = #tpu.pipeline_mode<synchronous>, transform_indices = @transform_17, window_bounds = array<i64: 1, 128>}, {transform_indices = @transform_18, window_bounds = array<i64: 1, 24, 128>}]} {
    %c0 = arith.constant 0 : index
    %c0_0 = arith.constant 0 : index
    %c0_1 = arith.constant 0 : index
    %0 = vector.load %arg1[%c0, %c0_0, %c0_1] : memref<1x374x64xbf16, #tpu.memory_space<vmem>>, vector<1x374x64xbf16>
    %1 = vector.shape_cast %0 : vector<1x374x64xbf16> to vector<374x64xbf16>
    %c0_2 = arith.constant 0 : index
    %c0_3 = arith.constant 0 : index
    %2 = vector.load %arg3[%c0_2, %c0_3] : memref<64x64xbf16, #tpu.memory_space<vmem>>, vector<64x64xbf16>
    %cst = arith.constant dense<0.000000e+00> : vector<374x64xf32>
    %3 = tpu.matmul %1, %2, %cst {dimension_numbers = #tpu.dot_dimension_numbers<[1], [0], [0], [1], [0, 0, 1, 1], [], []>} : vector<374x64xbf16>, vector<64x64xbf16>, vector<374x64xf32> -> vector<374x64xf32>
    %c0_4 = arith.constant 0 : index
    %c0_5 = arith.constant 0 : index
    %4 = vector.load %arg4[%c0_4, %c0_5] : memref<1x64xf32, #tpu.memory_space<vmem>>, vector<1x64xf32>
    %5 = vector.broadcast %4 : vector<1x64xf32> to vector<374x64xf32>
    %6 = arith.addf %3, %5 : vector<374x64xf32>
    %cst_6 = arith.constant 0.000000e+00 : f32
    %7 = vector.broadcast %cst_6 : f32 to vector<374x64xf32>
    %8 = arith.cmpf oge, %6, %7 : vector<374x64xf32>
    %cst_7 = arith.constant 0.00999999977 : f32
    %9 = vector.broadcast %cst_7 : f32 to vector<374x64xf32>
    %10 = arith.mulf %9, %6 : vector<374x64xf32>
    %11 = arith.select %8, %6, %10 : vector<374x64xi1>, vector<374x64xf32>
    %cst_8 = arith.constant 0xFF800000 : f32
    %12 = vector.broadcast %cst_8 : f32 to vector<4x64xf32>
    %c0_9 = arith.constant 0 : index
    %c0_10 = arith.constant 0 : index
    %13 = vector.load %arg20[%c0_9, %c0_10] : memref<376x128xf32, #tpu.memory_space<vmem>>, vector<4x64xf32>
    tpu.vector_store %arg20[%c0_9, %c0_10], %12 {strides = array<i32>} : memref<376x128xf32, #tpu.memory_space<vmem>>, vector<4x64xf32>,
    %14 = vector.extract_strided_slice %11 {offsets = [0, 0], sizes = [372, 64], strides = [1, 1]} : vector<374x64xf32> to vector<372x64xf32>
    %c4 = arith.constant 4 : index
    %c0_11 = arith.constant 0 : index
    %15 = vector.load %arg20[%c4, %c0_11] : memref<376x128xf32, #tpu.memory_space<vmem>>, vector<372x64xf32>
    tpu.vector_store %arg20[%c4, %c0_11], %14 {strides = array<i32>} : memref<376x128xf32, #tpu.memory_space<vmem>>, vector<372x64xf32>,
    %c0_12 = arith.constant 0 : index
    %c0_13 = arith.constant 0 : index
    %16 = tpu.strided_load %arg20[%c0_12, %c0_13] {strides = array<i32: 8, 1>} : memref<376x128xf32, #tpu.memory_space<vmem>>, vector<47x128xf32>
    %c1 = arith.constant 1 : index
    %c0_14 = arith.constant 0 : index
    %17 = tpu.strided_load %arg20[%c1, %c0_14] {strides = array<i32: 8, 1>} : memref<376x128xf32, #tpu.memory_space<vmem>>, vector<47x128xf32>
    %18 = arith.maximumf %16, %17 : vector<47x128xf32>
    %c2 = arith.constant 2 : index
    %c0_15 = arith.constant 0 : index
    %19 = tpu.strided_load %arg20[%c2, %c0_15] {strides = array<i32: 8, 1>} : memref<376x128xf32, #tpu.memory_space<vmem>>, vector<47x128xf32>
    %20 = arith.maximumf %18, %19 : vector<47x128xf32>
    %c3 = arith.constant 3 : index
    %c0_16 = arith.constant 0 : index
    %21 = tpu.strided_load %arg20[%c3, %c0_16] {strides = array<i32: 8, 1>} : memref<376x128xf32, #tpu.memory_space<vmem>>, vector<47x128xf32>
    %22 = arith.maximumf %20, %21 : vector<47x128xf32>
    %c4_17 = arith.constant 4 : index
    %c0_18 = arith.constant 0 : index
    %23 = tpu.strided_load %arg20[%c4_17, %c0_18] {strides = array<i32: 8, 1>} : memref<376x128xf32, #tpu.memory_space<vmem>>, vector<47x128xf32>
    %24 = arith.maximumf %22, %23 : vector<47x128xf32>
    %c5 = arith.constant 5 : index
    %c0_19 = arith.constant 0 : index
    %25 = tpu.strided_load %arg20[%c5, %c0_19] {strides = array<i32: 8, 1>} : memref<376x128xf32, #tpu.memory_space<vmem>>, vector<47x128xf32>
    %26 = arith.maximumf %24, %25 : vector<47x128xf32>
    %c6 = arith.constant 6 : index
    %c0_20 = arith.constant 0 : index
    %27 = tpu.strided_load %arg20[%c6, %c0_20] {strides = array<i32: 8, 1>} : memref<376x128xf32, #tpu.memory_space<vmem>>, vector<47x128xf32>
    %28 = arith.maximumf %26, %27 : vector<47x128xf32>
    %c7 = arith.constant 7 : index
    %c0_21 = arith.constant 0 : index
    %29 = tpu.strided_load %arg20[%c7, %c0_21] {strides = array<i32: 8, 1>} : memref<376x128xf32, #tpu.memory_space<vmem>>, vector<47x128xf32>
    %30 = arith.maximumf %28, %29 : vector<47x128xf32>
    %31 = vector.extract_strided_slice %30 {offsets = [0, 0], sizes = [47, 64], strides = [1, 1]} : vector<47x128xf32> to vector<47x64xf32>
    %c0_22 = arith.constant 0 : index
    %c0_23 = arith.constant 0 : index
    %32 = vector.load %arg6[%c0_22, %c0_23] : memref<1x128xf32, #tpu.memory_space<vmem>>, vector<1x128xf32>
    %cst_24 = arith.constant 0.000000e+00 : f32
    %33 = vector.broadcast %cst_24 : f32 to vector<4x64xf32>
    %34 = tpu.concatenate %33, %31, %33 in 0 : vector<4x64xf32>, vector<47x64xf32>, vector<4x64xf32> -> vector<55x64xf32>
    %35 = vector.extract_strided_slice %34 {offsets = [0, 0], sizes = [48, 64], strides = [1, 1]} : vector<55x64xf32> to vector<48x64xf32>
    %36 = vector.extract_strided_slice %34 {offsets = [1, 0], sizes = [48, 64], strides = [1, 1]} : vector<55x64xf32> to vector<48x64xf32>
    %37 = vector.extract_strided_slice %34 {offsets = [2, 0], sizes = [48, 64], strides = [1, 1]} : vector<55x64xf32> to vector<48x64xf32>
    %38 = vector.extract_strided_slice %34 {offsets = [3, 0], sizes = [48, 64], strides = [1, 1]} : vector<55x64xf32> to vector<48x64xf32>
    %39 = vector.extract_strided_slice %34 {offsets = [4, 0], sizes = [48, 64], strides = [1, 1]} : vector<55x64xf32> to vector<48x64xf32>
    %40 = vector.extract_strided_slice %34 {offsets = [5, 0], sizes = [48, 64], strides = [1, 1]} : vector<55x64xf32> to vector<48x64xf32>
    %41 = vector.extract_strided_slice %34 {offsets = [6, 0], sizes = [48, 64], strides = [1, 1]} : vector<55x64xf32> to vector<48x64xf32>
    %42 = vector.extract_strided_slice %34 {offsets = [7, 0], sizes = [48, 64], strides = [1, 1]} : vector<55x64xf32> to vector<48x64xf32>
    %43 = tpu.concatenate %35, %36, %37, %38, %39, %40, %41, %42 in 1 : vector<48x64xf32>, vector<48x64xf32>, vector<48x64xf32>, vector<48x64xf32>, vector<48x64xf32>, vector<48x64xf32>, vector<48x64xf32>, vector<48x64xf32> -> vector<48x512xf32>
    %44 = arith.truncf %43 : vector<48x512xf32> to vector<48x512xbf16>
    %c0_25 = arith.constant 0 : index
    %c0_26 = arith.constant 0 : index
    %45 = vector.load %arg5[%c0_25, %c0_26] : memref<512x128xbf16, #tpu.memory_space<vmem>>, vector<512x128xbf16>
    %cst_27 = arith.constant dense<0.000000e+00> : vector<48x128xf32>
    %46 = tpu.matmul %44, %45, %cst_27 {dimension_numbers = #tpu.dot_dimension_numbers<[1], [0], [0], [1], [0, 0, 1, 1], [], []>} : vector<48x512xbf16>, vector<512x128xbf16>, vector<48x128xf32> -> vector<48x128xf32>
    %47 = vector.broadcast %32 : vector<1x128xf32> to vector<48x128xf32>
    %48 = arith.addf %46, %47 : vector<48x128xf32>
    %cst_28 = arith.constant 0.000000e+00 : f32
    %49 = vector.broadcast %cst_28 : f32 to vector<48x128xf32>
    %50 = arith.cmpf oge, %48, %49 : vector<48x128xf32>
    %cst_29 = arith.constant 0.00999999977 : f32
    %51 = vector.broadcast %cst_29 : f32 to vector<48x128xf32>
    %52 = arith.mulf %51, %48 : vector<48x128xf32>
    %53 = arith.select %50, %48, %52 : vector<48x128xi1>, vector<48x128xf32>
    %c0_30 = arith.constant 0 : index
    %c0_31 = arith.constant 0 : index
    %54 = vector.load %arg8[%c0_30, %c0_31] : memref<1x128xf32, #tpu.memory_space<vmem>>, vector<1x128xf32>
    %cst_32 = arith.constant 0.000000e+00 : f32
    %55 = vector.broadcast %cst_32 : f32 to vector<4x128xf32>
    %56 = tpu.concatenate %55, %53, %55 in 0 : vector<4x128xf32>, vector<48x128xf32>, vector<4x128xf32> -> vector<56x128xf32>
    %57 = vector.extract_strided_slice %56 {offsets = [0, 0], sizes = [49, 128], strides = [1, 1]} : vector<56x128xf32> to vector<49x128xf32>
    %58 = vector.extract_strided_slice %56 {offsets = [1, 0], sizes = [49, 128], strides = [1, 1]} : vector<56x128xf32> to vector<49x128xf32>
    %59 = vector.extract_strided_slice %56 {offsets = [2, 0], sizes = [49, 128], strides = [1, 1]} : vector<56x128xf32> to vector<49x128xf32>
    %60 = vector.extract_strided_slice %56 {offsets = [3, 0], sizes = [49, 128], strides = [1, 1]} : vector<56x128xf32> to vector<49x128xf32>
    %61 = vector.extract_strided_slice %56 {offsets = [4, 0], sizes = [49, 128], strides = [1, 1]} : vector<56x128xf32> to vector<49x128xf32>
    %62 = vector.extract_strided_slice %56 {offsets = [5, 0], sizes = [49, 128], strides = [1, 1]} : vector<56x128xf32> to vector<49x128xf32>
    %63 = vector.extract_strided_slice %56 {offsets = [6, 0], sizes = [49, 128], strides = [1, 1]} : vector<56x128xf32> to vector<49x128xf32>
    %64 = vector.extract_strided_slice %56 {offsets = [7, 0], sizes = [49, 128], strides = [1, 1]} : vector<56x128xf32> to vector<49x128xf32>
    %65 = tpu.concatenate %57, %58, %59, %60, %61, %62, %63, %64 in 1 : vector<49x128xf32>, vector<49x128xf32>, vector<49x128xf32>, vector<49x128xf32>, vector<49x128xf32>, vector<49x128xf32>, vector<49x128xf32>, vector<49x128xf32> -> vector<49x1024xf32>
    %66 = arith.truncf %65 : vector<49x1024xf32> to vector<49x1024xbf16>
    %c0_33 = arith.constant 0 : index
    %c0_34 = arith.constant 0 : index
    %67 = vector.load %arg7[%c0_33, %c0_34] : memref<1024x128xbf16, #tpu.memory_space<vmem>>, vector<1024x128xbf16>
    %cst_35 = arith.constant dense<0.000000e+00> : vector<49x128xf32>
    %68 = tpu.matmul %66, %67, %cst_35 {dimension_numbers = #tpu.dot_dimension_numbers<[1], [0], [0], [1], [0, 0, 1, 1], [], []>} : vector<49x1024xbf16>, vector<1024x128xbf16>, vector<49x128xf32> -> vector<49x128xf32>
    %69 = vector.broadcast %54 : vector<1x128xf32> to vector<49x128xf32>
    %70 = arith.addf %68, %69 : vector<49x128xf32>
    %cst_36 = arith.constant 0.000000e+00 : f32
    %71 = vector.broadcast %cst_36 : f32 to vector<49x128xf32>
    %72 = arith.cmpf oge, %70, %71 : vector<49x128xf32>
    %cst_37 = arith.constant 0.00999999977 : f32
    %73 = vector.broadcast %cst_37 : f32 to vector<49x128xf32>
    %74 = arith.mulf %73, %70 : vector<49x128xf32>
    %75 = arith.select %72, %70, %74 : vector<49x128xi1>, vector<49x128xf32>
    %c0_38 = arith.constant 0 : index
    %c0_39 = arith.constant 0 : index
    %76 = vector.load %arg10[%c0_38, %c0_39] : memref<1x128xf32, #tpu.memory_space<vmem>>, vector<1x128xf32>
    %cst_40 = arith.constant 0.000000e+00 : f32
    %77 = vector.broadcast %cst_40 : f32 to vector<4x128xf32>
    %78 = tpu.concatenate %77, %75, %77 in 0 : vector<4x128xf32>, vector<49x128xf32>, vector<4x128xf32> -> vector<57x128xf32>
    %79 = vector.extract_strided_slice %78 {offsets = [0, 0], sizes = [50, 128], strides = [1, 1]} : vector<57x128xf32> to vector<50x128xf32>
    %80 = vector.extract_strided_slice %78 {offsets = [1, 0], sizes = [50, 128], strides = [1, 1]} : vector<57x128xf32> to vector<50x128xf32>
    %81 = vector.extract_strided_slice %78 {offsets = [2, 0], sizes = [50, 128], strides = [1, 1]} : vector<57x128xf32> to vector<50x128xf32>
    %82 = vector.extract_strided_slice %78 {offsets = [3, 0], sizes = [50, 128], strides = [1, 1]} : vector<57x128xf32> to vector<50x128xf32>
    %83 = vector.extract_strided_slice %78 {offsets = [4, 0], sizes = [50, 128], strides = [1, 1]} : vector<57x128xf32> to vector<50x128xf32>
    %84 = vector.extract_strided_slice %78 {offsets = [5, 0], sizes = [50, 128], strides = [1, 1]} : vector<57x128xf32> to vector<50x128xf32>
    %85 = vector.extract_strided_slice %78 {offsets = [6, 0], sizes = [50, 128], strides = [1, 1]} : vector<57x128xf32> to vector<50x128xf32>
    %86 = vector.extract_strided_slice %78 {offsets = [7, 0], sizes = [50, 128], strides = [1, 1]} : vector<57x128xf32> to vector<50x128xf32>
    %87 = tpu.concatenate %79, %80, %81, %82, %83, %84, %85, %86 in 1 : vector<50x128xf32>, vector<50x128xf32>, vector<50x128xf32>, vector<50x128xf32>, vector<50x128xf32>, vector<50x128xf32>, vector<50x128xf32>, vector<50x128xf32> -> vector<50x1024xf32>
    %88 = arith.truncf %87 : vector<50x1024xf32> to vector<50x1024xbf16>
    %c0_41 = arith.constant 0 : index
    %c0_42 = arith.constant 0 : index
    %89 = vector.load %arg9[%c0_41, %c0_42] : memref<1024x128xbf16, #tpu.memory_space<vmem>>, vector<1024x128xbf16>
    %cst_43 = arith.constant dense<0.000000e+00> : vector<50x128xf32>
    %90 = tpu.matmul %88, %89, %cst_43 {dimension_numbers = #tpu.dot_dimension_numbers<[1], [0], [0], [1], [0, 0, 1, 1], [], []>} : vector<50x1024xbf16>, vector<1024x128xbf16>, vector<50x128xf32> -> vector<50x128xf32>
    %91 = vector.broadcast %76 : vector<1x128xf32> to vector<50x128xf32>
    %92 = arith.addf %90, %91 : vector<50x128xf32>
    %cst_44 = arith.constant 0.000000e+00 : f32
    %93 = vector.broadcast %cst_44 : f32 to vector<50x128xf32>
    %94 = arith.cmpf oge, %92, %93 : vector<50x128xf32>
    %cst_45 = arith.constant 0.00999999977 : f32
    %95 = vector.broadcast %cst_45 : f32 to vector<50x128xf32>
    %96 = arith.mulf %95, %92 : vector<50x128xf32>
    %97 = arith.select %94, %92, %96 : vector<50x128xi1>, vector<50x128xf32>
    %cst_46 = arith.constant 0xFF800000 : f32
    %98 = vector.broadcast %cst_46 : f32 to vector<2x128xf32>
    %c0_47 = arith.constant 0 : index
    %c0_48 = arith.constant 0 : index
    %99 = vector.load %arg20[%c0_47, %c0_48] : memref<376x128xf32, #tpu.memory_space<vmem>>, vector<2x128xf32>
    tpu.vector_store %arg20[%c0_47, %c0_48], %98 {strides = array<i32>} : memref<376x128xf32, #tpu.memory_space<vmem>>, vector<2x128xf32>,
    %c2_49 = arith.constant 2 : index
    %c0_50 = arith.constant 0 : index
    %100 = vector.load %arg20[%c2_49, %c0_50] : memref<376x128xf32, #tpu.memory_space<vmem>>, vector<50x128xf32>
    tpu.vector_store %arg20[%c2_49, %c0_50], %97 {strides = array<i32>} : memref<376x128xf32, #tpu.memory_space<vmem>>, vector<50x128xf32>,
    %c0_51 = arith.constant 0 : index
    %c0_52 = arith.constant 0 : index
    %101 = tpu.strided_load %arg20[%c0_51, %c0_52] {strides = array<i32: 4, 1>} : memref<376x128xf32, #tpu.memory_space<vmem>>, vector<13x128xf32>
    %c1_53 = arith.constant 1 : index
    %c0_54 = arith.constant 0 : index
    %102 = tpu.strided_load %arg20[%c1_53, %c0_54] {strides = array<i32: 4, 1>} : memref<376x128xf32, #tpu.memory_space<vmem>>, vector<13x128xf32>
    %103 = arith.maximumf %101, %102 : vector<13x128xf32>
    %c2_55 = arith.constant 2 : index
    %c0_56 = arith.constant 0 : index
    %104 = tpu.strided_load %arg20[%c2_55, %c0_56] {strides = array<i32: 4, 1>} : memref<376x128xf32, #tpu.memory_space<vmem>>, vector<13x128xf32>
    %105 = arith.maximumf %103, %104 : vector<13x128xf32>
    %c3_57 = arith.constant 3 : index
    %c0_58 = arith.constant 0 : index
    %106 = tpu.strided_load %arg20[%c3_57, %c0_58] {strides = array<i32: 4, 1>} : memref<376x128xf32, #tpu.memory_space<vmem>>, vector<13x128xf32>
    %107 = arith.maximumf %105, %106 : vector<13x128xf32>
    %c0_59 = arith.constant 0 : index
    %c0_60 = arith.constant 0 : index
    %c0_61 = arith.constant 0 : index
    %108 = vector.load %arg2[%c0_59, %c0_60, %c0_61] : memref<1x40x512xbf16, #tpu.memory_space<vmem>>, vector<1x40x512xbf16>
    %109 = vector.shape_cast %108 : vector<1x40x512xbf16> to vector<40x512xbf16>
    %c0_62 = arith.constant 0 : index
    %c0_63 = arith.constant 0 : index
    %110 = vector.load %arg11[%c0_62, %c0_63] : memref<512x64xbf16, #tpu.memory_space<vmem>>, vector<512x64xbf16>
    %cst_64 = arith.constant dense<0.000000e+00> : vector<40x64xf32>
    %111 = tpu.matmul %109, %110, %cst_64 {dimension_numbers = #tpu.dot_dimension_numbers<[1], [0], [0], [1], [0, 0, 1, 1], [], []>} : vector<40x512xbf16>, vector<512x64xbf16>, vector<40x64xf32> -> vector<40x64xf32>
    %c0_65 = arith.constant 0 : index
    %c0_66 = arith.constant 0 : index
    %112 = vector.load %arg12[%c0_65, %c0_66] : memref<1x64xf32, #tpu.memory_space<vmem>>, vector<1x64xf32>
    %113 = vector.broadcast %112 : vector<1x64xf32> to vector<40x64xf32>
    %114 = arith.addf %111, %113 : vector<40x64xf32>
    %cst_67 = arith.constant 0.000000e+00 : f32
    %115 = vector.broadcast %cst_67 : f32 to vector<40x64xf32>
    %116 = arith.cmpf oge, %114, %115 : vector<40x64xf32>
    %cst_68 = arith.constant 0.00999999977 : f32
    %117 = vector.broadcast %cst_68 : f32 to vector<40x64xf32>
    %118 = arith.mulf %117, %114 : vector<40x64xf32>
    %119 = arith.select %116, %114, %118 : vector<40x64xi1>, vector<40x64xf32>
    %cst_69 = arith.constant 0xFF800000 : f32
    %120 = vector.broadcast %cst_69 : f32 to vector<2x64xf32>
    %c0_70 = arith.constant 0 : index
    %c0_71 = arith.constant 0 : index
    %121 = vector.load %arg20[%c0_70, %c0_71] : memref<376x128xf32, #tpu.memory_space<vmem>>, vector<2x64xf32>
    tpu.vector_store %arg20[%c0_70, %c0_71], %120 {strides = array<i32>} : memref<376x128xf32, #tpu.memory_space<vmem>>, vector<2x64xf32>,
    %c2_72 = arith.constant 2 : index
    %c0_73 = arith.constant 0 : index
    %122 = vector.load %arg20[%c2_72, %c0_73] : memref<376x128xf32, #tpu.memory_space<vmem>>, vector<40x64xf32>
    tpu.vector_store %arg20[%c2_72, %c0_73], %119 {strides = array<i32>} : memref<376x128xf32, #tpu.memory_space<vmem>>, vector<40x64xf32>,
    %cst_74 = arith.constant 0xFF800000 : f32
    %123 = vector.broadcast %cst_74 : f32 to vector<2x64xf32>
    %c42 = arith.constant 42 : index
    %c0_75 = arith.constant 0 : index
    %124 = vector.load %arg20[%c42, %c0_75] : memref<376x128xf32, #tpu.memory_space<vmem>>, vector<2x64xf32>
    tpu.vector_store %arg20[%c42, %c0_75], %123 {strides = array<i32>} : memref<376x128xf32, #tpu.memory_space<vmem>>, vector<2x64xf32>,
    %c0_76 = arith.constant 0 : index
    %c0_77 = arith.constant 0 : index
    %125 = tpu.strided_load %arg20[%c0_76, %c0_77] {strides = array<i32: 4, 1>} : memref<376x128xf32, #tpu.memory_space<vmem>>, vector<11x128xf32>
    %c1_78 = arith.constant 1 : index
    %c0_79 = arith.constant 0 : index
    %126 = tpu.strided_load %arg20[%c1_78, %c0_79] {strides = array<i32: 4, 1>} : memref<376x128xf32, #tpu.memory_space<vmem>>, vector<11x128xf32>
    %127 = arith.maximumf %125, %126 : vector<11x128xf32>
    %c2_80 = arith.constant 2 : index
    %c0_81 = arith.constant 0 : index
    %128 = tpu.strided_load %arg20[%c2_80, %c0_81] {strides = array<i32: 4, 1>} : memref<376x128xf32, #tpu.memory_space<vmem>>, vector<11x128xf32>
    %129 = arith.maximumf %127, %128 : vector<11x128xf32>
    %c3_82 = arith.constant 3 : index
    %c0_83 = arith.constant 0 : index
    %130 = tpu.strided_load %arg20[%c3_82, %c0_83] {strides = array<i32: 4, 1>} : memref<376x128xf32, #tpu.memory_space<vmem>>, vector<11x128xf32>
    %131 = arith.maximumf %129, %130 : vector<11x128xf32>
    %132 = vector.extract_strided_slice %131 {offsets = [0, 0], sizes = [11, 64], strides = [1, 1]} : vector<11x128xf32> to vector<11x64xf32>
    %c0_84 = arith.constant 0 : index
    %c0_85 = arith.constant 0 : index
    %133 = vector.load %arg14[%c0_84, %c0_85] : memref<1x128xf32, #tpu.memory_space<vmem>>, vector<1x128xf32>
    %cst_86 = arith.constant 0.000000e+00 : f32
    %134 = vector.broadcast %cst_86 : f32 to vector<4x64xf32>
    %135 = tpu.concatenate %134, %132, %134 in 0 : vector<4x64xf32>, vector<11x64xf32>, vector<4x64xf32> -> vector<19x64xf32>
    %136 = vector.extract_strided_slice %135 {offsets = [0, 0], sizes = [14, 64], strides = [1, 1]} : vector<19x64xf32> to vector<14x64xf32>
    %137 = vector.extract_strided_slice %135 {offsets = [1, 0], sizes = [14, 64], strides = [1, 1]} : vector<19x64xf32> to vector<14x64xf32>
    %138 = vector.extract_strided_slice %135 {offsets = [2, 0], sizes = [14, 64], strides = [1, 1]} : vector<19x64xf32> to vector<14x64xf32>
    %139 = vector.extract_strided_slice %135 {offsets = [3, 0], sizes = [14, 64], strides = [1, 1]} : vector<19x64xf32> to vector<14x64xf32>
    %140 = vector.extract_strided_slice %135 {offsets = [4, 0], sizes = [14, 64], strides = [1, 1]} : vector<19x64xf32> to vector<14x64xf32>
    %141 = vector.extract_strided_slice %135 {offsets = [5, 0], sizes = [14, 64], strides = [1, 1]} : vector<19x64xf32> to vector<14x64xf32>
    %142 = tpu.concatenate %136, %137, %138, %139, %140, %141 in 1 : vector<14x64xf32>, vector<14x64xf32>, vector<14x64xf32>, vector<14x64xf32>, vector<14x64xf32>, vector<14x64xf32> -> vector<14x384xf32>
    %143 = arith.truncf %142 : vector<14x384xf32> to vector<14x384xbf16>
    %c0_87 = arith.constant 0 : index
    %c0_88 = arith.constant 0 : index
    %144 = vector.load %arg13[%c0_87, %c0_88] : memref<384x128xbf16, #tpu.memory_space<vmem>>, vector<384x128xbf16>
    %cst_89 = arith.constant dense<0.000000e+00> : vector<14x128xf32>
    %145 = tpu.matmul %143, %144, %cst_89 {dimension_numbers = #tpu.dot_dimension_numbers<[1], [0], [0], [1], [0, 0, 1, 1], [], []>} : vector<14x384xbf16>, vector<384x128xbf16>, vector<14x128xf32> -> vector<14x128xf32>
    %146 = vector.broadcast %133 : vector<1x128xf32> to vector<14x128xf32>
    %147 = arith.addf %145, %146 : vector<14x128xf32>
    %cst_90 = arith.constant 0.000000e+00 : f32
    %148 = vector.broadcast %cst_90 : f32 to vector<14x128xf32>
    %149 = arith.cmpf oge, %147, %148 : vector<14x128xf32>
    %cst_91 = arith.constant 0.00999999977 : f32
    %150 = vector.broadcast %cst_91 : f32 to vector<14x128xf32>
    %151 = arith.mulf %150, %147 : vector<14x128xf32>
    %152 = arith.select %149, %147, %151 : vector<14x128xi1>, vector<14x128xf32>
    %c0_92 = arith.constant 0 : index
    %c0_93 = arith.constant 0 : index
    %153 = vector.load %arg16[%c0_92, %c0_93] : memref<1x128xf32, #tpu.memory_space<vmem>>, vector<1x128xf32>
    %cst_94 = arith.constant 0.000000e+00 : f32
    %154 = vector.broadcast %cst_94 : f32 to vector<4x128xf32>
    %155 = tpu.concatenate %154, %152, %154 in 0 : vector<4x128xf32>, vector<14x128xf32>, vector<4x128xf32> -> vector<22x128xf32>
    %156 = vector.extract_strided_slice %155 {offsets = [0, 0], sizes = [17, 128], strides = [1, 1]} : vector<22x128xf32> to vector<17x128xf32>
    %157 = vector.extract_strided_slice %155 {offsets = [1, 0], sizes = [17, 128], strides = [1, 1]} : vector<22x128xf32> to vector<17x128xf32>
    %158 = vector.extract_strided_slice %155 {offsets = [2, 0], sizes = [17, 128], strides = [1, 1]} : vector<22x128xf32> to vector<17x128xf32>
    %159 = vector.extract_strided_slice %155 {offsets = [3, 0], sizes = [17, 128], strides = [1, 1]} : vector<22x128xf32> to vector<17x128xf32>
    %160 = vector.extract_strided_slice %155 {offsets = [4, 0], sizes = [17, 128], strides = [1, 1]} : vector<22x128xf32> to vector<17x128xf32>
    %161 = vector.extract_strided_slice %155 {offsets = [5, 0], sizes = [17, 128], strides = [1, 1]} : vector<22x128xf32> to vector<17x128xf32>
    %162 = tpu.concatenate %156, %157, %158, %159, %160, %161 in 1 : vector<17x128xf32>, vector<17x128xf32>, vector<17x128xf32>, vector<17x128xf32>, vector<17x128xf32>, vector<17x128xf32> -> vector<17x768xf32>
    %163 = arith.truncf %162 : vector<17x768xf32> to vector<17x768xbf16>
    %c0_95 = arith.constant 0 : index
    %c0_96 = arith.constant 0 : index
    %164 = vector.load %arg15[%c0_95, %c0_96] : memref<768x128xbf16, #tpu.memory_space<vmem>>, vector<768x128xbf16>
    %cst_97 = arith.constant dense<0.000000e+00> : vector<17x128xf32>
    %165 = tpu.matmul %163, %164, %cst_97 {dimension_numbers = #tpu.dot_dimension_numbers<[1], [0], [0], [1], [0, 0, 1, 1], [], []>} : vector<17x768xbf16>, vector<768x128xbf16>, vector<17x128xf32> -> vector<17x128xf32>
    %166 = vector.broadcast %153 : vector<1x128xf32> to vector<17x128xf32>
    %167 = arith.addf %165, %166 : vector<17x128xf32>
    %cst_98 = arith.constant 0.000000e+00 : f32
    %168 = vector.broadcast %cst_98 : f32 to vector<17x128xf32>
    %169 = arith.cmpf oge, %167, %168 : vector<17x128xf32>
    %cst_99 = arith.constant 0.00999999977 : f32
    %170 = vector.broadcast %cst_99 : f32 to vector<17x128xf32>
    %171 = arith.mulf %170, %167 : vector<17x128xf32>
    %172 = arith.select %169, %167, %171 : vector<17x128xi1>, vector<17x128xf32>
    %c0_100 = arith.constant 0 : index
    %c0_101 = arith.constant 0 : index
    %173 = vector.load %arg18[%c0_100, %c0_101] : memref<1x128xf32, #tpu.memory_space<vmem>>, vector<1x128xf32>
    %cst_102 = arith.constant 0.000000e+00 : f32
    %174 = vector.broadcast %cst_102 : f32 to vector<4x128xf32>
    %175 = tpu.concatenate %174, %172, %174 in 0 : vector<4x128xf32>, vector<17x128xf32>, vector<4x128xf32> -> vector<25x128xf32>
    %176 = vector.extract_strided_slice %175 {offsets = [0, 0], sizes = [20, 128], strides = [1, 1]} : vector<25x128xf32> to vector<20x128xf32>
    %177 = vector.extract_strided_slice %175 {offsets = [1, 0], sizes = [20, 128], strides = [1, 1]} : vector<25x128xf32> to vector<20x128xf32>
    %178 = vector.extract_strided_slice %175 {offsets = [2, 0], sizes = [20, 128], strides = [1, 1]} : vector<25x128xf32> to vector<20x128xf32>
    %179 = vector.extract_strided_slice %175 {offsets = [3, 0], sizes = [20, 128], strides = [1, 1]} : vector<25x128xf32> to vector<20x128xf32>
    %180 = vector.extract_strided_slice %175 {offsets = [4, 0], sizes = [20, 128], strides = [1, 1]} : vector<25x128xf32> to vector<20x128xf32>
    %181 = vector.extract_strided_slice %175 {offsets = [5, 0], sizes = [20, 128], strides = [1, 1]} : vector<25x128xf32> to vector<20x128xf32>
    %182 = tpu.concatenate %176, %177, %178, %179, %180, %181 in 1 : vector<20x128xf32>, vector<20x128xf32>, vector<20x128xf32>, vector<20x128xf32>, vector<20x128xf32>, vector<20x128xf32> -> vector<20x768xf32>
    %183 = arith.truncf %182 : vector<20x768xf32> to vector<20x768xbf16>
    %c0_103 = arith.constant 0 : index
    %c0_104 = arith.constant 0 : index
    %184 = vector.load %arg17[%c0_103, %c0_104] : memref<768x128xbf16, #tpu.memory_space<vmem>>, vector<768x128xbf16>
    %cst_105 = arith.constant dense<0.000000e+00> : vector<20x128xf32>
    %185 = tpu.matmul %183, %184, %cst_105 {dimension_numbers = #tpu.dot_dimension_numbers<[1], [0], [0], [1], [0, 0, 1, 1], [], []>} : vector<20x768xbf16>, vector<768x128xbf16>, vector<20x128xf32> -> vector<20x128xf32>
    %186 = vector.broadcast %173 : vector<1x128xf32> to vector<20x128xf32>
    %187 = arith.addf %185, %186 : vector<20x128xf32>
    %cst_106 = arith.constant 0.000000e+00 : f32
    %188 = vector.broadcast %cst_106 : f32 to vector<20x128xf32>
    %189 = arith.cmpf oge, %187, %188 : vector<20x128xf32>
    %cst_107 = arith.constant 0.00999999977 : f32
    %190 = vector.broadcast %cst_107 : f32 to vector<20x128xf32>
    %191 = arith.mulf %190, %187 : vector<20x128xf32>
    %192 = arith.select %189, %187, %191 : vector<20x128xi1>, vector<20x128xf32>
    %cst_108 = arith.constant 0xFF800000 : f32
    %193 = vector.broadcast %cst_108 : f32 to vector<1x128xf32>
    %c0_109 = arith.constant 0 : index
    %c0_110 = arith.constant 0 : index
    %194 = vector.load %arg20[%c0_109, %c0_110] : memref<376x128xf32, #tpu.memory_space<vmem>>, vector<1x128xf32>
    tpu.vector_store %arg20[%c0_109, %c0_110], %193 {strides = array<i32>} : memref<376x128xf32, #tpu.memory_space<vmem>>, vector<1x128xf32>,
    %c1_111 = arith.constant 1 : index
    %c0_112 = arith.constant 0 : index
    %195 = vector.load %arg20[%c1_111, %c0_112] : memref<376x128xf32, #tpu.memory_space<vmem>>, vector<20x128xf32>
    tpu.vector_store %arg20[%c1_111, %c0_112], %192 {strides = array<i32>} : memref<376x128xf32, #tpu.memory_space<vmem>>, vector<20x128xf32>,
    %cst_113 = arith.constant 0xFF800000 : f32
    %196 = vector.broadcast %cst_113 : f32 to vector<1x128xf32>
    %c21 = arith.constant 21 : index
    %c0_114 = arith.constant 0 : index
    %197 = vector.load %arg20[%c21, %c0_114] : memref<376x128xf32, #tpu.memory_space<vmem>>, vector<1x128xf32>
    tpu.vector_store %arg20[%c21, %c0_114], %196 {strides = array<i32>} : memref<376x128xf32, #tpu.memory_space<vmem>>, vector<1x128xf32>,
    %c0_115 = arith.constant 0 : index
    %c0_116 = arith.constant 0 : index
    %198 = tpu.strided_load %arg20[%c0_115, %c0_116] {strides = array<i32: 2, 1>} : memref<376x128xf32, #tpu.memory_space<vmem>>, vector<11x128xf32>
    %c1_117 = arith.constant 1 : index
    %c0_118 = arith.constant 0 : index
    %199 = tpu.strided_load %arg20[%c1_117, %c0_118] {strides = array<i32: 2, 1>} : memref<376x128xf32, #tpu.memory_space<vmem>>, vector<11x128xf32>
    %200 = arith.maximumf %198, %199 : vector<11x128xf32>
    %c0_119 = arith.constant 0 : index
    %c0_120 = arith.constant 0 : index
    %c0_121 = arith.constant 0 : index
    %201 = vector.load %arg19[%c0_119, %c0_120, %c0_121] : memref<1x24x128xf32, #tpu.memory_space<vmem>>, vector<1x13x128xf32>
    %202 = vector.shape_cast %201 : vector<1x13x128xf32> to vector<13x128xf32>
    %203 = vector.shape_cast %107 : vector<13x128xf32> to vector<1x13x128xf32>
    tpu.vector_store %arg19[%c0_119, %c0_120, %c0_121], %203 {strides = array<i32>} : memref<1x24x128xf32, #tpu.memory_space<vmem>>, vector<1x13x128xf32>,
    %c0_122 = arith.constant 0 : index
    %c13 = arith.constant 13 : index
    %c0_123 = arith.constant 0 : index
    %204 = vector.load %arg19[%c0_122, %c13, %c0_123] : memref<1x24x128xf32, #tpu.memory_space<vmem>>, vector<1x11x128xf32>
    %205 = vector.shape_cast %204 : vector<1x11x128xf32> to vector<11x128xf32>
    %206 = vector.shape_cast %200 : vector<11x128xf32> to vector<1x11x128xf32>
    tpu.vector_store %arg19[%c0_122, %c13, %c0_123], %206 {strides = array<i32>} : memref<1x24x128xf32, #tpu.memory_space<vmem>>, vector<1x11x128xf32>,
    return
  }
  func.func @transform_0(%arg0: i32) -> (i32, i32, i32) {
    %c0_i32 = arith.constant 0 : i32
    %c0_i32_0 = arith.constant 0 : i32
    %c0_i32_1 = arith.constant 0 : i32
    return %arg0, %c0_i32, %c0_i32_0 : i32, i32, i32
  }
  func.func @transform_1(%arg0: i32) -> (i32, i32, i32) {
    %c0_i32 = arith.constant 0 : i32
    %c0_i32_0 = arith.constant 0 : i32
    %c0_i32_1 = arith.constant 0 : i32
    return %arg0, %c0_i32, %c0_i32_0 : i32, i32, i32
  }
  func.func @transform_2(%arg0: i32) -> (i32, i32) {
    %c0_i32 = arith.constant 0 : i32
    %c0_i32_0 = arith.constant 0 : i32
    %c0_i32_1 = arith.constant 0 : i32
    return %c0_i32, %c0_i32_0 : i32, i32
  }
  func.func @transform_3(%arg0: i32) -> (i32, i32) {
    %c0_i32 = arith.constant 0 : i32
    %c0_i32_0 = arith.constant 0 : i32
    %c0_i32_1 = arith.constant 0 : i32
    return %c0_i32, %c0_i32_0 : i32, i32
  }
  func.func @transform_4(%arg0: i32) -> (i32, i32) {
    %c0_i32 = arith.constant 0 : i32
    %c0_i32_0 = arith.constant 0 : i32
    %c0_i32_1 = arith.constant 0 : i32
    return %c0_i32, %c0_i32_0 : i32, i32
  }
  func.func @transform_5(%arg0: i32) -> (i32, i32) {
    %c0_i32 = arith.constant 0 : i32
    %c0_i32_0 = arith.constant 0 : i32
    %c0_i32_1 = arith.constant 0 : i32
    return %c0_i32, %c0_i32_0 : i32, i32
  }
  func.func @transform_6(%arg0: i32) -> (i32, i32) {
    %c0_i32 = arith.constant 0 : i32
    %c0_i32_0 = arith.constant 0 : i32
    %c0_i32_1 = arith.constant 0 : i32
    return %c0_i32, %c0_i32_0 : i32, i32
  }
  func.func @transform_7(%arg0: i32) -> (i32, i32) {
    %c0_i32 = arith.constant 0 : i32
    %c0_i32_0 = arith.constant 0 : i32
    %c0_i32_1 = arith.constant 0 : i32
    return %c0_i32, %c0_i32_0 : i32, i32
  }
  func.func @transform_8(%arg0: i32) -> (i32, i32) {
    %c0_i32 = arith.constant 0 : i32
    %c0_i32_0 = arith.constant 0 : i32
    %c0_i32_1 = arith.constant 0 : i32
    return %c0_i32, %c0_i32_0 : i32, i32
  }
  func.func @transform_9(%arg0: i32) -> (i32, i32) {
    %c0_i32 = arith.constant 0 : i32
    %c0_i32_0 = arith.constant 0 : i32
    %c0_i32_1 = arith.constant 0 : i32
    return %c0_i32, %c0_i32_0 : i32, i32
  }
  func.func @transform_10(%arg0: i32) -> (i32, i32) {
    %c0_i32 = arith.constant 0 : i32
    %c0_i32_0 = arith.constant 0 : i32
    %c0_i32_1 = arith.constant 0 : i32
    return %c0_i32, %c0_i32_0 : i32, i32
  }
  func.func @transform_11(%arg0: i32) -> (i32, i32) {
    %c0_i32 = arith.constant 0 : i32
    %c0_i32_0 = arith.constant 0 : i32
    %c0_i32_1 = arith.constant 0 : i32
    return %c0_i32, %c0_i32_0 : i32, i32
  }
  func.func @transform_12(%arg0: i32) -> (i32, i32) {
    %c0_i32 = arith.constant 0 : i32
    %c0_i32_0 = arith.constant 0 : i32
    %c0_i32_1 = arith.constant 0 : i32
    return %c0_i32, %c0_i32_0 : i32, i32
  }
  func.func @transform_13(%arg0: i32) -> (i32, i32) {
    %c0_i32 = arith.constant 0 : i32
    %c0_i32_0 = arith.constant 0 : i32
    %c0_i32_1 = arith.constant 0 : i32
    return %c0_i32, %c0_i32_0 : i32, i32
  }
  func.func @transform_14(%arg0: i32) -> (i32, i32) {
    %c0_i32 = arith.constant 0 : i32
    %c0_i32_0 = arith.constant 0 : i32
    %c0_i32_1 = arith.constant 0 : i32
    return %c0_i32, %c0_i32_0 : i32, i32
  }
  func.func @transform_15(%arg0: i32) -> (i32, i32) {
    %c0_i32 = arith.constant 0 : i32
    %c0_i32_0 = arith.constant 0 : i32
    %c0_i32_1 = arith.constant 0 : i32
    return %c0_i32, %c0_i32_0 : i32, i32
  }
  func.func @transform_16(%arg0: i32) -> (i32, i32) {
    %c0_i32 = arith.constant 0 : i32
    %c0_i32_0 = arith.constant 0 : i32
    %c0_i32_1 = arith.constant 0 : i32
    return %c0_i32, %c0_i32_0 : i32, i32
  }
  func.func @transform_17(%arg0: i32) -> (i32, i32) {
    %c0_i32 = arith.constant 0 : i32
    %c0_i32_0 = arith.constant 0 : i32
    %c0_i32_1 = arith.constant 0 : i32
    return %c0_i32, %c0_i32_0 : i32, i32
  }
  func.func @transform_18(%arg0: i32) -> (i32, i32, i32) {
    %c0_i32 = arith.constant 0 : i32
    %c0_i32_0 = arith.constant 0 : i32
    %c0_i32_1 = arith.constant 0 : i32
    return %arg0, %c0_i32, %c0_i32_0 : i32, i32, i32
  }
}

</mosaic_0001>

<llo_original>
// kernel: temporal_feature_eeg.1
$region0: #{temporal_feature_eeg.1}
  #allocation0 [shape = 'u32[]', space=smem, size = 0x4, offset = 0x4, fixed_abs, tag = 'smem constant byte address 0x4 - core index']
  #allocation1 [shape = 'u32[144,128]{1,0:T(1,128)}', space=vmem, size = 0x12000, scoped, tag = 'internal scratch']
  #allocation2 [shape = 'f32[376,128]{1,0:T(8,128)}', space=vmem, size = 0x2f000, scoped, tag = 'scratch operand']
  %s0 = inlined_call_operand.vmem [shape: bf16[2,374,64], index: 0, kind: input, shape index: {}]
  %s1 = inlined_call_operand.vmem [shape: bf16[2,40,512], index: 1, kind: input, shape index: {}]
  %s2 = inlined_call_operand.vmem [shape: bf16[64,64], index: 2, kind: input, shape index: {}]
  %s3 = inlined_call_operand.vmem [shape: f32[1,64], index: 3, kind: input, shape index: {}]
  %s4 = inlined_call_operand.vmem [shape: bf16[512,128], index: 4, kind: input, shape index: {}]
  %s5 = inlined_call_operand.vmem [shape: f32[1,128], index: 5, kind: input, shape index: {}]
  %s6 = inlined_call_operand.vmem [shape: bf16[1024,128], index: 6, kind: input, shape index: {}]
  %s7 = inlined_call_operand.vmem [shape: f32[1,128], index: 7, kind: input, shape index: {}]
  %s8 = inlined_call_operand.vmem [shape: bf16[1024,128], index: 8, kind: input, shape index: {}]
  %s9 = inlined_call_operand.vmem [shape: f32[1,128], index: 9, kind: input, shape index: {}]
  %s10 = inlined_call_operand.vmem [shape: bf16[512,64], index: 10, kind: input, shape index: {}]
  %s11 = inlined_call_operand.vmem [shape: f32[1,64], index: 11, kind: input, shape index: {}]
  %s12 = inlined_call_operand.vmem [shape: bf16[384,128], index: 12, kind: input, shape index: {}]
  %s13 = inlined_call_operand.vmem [shape: f32[1,128], index: 13, kind: input, shape index: {}]
  %s14 = inlined_call_operand.vmem [shape: bf16[768,128], index: 14, kind: input, shape index: {}]
  %s15 = inlined_call_operand.vmem [shape: f32[1,128], index: 15, kind: input, shape index: {}]
  %s16 = inlined_call_operand.vmem [shape: bf16[768,128], index: 16, kind: input, shape index: {}]
  %s17 = inlined_call_operand.vmem [shape: f32[1,128], index: 17, kind: input, shape index: {}]
  %s18 = inlined_call_operand.hbm [shape: f32[2,24,128], index: 18, kind: output, shape index: {}]
  %s19 = sld [smem:[#allocation0]]
  $region105: #{temporal_feature_eeg.1} parent=0
    _
  %s21 = ssub.s32 1, %s19
  %s22 = scalar_select 0, %s21, %s19
  $region1: #{temporal_feature_eeg.1} parent=0
    #allocation3 [shape = 'u8[24576]{0}', space=vmem, size = 0x6000, scoped, tag = 'output window, operand 0']
    #allocation4 [shape = 's32[2]{0}', space=sflag, size = 0x8, scoped, tag = 'scoped memory for temporal_feature_eeg.1']
    %23 = vsyncpa [#allocation4], 0
    %s24 = scalar_lea.sflag [#allocation4], 1
    %25 = vsyncpa %s24, 0
    loop: start=0, step=1, limit=4
    $region2: #{temporal_feature_eeg.1} parent=1 // loop_pre_header
      _
    $region3: #{temporal_feature_eeg.1} parent=1 // loop_header
      %s27 = sphi 0, %s31
      %p28 = scmp.ge.s32.totalorder %s27, 4
      %s37 = sphi 0, %s39
      %s40 = sphi 0, %s37
      %s41 = sphi 0, %s40
      %s57 = sphi 0, %s41
      %s63 = sphi 0, %s65
      %s66 = sphi 0, %s63
      %s67 = sphi 0, %s66
      %s83 = sphi 0, %s67
      %s87 = sphi 0, %s87
      %s89 = sphi 0, %s87
      %s90 = sphi 0, %s89
      %s104 = sphi 0, %s90
      %s108 = sphi 0, %s108
      %s110 = sphi 0, %s108
      %s111 = sphi 0, %s110
      %s125 = sphi 0, %s111
      %s129 = sphi 0, %s129
      %s131 = sphi 0, %s129
      %s132 = sphi 0, %s131
      %s146 = sphi 0, %s132
      %s150 = sphi 0, %s150
      %s152 = sphi 0, %s150
      %s153 = sphi 0, %s152
      %s167 = sphi 0, %s153
      %s171 = sphi 0, %s171
      %s173 = sphi 0, %s171
      %s174 = sphi 0, %s173
      %s188 = sphi 0, %s174
      %s192 = sphi 0, %s192
      %s194 = sphi 0, %s192
      %s195 = sphi 0, %s194
      %s209 = sphi 0, %s195
      %s213 = sphi 0, %s213
      %s215 = sphi 0, %s213
      %s216 = sphi 0, %s215
      %s230 = sphi 0, %s216
      %s234 = sphi 0, %s234
      %s236 = sphi 0, %s234
      %s237 = sphi 0, %s236
      %s251 = sphi 0, %s237
      %s255 = sphi 0, %s255
      %s257 = sphi 0, %s255
      %s258 = sphi 0, %s257
      %s272 = sphi 0, %s258
      %s276 = sphi 0, %s276
      %s278 = sphi 0, %s276
      %s279 = sphi 0, %s278
      %s293 = sphi 0, %s279
      %s297 = sphi 0, %s297
      %s299 = sphi 0, %s297
      %s300 = sphi 0, %s299
      %s314 = sphi 0, %s300
      %s318 = sphi 0, %s318
      %s320 = sphi 0, %s318
      %s321 = sphi 0, %s320
      %s335 = sphi 0, %s321
      %s339 = sphi 0, %s339
      %s341 = sphi 0, %s339
      %s342 = sphi 0, %s341
      %s356 = sphi 0, %s342
      %s360 = sphi 0, %s360
      %s362 = sphi 0, %s360
      %s363 = sphi 0, %s362
      %s377 = sphi 0, %s363
      %s381 = sphi 0, %s381
      %s383 = sphi 0, %s381
      %s384 = sphi 0, %s383
      %s398 = sphi 0, %s384
      %s402 = sphi 0, %s402
      %s404 = sphi 0, %s402
      %s405 = sphi 0, %s404
      %s419 = sphi 0, %s405
      %s425 = sphi 0, %s427
      %s428 = sphi 0, %s425
      %s429 = sphi 0, %s428
      %s445 = sphi 0, %s429
    $region4: #{temporal_feature_eeg.1} parent=1 // loop_header_branch
      %30 = sbr.rel (%p28) target = $region8
    $region5: #{temporal_feature_eeg.1} parent=1 // loop_body
      %s32 = ssub.s32 %s27, 1
      %s33 = ssub.s32 %s27, 2
      %s34 = sadd.s32 %s27, 1
      %s35 = ssub.s32 %s27, %s34
      %p36 = scmp.eq.s32.totalorder %s35, 0
      %s38 = sadd.s32 %s37, 1
      %s39 = scalar_select %p36, %s37, %s38
      %p42 = pneg %p36
      %p43 = scmp.eq.s32.totalorder %s27, 1
      %p44 = por %p42, %p43
      %p45 = scmp.ne.s32.totalorder %s37, %s40
      %p46 = scmp.eq.s32.totalorder %s27, 0
      %p47 = por %p45, %p46
      %p48 = scmp.ne.s32.totalorder %s37, %s40
      %p49 = scmp.eq.s32.totalorder %s32, 1
      %p50 = por %p48, %p49
      %p51 = scmp.ne.s32.totalorder %s40, %s41
      %p52 = scmp.eq.s32.totalorder %s32, 0
      %p53 = por %p51, %p52
      %p54 = scmp.ne.s32.totalorder %s40, %s41
      %p55 = scmp.eq.s32.totalorder %s33, 1
      %p56 = por %p54, %p55
      %p58 = scmp.ne.s32.totalorder %s41, %s57
      %p59 = scmp.eq.s32.totalorder %s33, 0
      %p60 = por %p58, %p59
      %s61 = ssub.s32 %s27, %s34
      %p62 = scmp.eq.s32.totalorder %s61, 0
      %s64 = sadd.s32 %s63, 1
      %s65 = scalar_select %p62, %s63, %s64
      %p68 = pneg %p62
      %p69 = scmp.eq.s32.totalorder %s27, 1
      %p70 = por %p68, %p69
      %p71 = scmp.ne.s32.totalorder %s63, %s66
      %p72 = scmp.eq.s32.totalorder %s27, 0
      %p73 = por %p71, %p72
      %p74 = scmp.ne.s32.totalorder %s63, %s66
      %p75 = scmp.eq.s32.totalorder %s32, 1
      %p76 = por %p74, %p75
      %p77 = scmp.ne.s32.totalorder %s66, %s67
      %p78 = scmp.eq.s32.totalorder %s32, 0
      %p79 = por %p77, %p78
      %p80 = scmp.ne.s32.totalorder %s66, %s67
      %p81 = scmp.eq.s32.totalorder %s33, 1
      %p82 = por %p80, %p81
      %p84 = scmp.ne.s32.totalorder %s67, %s83
      %p85 = scmp.eq.s32.totalorder %s33, 0
      %p86 = por %p84, %p85
      %s88 = sadd.s32 %s87, 1
      %p91 = scmp.eq.s32.totalorder %s27, 1
      %p92 = scmp.ne.s32.totalorder %s87, %s89
      %p93 = scmp.eq.s32.totalorder %s27, 0
      %p94 = por %p92, %p93
      %p95 = scmp.ne.s32.totalorder %s87, %s89
      %p96 = scmp.eq.s32.totalorder %s32, 1
      %p97 = por %p95, %p96
      %p98 = scmp.ne.s32.totalorder %s89, %s90
      %p99 = scmp.eq.s32.totalorder %s32, 0
      %p100 = por %p98, %p99
      %p101 = scmp.ne.s32.totalorder %s89, %s90
      %p102 = scmp.eq.s32.totalorder %s33, 1
      %p103 = por %p101, %p102
      %p105 = scmp.ne.s32.totalorder %s90, %s104
      %p106 = scmp.eq.s32.totalorder %s33, 0
      %p107 = por %p105, %p106
      %s109 = sadd.s32 %s108, 1
      %p112 = scmp.eq.s32.totalorder %s27, 1
      %p113 = scmp.ne.s32.totalorder %s108, %s110
      %p114 = scmp.eq.s32.totalorder %s27, 0
      %p115 = por %p113, %p114
      %p116 = scmp.ne.s32.totalorder %s108, %s110
      %p117 = scmp.eq.s32.totalorder %s32, 1
      %p118 = por %p116, %p117
      %p119 = scmp.ne.s32.totalorder %s110, %s111
      %p120 = scmp.eq.s32.totalorder %s32, 0
      %p121 = por %p119, %p120
      %p122 = scmp.ne.s32.totalorder %s110, %s111
      %p123 = scmp.eq.s32.totalorder %s33, 1
      %p124 = por %p122, %p123
      %p126 = scmp.ne.s32.totalorder %s111, %s125
      %p127 = scmp.eq.s32.totalorder %s33, 0
      %p128 = por %p126, %p127
      %s130 = sadd.s32 %s129, 1
      %p133 = scmp.eq.s32.totalorder %s27, 1
      %p134 = scmp.ne.s32.totalorder %s129, %s131
      %p135 = scmp.eq.s32.totalorder %s27, 0
      %p136 = por %p134, %p135
      %p137 = scmp.ne.s32.totalorder %s129, %s131
      %p138 = scmp.eq.s32.totalorder %s32, 1
      %p139 = por %p137, %p138
      %p140 = scmp.ne.s32.totalorder %s131, %s132
      %p141 = scmp.eq.s32.totalorder %s32, 0
      %p142 = por %p140, %p141
      %p143 = scmp.ne.s32.totalorder %s131, %s132
      %p144 = scmp.eq.s32.totalorder %s33, 1
      %p145 = por %p143, %p144
      %p147 = scmp.ne.s32.totalorder %s132, %s146
      %p148 = scmp.eq.s32.totalorder %s33, 0
      %p149 = por %p147, %p148
      %s151 = sadd.s32 %s150, 1
      %p154 = scmp.eq.s32.totalorder %s27, 1
      %p155 = scmp.ne.s32.totalorder %s150, %s152
      %p156 = scmp.eq.s32.totalorder %s27, 0
      %p157 = por %p155, %p156
      %p158 = scmp.ne.s32.totalorder %s150, %s152
      %p159 = scmp.eq.s32.totalorder %s32, 1
      %p160 = por %p158, %p159
      %p161 = scmp.ne.s32.totalorder %s152, %s153
      %p162 = scmp.eq.s32.totalorder %s32, 0
      %p163 = por %p161, %p162
      %p164 = scmp.ne.s32.totalorder %s152, %s153
      %p165 = scmp.eq.s32.totalorder %s33, 1
      %p166 = por %p164, %p165
      %p168 = scmp.ne.s32.totalorder %s153, %s167
      %p169 = scmp.eq.s32.totalorder %s33, 0
      %p170 = por %p168, %p169
      %s172 = sadd.s32 %s171, 1
      %p175 = scmp.eq.s32.totalorder %s27, 1
      %p176 = scmp.ne.s32.totalorder %s171, %s173
      %p177 = scmp.eq.s32.totalorder %s27, 0
      %p178 = por %p176, %p177
      %p179 = scmp.ne.s32.totalorder %s171, %s173
      %p180 = scmp.eq.s32.totalorder %s32, 1
      %p181 = por %p179, %p180
      %p182 = scmp.ne.s32.totalorder %s173, %s174
      %p183 = scmp.eq.s32.totalorder %s32, 0
      %p184 = por %p182, %p183
      %p185 = scmp.ne.s32.totalorder %s173, %s174
      %p186 = scmp.eq.s32.totalorder %s33, 1
      %p187 = por %p185, %p186
      %p189 = scmp.ne.s32.totalorder %s174, %s188
      %p190 = scmp.eq.s32.totalorder %s33, 0
      %p191 = por %p189, %p190
      %s193 = sadd.s32 %s192, 1
      %p196 = scmp.eq.s32.totalorder %s27, 1
      %p197 = scmp.ne.s32.totalorder %s192, %s194
      %p198 = scmp.eq.s32.totalorder %s27, 0
      %p199 = por %p197, %p198
      %p200 = scmp.ne.s32.totalorder %s192, %s194
      %p201 = scmp.eq.s32.totalorder %s32, 1
      %p202 = por %p200, %p201
      %p203 = scmp.ne.s32.totalorder %s194, %s195
      %p204 = scmp.eq.s32.totalorder %s32, 0
      %p205 = por %p203, %p204
      %p206 = scmp.ne.s32.totalorder %s194, %s195
      %p207 = scmp.eq.s32.totalorder %s33, 1
      %p208 = por %p206, %p207
      %p210 = scmp.ne.s32.totalorder %s195, %s209
      %p211 = scmp.eq.s32.totalorder %s33, 0
      %p212 = por %p210, %p211
      %s214 = sadd.s32 %s213, 1
      %p217 = scmp.eq.s32.totalorder %s27, 1
      %p218 = scmp.ne.s32.totalorder %s213, %s215
      %p219 = scmp.eq.s32.totalorder %s27, 0
      %p220 = por %p218, %p219
      %p221 = scmp.ne.s32.totalorder %s213, %s215
      %p222 = scmp.eq.s32.totalorder %s32, 1
      %p223 = por %p221, %p222
      %p224 = scmp.ne.s32.totalorder %s215, %s216
      %p225 = scmp.eq.s32.totalorder %s32, 0
      %p226 = por %p224, %p225
      %p227 = scmp.ne.s32.totalorder %s215, %s216
      %p228 = scmp.eq.s32.totalorder %s33, 1
      %p229 = por %p227, %p228
      %p231 = scmp.ne.s32.totalorder %s216, %s230
      %p232 = scmp.eq.s32.totalorder %s33, 0
      %p233 = por %p231, %p232
      %s235 = sadd.s32 %s234, 1
      %p238 = scmp.eq.s32.totalorder %s27, 1
      %p239 = scmp.ne.s32.totalorder %s234, %s236
      %p240 = scmp.eq.s32.totalorder %s27, 0
      %p241 = por %p239, %p240
      %p242 = scmp.ne.s32.totalorder %s234, %s236
      %p243 = scmp.eq.s32.totalorder %s32, 1
      %p244 = por %p242, %p243
      %p245 = scmp.ne.s32.totalorder %s236, %s237
      %p246 = scmp.eq.s32.totalorder %s32, 0
      %p247 = por %p245, %p246
      %p248 = scmp.ne.s32.totalorder %s236, %s237
      %p249 = scmp.eq.s32.totalorder %s33, 1
      %p250 = por %p248, %p249
      %p252 = scmp.ne.s32.totalorder %s237, %s251
      %p253 = scmp.eq.s32.totalorder %s33, 0
      %p254 = por %p252, %p253
      %s256 = sadd.s32 %s255, 1
      %p259 = scmp.eq.s32.totalorder %s27, 1
      %p260 = scmp.ne.s32.totalorder %s255, %s257
      %p261 = scmp.eq.s32.totalorder %s27, 0
      %p262 = por %p260, %p261
      %p263 = scmp.ne.s32.totalorder %s255, %s257
      %p264 = scmp.eq.s32.totalorder %s32, 1
      %p265 = por %p263, %p264
      %p266 = scmp.ne.s32.totalorder %s257, %s258
      %p267 = scmp.eq.s32.totalorder %s32, 0
      %p268 = por %p266, %p267
      %p269 = scmp.ne.s32.totalorder %s257, %s258
      %p270 = scmp.eq.s32.totalorder %s33, 1
      %p271 = por %p269, %p270
      %p273 = scmp.ne.s32.totalorder %s258, %s272
      %p274 = scmp.eq.s32.totalorder %s33, 0
      %p275 = por %p273, %p274
      %s277 = sadd.s32 %s276, 1
      %p280 = scmp.eq.s32.totalorder %s27, 1
      %p281 = scmp.ne.s32.totalorder %s276, %s278
      %p282 = scmp.eq.s32.totalorder %s27, 0
      %p283 = por %p281, %p282
      %p284 = scmp.ne.s32.totalorder %s276, %s278
      %p285 = scmp.eq.s32.totalorder %s32, 1
      %p286 = por %p284, %p285
      %p287 = scmp.ne.s32.totalorder %s278, %s279
      %p288 = scmp.eq.s32.totalorder %s32, 0
      %p289 = por %p287, %p288
      %p290 = scmp.ne.s32.totalorder %s278, %s279
      %p291 = scmp.eq.s32.totalorder %s33, 1
      %p292 = por %p290, %p291
      %p294 = scmp.ne.s32.totalorder %s279, %s293
      %p295 = scmp.eq.s32.totalorder %s33, 0
      %p296 = por %p294, %p295
      %s298 = sadd.s32 %s297, 1
      %p301 = scmp.eq.s32.totalorder %s27, 1
      %p302 = scmp.ne.s32.totalorder %s297, %s299
      %p303 = scmp.eq.s32.totalorder %s27, 0
      %p304 = por %p302, %p303
      %p305 = scmp.ne.s32.totalorder %s297, %s299
      %p306 = scmp.eq.s32.totalorder %s32, 1
      %p307 = por %p305, %p306
      %p308 = scmp.ne.s32.totalorder %s299, %s300
      %p309 = scmp.eq.s32.totalorder %s32, 0
      %p310 = por %p308, %p309
      %p311 = scmp.ne.s32.totalorder %s299, %s300
      %p312 = scmp.eq.s32.totalorder %s33, 1
      %p313 = por %p311, %p312
      %p315 = scmp.ne.s32.totalorder %s300, %s314
      %p316 = scmp.eq.s32.totalorder %s33, 0
      %p317 = por %p315, %p316
      %s319 = sadd.s32 %s318, 1
      %p322 = scmp.eq.s32.totalorder %s27, 1
      %p323 = scmp.ne.s32.totalorder %s318, %s320
      %p324 = scmp.eq.s32.totalorder %s27, 0
      %p325 = por %p323, %p324
      %p326 = scmp.ne.s32.totalorder %s318, %s320
      %p327 = scmp.eq.s32.totalorder %s32, 1
      %p328 = por %p326, %p327
      %p329 = scmp.ne.s32.totalorder %s320, %s321
      %p330 = scmp.eq.s32.totalorder %s32, 0
      %p331 = por %p329, %p330
      %p332 = scmp.ne.s32.totalorder %s320, %s321
      %p333 = scmp.eq.s32.totalorder %s33, 1
      %p334 = por %p332, %p333
      %p336 = scmp.ne.s32.totalorder %s321, %s335
      %p337 = scmp.eq.s32.totalorder %s33, 0
      %p338 = por %p336, %p337
      %s340 = sadd.s32 %s339, 1
      %p343 = scmp.eq.s32.totalorder %s27, 1
      %p344 = scmp.ne.s32.totalorder %s339, %s341
      %p345 = scmp.eq.s32.totalorder %s27, 0
      %p346 = por %p344, %p345
      %p347 = scmp.ne.s32.totalorder %s339, %s341
      %p348 = scmp.eq.s32.totalorder %s32, 1
      %p349 = por %p347, %p348
      %p350 = scmp.ne.s32.totalorder %s341, %s342
      %p351 = scmp.eq.s32.totalorder %s32, 0
      %p352 = por %p350, %p351
      %p353 = scmp.ne.s32.totalorder %s341, %s342
      %p354 = scmp.eq.s32.totalorder %s33, 1
      %p355 = por %p353, %p354
      %p357 = scmp.ne.s32.totalorder %s342, %s356
      %p358 = scmp.eq.s32.totalorder %s33, 0
      %p359 = por %p357, %p358
      %s361 = sadd.s32 %s360, 1
      %p364 = scmp.eq.s32.totalorder %s27, 1
      %p365 = scmp.ne.s32.totalorder %s360, %s362
      %p366 = scmp.eq.s32.totalorder %s27, 0
      %p367 = por %p365, %p366
      %p368 = scmp.ne.s32.totalorder %s360, %s362
      %p369 = scmp.eq.s32.totalorder %s32, 1
      %p370 = por %p368, %p369
      %p371 = scmp.ne.s32.totalorder %s362, %s363
      %p372 = scmp.eq.s32.totalorder %s32, 0
      %p373 = por %p371, %p372
      %p374 = scmp.ne.s32.totalorder %s362, %s363
      %p375 = scmp.eq.s32.totalorder %s33, 1
      %p376 = por %p374, %p375
      %p378 = scmp.ne.s32.totalorder %s363, %s377
      %p379 = scmp.eq.s32.totalorder %s33, 0
      %p380 = por %p378, %p379
      %s382 = sadd.s32 %s381, 1
      %p385 = scmp.eq.s32.totalorder %s27, 1
      %p386 = scmp.ne.s32.totalorder %s381, %s383
      %p387 = scmp.eq.s32.totalorder %s27, 0
      %p388 = por %p386, %p387
      %p389 = scmp.ne.s32.totalorder %s381, %s383
      %p390 = scmp.eq.s32.totalorder %s32, 1
      %p391 = por %p389, %p390
      %p392 = scmp.ne.s32.totalorder %s383, %s384
      %p393 = scmp.eq.s32.totalorder %s32, 0
      %p394 = por %p392, %p393
      %p395 = scmp.ne.s32.totalorder %s383, %s384
      %p396 = scmp.eq.s32.totalorder %s33, 1
      %p397 = por %p395, %p396
      %p399 = scmp.ne.s32.totalorder %s384, %s398
      %p400 = scmp.eq.s32.totalorder %s33, 0
      %p401 = por %p399, %p400
      %s403 = sadd.s32 %s402, 1
      %p406 = scmp.eq.s32.totalorder %s27, 1
      %p407 = scmp.ne.s32.totalorder %s402, %s404
      %p408 = scmp.eq.s32.totalorder %s27, 0
      %p409 = por %p407, %p408
      %p410 = scmp.ne.s32.totalorder %s402, %s404
      %p411 = scmp.eq.s32.totalorder %s32, 1
      %p412 = por %p410, %p411
      %p413 = scmp.ne.s32.totalorder %s404, %s405
      %p414 = scmp.eq.s32.totalorder %s32, 0
      %p415 = por %p413, %p414
      %p416 = scmp.ne.s32.totalorder %s404, %s405
      %p417 = scmp.eq.s32.totalorder %s33, 1
      %p418 = por %p416, %p417
      %p420 = scmp.ne.s32.totalorder %s405, %s419
      %p421 = scmp.eq.s32.totalorder %s33, 0
      %p422 = por %p420, %p421
      %s423 = ssub.s32 %s27, %s34
      %p424 = scmp.eq.s32.totalorder %s423, 0
      %s426 = sadd.s32 %s425, 1
      %s427 = scalar_select %p424, %s425, %s426
      %p430 = pneg %p424
      %p431 = scmp.eq.s32.totalorder %s27, 1
      %p432 = por %p430, %p431
      %p433 = scmp.ne.s32.totalorder %s425, %s428
      %p434 = scmp.eq.s32.totalorder %s27, 0
      %p435 = por %p433, %p434
      %p436 = scmp.ne.s32.totalorder %s425, %s428
      %p437 = scmp.eq.s32.totalorder %s32, 1
      %p438 = por %p436, %p437
      %p439 = scmp.ne.s32.totalorder %s428, %s429
      %p440 = scmp.eq.s32.totalorder %s32, 0
      %p441 = por %p439, %p440
      %p442 = scmp.ne.s32.totalorder %s428, %s429
      %p443 = scmp.eq.s32.totalorder %s33, 1
      %p444 = por %p442, %p443
      %p446 = scmp.ne.s32.totalorder %s429, %s445
      %p447 = scmp.eq.s32.totalorder %s33, 0
      %p448 = por %p446, %p447
      %p449 = scmp.le.s32.totalorder 1, %s27
      %p450 = scmp.lt.s32.totalorder %s27, 3
      %p451 = pnand %p449, %p450
      %p452 = pneg %p451
      // Predicated region
      $region9: #{temporal_feature_eeg.1} parent=5 // pred_check
        _
      $region10: #{temporal_feature_eeg.1} parent=5 // pred_check_branch
        %454 = sbr.rel (%p451) target = $region12
      $region11: #{temporal_feature_eeg.1} parent=5 // pred_region
        %s455 = ssub.s32 %s27, 1
        // Predicated region
        $region13: #{temporal_feature_eeg.1} parent=11 // pred_check
          %p456 = pneg %p100
        $region14: #{temporal_feature_eeg.1} parent=11 // pred_check_branch
          %458 = sbr.rel (%p456) target = $region16
        $region15: #{temporal_feature_eeg.1} parent=11 // pred_region
          _
        $region16: #{temporal_feature_eeg.1} parent=11 // pred_fallthru
          _
        // Predicated region
        $region17: #{temporal_feature_eeg.1} parent=11 // pred_check
          %p459 = pneg %p121
        $region18: #{temporal_feature_eeg.1} parent=11 // pred_check_branch
          %461 = sbr.rel (%p459) target = $region20
        $region19: #{temporal_feature_eeg.1} parent=11 // pred_region
          _
        $region20: #{temporal_feature_eeg.1} parent=11 // pred_fallthru
          _
        // Predicated region
        $region21: #{temporal_feature_eeg.1} parent=11 // pred_check
          %p462 = pneg %p142
        $region22: #{temporal_feature_eeg.1} parent=11 // pred_check_branch
          %464 = sbr.rel (%p462) target = $region24
        $region23: #{temporal_feature_eeg.1} parent=11 // pred_region
          _
        $region24: #{temporal_feature_eeg.1} parent=11 // pred_fallthru
          _
        // Predicated region
        $region25: #{temporal_feature_eeg.1} parent=11 // pred_check
          %p465 = pneg %p163
        $region26: #{temporal_feature_eeg.1} parent=11 // pred_check_branch
          %467 = sbr.rel (%p465) target = $region28
        $region27: #{temporal_feature_eeg.1} parent=11 // pred_region
          _
        $region28: #{temporal_feature_eeg.1} parent=11 // pred_fallthru
          _
        // Predicated region
        $region29: #{temporal_feature_eeg.1} parent=11 // pred_check
          %p468 = pneg %p184
        $region30: #{temporal_feature_eeg.1} parent=11 // pred_check_branch
          %470 = sbr.rel (%p468) target = $region32
        $region31: #{temporal_feature_eeg.1} parent=11 // pred_region
          _
        $region32: #{temporal_feature_eeg.1} parent=11 // pred_fallthru
          _
        // Predicated region
        $region33: #{temporal_feature_eeg.1} parent=11 // pred_check
          %p471 = pneg %p205
        $region34: #{temporal_feature_eeg.1} parent=11 // pred_check_branch
          %473 = sbr.rel (%p471) target = $region36
        $region35: #{temporal_feature_eeg.1} parent=11 // pred_region
          _
        $region36: #{temporal_feature_eeg.1} parent=11 // pred_fallthru
          _
        // Predicated region
        $region37: #{temporal_feature_eeg.1} parent=11 // pred_check
          %p474 = pneg %p226
        $region38: #{temporal_feature_eeg.1} parent=11 // pred_check_branch
          %476 = sbr.rel (%p474) target = $region40
        $region39: #{temporal_feature_eeg.1} parent=11 // pred_region
          _
        $region40: #{temporal_feature_eeg.1} parent=11 // pred_fallthru
          _
        // Predicated region
        $region41: #{temporal_feature_eeg.1} parent=11 // pred_check
          %p477 = pneg %p247
        $region42: #{temporal_feature_eeg.1} parent=11 // pred_check_branch
          %479 = sbr.rel (%p477) target = $region44
        $region43: #{temporal_feature_eeg.1} parent=11 // pred_region
          _
        $region44: #{temporal_feature_eeg.1} parent=11 // pred_fallthru
          _
        // Predicated region
        $region45: #{temporal_feature_eeg.1} parent=11 // pred_check
          %p480 = pneg %p268
        $region46: #{temporal_feature_eeg.1} parent=11 // pred_check_branch
          %482 = sbr.rel (%p480) target = $region48
        $region47: #{temporal_feature_eeg.1} parent=11 // pred_region
          _
        $region48: #{temporal_feature_eeg.1} parent=11 // pred_fallthru
          _
        // Predicated region
        $region49: #{temporal_feature_eeg.1} parent=11 // pred_check
          %p483 = pneg %p289
        $region50: #{temporal_feature_eeg.1} parent=11 // pred_check_branch
          %485 = sbr.rel (%p483) target = $region52
        $region51: #{temporal_feature_eeg.1} parent=11 // pred_region
          _
        $region52: #{temporal_feature_eeg.1} parent=11 // pred_fallthru
          _
        // Predicated region
        $region53: #{temporal_feature_eeg.1} parent=11 // pred_check
          %p486 = pneg %p310
        $region54: #{temporal_feature_eeg.1} parent=11 // pred_check_branch
          %488 = sbr.rel (%p486) target = $region56
        $region55: #{temporal_feature_eeg.1} parent=11 // pred_region
          _
        $region56: #{temporal_feature_eeg.1} parent=11 // pred_fallthru
          _
        // Predicated region
        $region57: #{temporal_feature_eeg.1} parent=11 // pred_check
          %p489 = pneg %p331
        $region58: #{temporal_feature_eeg.1} parent=11 // pred_check_branch
          %491 = sbr.rel (%p489) target = $region60
        $region59: #{temporal_feature_eeg.1} parent=11 // pred_region
          _
        $region60: #{temporal_feature_eeg.1} parent=11 // pred_fallthru
          _
        // Predicated region
        $region61: #{temporal_feature_eeg.1} parent=11 // pred_check
          %p492 = pneg %p352
        $region62: #{temporal_feature_eeg.1} parent=11 // pred_check_branch
          %494 = sbr.rel (%p492) target = $region64
        $region63: #{temporal_feature_eeg.1} parent=11 // pred_region
          _
        $region64: #{temporal_feature_eeg.1} parent=11 // pred_fallthru
          _
        // Predicated region
        $region65: #{temporal_feature_eeg.1} parent=11 // pred_check
          %p495 = pneg %p373
        $region66: #{temporal_feature_eeg.1} parent=11 // pred_check_branch
          %497 = sbr.rel (%p495) target = $region68
        $region67: #{temporal_feature_eeg.1} parent=11 // pred_region
          _
        $region68: #{temporal_feature_eeg.1} parent=11 // pred_fallthru
          _
        // Predicated region
        $region69: #{temporal_feature_eeg.1} parent=11 // pred_check
          %p498 = pneg %p394
        $region70: #{temporal_feature_eeg.1} parent=11 // pred_check_branch
          %500 = sbr.rel (%p498) target = $region72
        $region71: #{temporal_feature_eeg.1} parent=11 // pred_region
          _
        $region72: #{temporal_feature_eeg.1} parent=11 // pred_fallthru
          _
        // Predicated region
        $region73: #{temporal_feature_eeg.1} parent=11 // pred_check
          %p501 = pneg %p415
        $region74: #{temporal_feature_eeg.1} parent=11 // pred_check_branch
          %503 = sbr.rel (%p501) target = $region76
        $region75: #{temporal_feature_eeg.1} parent=11 // pred_region
          _
        $region76: #{temporal_feature_eeg.1} parent=11 // pred_fallthru
          _
      $region12: #{temporal_feature_eeg.1} parent=5 // pred_fallthru
        _
      %p504 = scmp.lt.s32.totalorder %s27, 2
      // Predicated region
      $region77: #{temporal_feature_eeg.1} parent=5 // pred_check
        %p505 = pneg %p504
      $region78: #{temporal_feature_eeg.1} parent=5 // pred_check_branch
        %507 = sbr.rel (%p505) target = $region80
      $region79: #{temporal_feature_eeg.1} parent=5 // pred_region
        // Predicated region
        $region81: #{temporal_feature_eeg.1} parent=79 // pred_check
          %p508 = pneg %p47
        $region82: #{temporal_feature_eeg.1} parent=79 // pred_check_branch
          %510 = sbr.rel (%p508) target = $region84
        $region83: #{temporal_feature_eeg.1} parent=79 // pred_region
          %p511 = scmp.lt.s32.totalorder %s27, 1
          %s512 = scalar_select %p511, %s27, 1
          %s513 = smul.addr %s512, 47
          %s514 = smul.addr %s513, 4
          %s515 = scalar_lea.vmem %s0, %s514
        $region84: #{temporal_feature_eeg.1} parent=79 // pred_fallthru
          _
        // Predicated region
        $region85: #{temporal_feature_eeg.1} parent=79 // pred_check
          %p516 = pneg %p73
        $region86: #{temporal_feature_eeg.1} parent=79 // pred_check_branch
          %518 = sbr.rel (%p516) target = $region88
        $region87: #{temporal_feature_eeg.1} parent=79 // pred_region
          %p519 = scmp.lt.s32.totalorder %s27, 1
          %s520 = scalar_select %p519, %s27, 1
          %s521 = smul.addr %s520, 20
          %s522 = smul.addr %s521, 4
          %s523 = scalar_lea.vmem %s1, %s522
        $region88: #{temporal_feature_eeg.1} parent=79 // pred_fallthru
          _
      $region80: #{temporal_feature_eeg.1} parent=5 // pred_fallthru
        _
      %p524 = scmp.le.s32.totalorder 1, %s27
      %p525 = scmp.lt.s32.totalorder %s27, 3
      %p526 = pnand %p524, %p525
      %p527 = pneg %p526
      // Predicated region
      $region89: #{temporal_feature_eeg.1} parent=5 // pred_check
        _
      $region90: #{temporal_feature_eeg.1} parent=5 // pred_check_branch
        %529 = sbr.rel (%p526) target = $region92
      $region91: #{temporal_feature_eeg.1} parent=5 // pred_region
        %s530 = ssub.s32 %s27, 1
        %p531 = scmp.lt.s32.totalorder %s32, 1
        %s532 = scalar_select %p531, %s32, 1
        %s533 = smul.addr %s532, 47
        %s534 = smul.addr %s533, 4
        %s535 = scalar_lea.vmem %s0, %s534
        %p536 = pneg %p53
        %p537 = pneg %p50
        %p538 = scmp.lt.s32.totalorder %s32, 1
        %s539 = scalar_select %p538, %s32, 1
        %s540 = smul.addr %s539, 20
        %s541 = smul.addr %s540, 4
        %s542 = scalar_lea.vmem %s1, %s541
        %p543 = pneg %p79
        %p544 = pneg %p76
        %p545 = pneg %p100
        %p546 = pneg %p97
        %p547 = pneg %p121
        %p548 = pneg %p118
        %p549 = pneg %p142
        %p550 = pneg %p139
        %p551 = pneg %p163
        %p552 = pneg %p160
        %p553 = pneg %p184
        %p554 = pneg %p181
        %p555 = pneg %p205
        %p556 = pneg %p202
        %p557 = pneg %p226
        %p558 = pneg %p223
        %p559 = pneg %p247
        %p560 = pneg %p244
        %p561 = pneg %p268
        %p562 = pneg %p265
        %p563 = pneg %p289
        %p564 = pneg %p286
        %p565 = pneg %p310
        %p566 = pneg %p307
        %p567 = pneg %p331
        %p568 = pneg %p328
        %p569 = pneg %p352
        %p570 = pneg %p349
        %p571 = pneg %p373
        %p572 = pneg %p370
        %p573 = pneg %p394
        %p574 = pneg %p391
        %p575 = pneg %p415
        %p576 = pneg %p412
        %p577 = pneg %p441
        %p578 = pneg %p438
        %s579 = sand.u32 %s428, 1
        %s580 = scalar_lea.sflag [#allocation4], %s579
        %s581 = sand.u32 %s428, 1
        %s582 = smul.addr %s581, 24
        %s583 = scalar_lea.vmem [#allocation3], %s582
        %p584 = scmp.lt.s32.totalorder %s32, 1
        %s585 = scalar_select %p584, %s32, 1
        %s586 = smul.addr %s585, 47
        %s587 = smul.addr %s586, 4
        %s588 = scalar_lea.vmem %s0, %s587
        %p589 = scmp.lt.s32.totalorder %s32, 1
        %s590 = scalar_select %p589, %s32, 1
        %s591 = smul.addr %s590, 20
        %s592 = smul.addr %s591, 4
        %s593 = scalar_lea.vmem %s1, %s592
        %v595 = vld [vmem:[%s588] sm:$0xf]
        %v596 = vld [vmem:[%s588 + $0x4] sm:$0xf]
        %v597 = vld [vmem:[%s588 + $0x8] sm:$0xf]
        %v598 = vld [vmem:[%s588 + $0xc] sm:$0xf]
        %v599 = vld [vmem:[%s588 + $0x10] sm:$0xf]
        %v600 = vld [vmem:[%s588 + $0x14] sm:$0xf]
        %v601 = vld [vmem:[%s588 + $0x18] sm:$0xf]
        %v602 = vld [vmem:[%s588 + $0x1c] sm:$0xf]
        %v603 = vld [vmem:[%s588 + $0x20] sm:$0xf]
        %v604 = vld [vmem:[%s588 + $0x24] sm:$0xf]
        %v605 = vld [vmem:[%s588 + $0x28] sm:$0xf]
        %v606 = vld [vmem:[%s588 + $0x2c] sm:$0xf]
        %v607 = vld [vmem:[%s588 + $0x30] sm:$0xf]
        %v608 = vld [vmem:[%s588 + $0x34] sm:$0xf]
        %v609 = vld [vmem:[%s588 + $0x38] sm:$0xf]
        %v610 = vld [vmem:[%s588 + $0x3c] sm:$0xf]
        %v611 = vld [vmem:[%s588 + $0x40] sm:$0xf]
        %v612 = vld [vmem:[%s588 + $0x44] sm:$0xf]
        %v613 = vld [vmem:[%s588 + $0x48] sm:$0xf]
        %v614 = vld [vmem:[%s588 + $0x4c] sm:$0xf]
        %v615 = vld [vmem:[%s588 + $0x50] sm:$0xf]
        %v616 = vld [vmem:[%s588 + $0x54] sm:$0xf]
        %v617 = vld [vmem:[%s588 + $0x58] sm:$0xf]
        %v618 = vld [vmem:[%s588 + $0x5c] sm:$0xf]
        %v619 = vld [vmem:[%s588 + $0x60] sm:$0xf]
        %v620 = vld [vmem:[%s588 + $0x64] sm:$0xf]
        %v621 = vld [vmem:[%s588 + $0x68] sm:$0xf]
        %v622 = vld [vmem:[%s588 + $0x6c] sm:$0xf]
        %v623 = vld [vmem:[%s588 + $0x70] sm:$0xf]
        %v624 = vld [vmem:[%s588 + $0x74] sm:$0xf]
        %v625 = vld [vmem:[%s588 + $0x78] sm:$0xf]
        %v626 = vld [vmem:[%s588 + $0x7c] sm:$0xf]
        %v627 = vld [vmem:[%s588 + $0x80] sm:$0xf]
        %v628 = vld [vmem:[%s588 + $0x84] sm:$0xf]
        %v629 = vld [vmem:[%s588 + $0x88] sm:$0xf]
        %v630 = vld [vmem:[%s588 + $0x8c] sm:$0xf]
        %v631 = vld [vmem:[%s588 + $0x90] sm:$0xf]
        %v632 = vld [vmem:[%s588 + $0x94] sm:$0xf]
        %v633 = vld [vmem:[%s588 + $0x98] sm:$0xf]
        %v634 = vld [vmem:[%s588 + $0x9c] sm:$0xf]
        %v635 = vld [vmem:[%s588 + $0xa0] sm:$0xf]
        %v636 = vld [vmem:[%s588 + $0xa4] sm:$0xf]
        %v637 = vld [vmem:[%s588 + $0xa8] sm:$0xf]
        %v638 = vld [vmem:[%s588 + $0xac] sm:$0xf]
        %v639 = vld [vmem:[%s588 + $0xb0] sm:$0xf]
        %v640 = vld [vmem:[%s588 + $0xb4] sm:$0xf]
        %v641 = vld [vmem:[%s588 + $0xb8] sm:$0x7]
        %v642 = vld [vmem:[%s2] sm:$0xf]
        %v643 = vld [vmem:[%s2 + $0x4] sm:$0xf]
        %v644 = vld [vmem:[%s2 + $0x8] sm:$0xf]
        %v645 = vld [vmem:[%s2 + $0xc] sm:$0xf]
        %v646 = vld [vmem:[%s2 + $0x10] sm:$0xf]
        %v647 = vld [vmem:[%s2 + $0x14] sm:$0xf]
        %v648 = vld [vmem:[%s2 + $0x18] sm:$0xf]
        %v649 = vld [vmem:[%s2 + $0x1c] sm:$0xf]
        %v650 = vld [vmem:[%s3] sm:$0x1]
        %v652 = vlaneseq
        %v653 = vshrl.u32 %v652, 7
        %v654 = vsub.s32 0, %v653
        %v655 = vrot.slane %v650, %v654
        %v704 = vunpack.c.l.b16 %v595
        %v705 = vunpack.c.l.b16 %v596
        %v706 = vunpack.c.l.b16 %v597
        %v707 = vunpack.c.l.b16 %v598
        %v708 = vunpack.c.l.b16 %v599
        %v709 = vunpack.c.l.b16 %v600
        %v710 = vunpack.c.l.b16 %v601
        %v711 = vunpack.c.l.b16 %v602
        %v712 = vunpack.c.l.b16 %v603
        %v713 = vunpack.c.l.b16 %v604
        %v714 = vunpack.c.l.b16 %v605
        %v715 = vunpack.c.l.b16 %v606
        %v716 = vunpack.c.l.b16 %v607
        %v717 = vunpack.c.l.b16 %v608
        %v718 = vunpack.c.l.b16 %v609
        %v719 = vunpack.c.l.b16 %v610
        %v720 = vunpack.c.l.b16 %v611
        %v721 = vunpack.c.l.b16 %v612
        %v722 = vunpack.c.l.b16 %v613
        %v723 = vunpack.c.l.b16 %v614
        %v724 = vunpack.c.l.b16 %v615
        %v725 = vunpack.c.l.b16 %v616
        %v726 = vunpack.c.l.b16 %v617
        %v727 = vunpack.c.l.b16 %v618
        %v728 = vunpack.c.l.b16 %v619
        %v729 = vunpack.c.l.b16 %v620
        %v730 = vunpack.c.l.b16 %v621
        %v731 = vunpack.c.l.b16 %v622
        %v732 = vunpack.c.l.b16 %v623
        %v733 = vunpack.c.l.b16 %v624
        %v734 = vunpack.c.l.b16 %v625
        %v735 = vunpack.c.l.b16 %v626
        %v736 = vunpack.c.l.b16 %v627
        %v737 = vunpack.c.l.b16 %v628
        %v738 = vunpack.c.l.b16 %v629
        %v739 = vunpack.c.l.b16 %v630
        %v740 = vunpack.c.l.b16 %v631
        %v741 = vunpack.c.l.b16 %v632
        %v742 = vunpack.c.l.b16 %v633
        %v743 = vunpack.c.l.b16 %v634
        %v744 = vunpack.c.l.b16 %v635
        %v745 = vunpack.c.l.b16 %v636
        %v746 = vunpack.c.l.b16 %v637
        %v747 = vunpack.c.l.b16 %v638
        %v748 = vunpack.c.l.b16 %v639
        %v749 = vunpack.c.l.b16 %v640
        %v750 = vunpack.c.l.b16 %v641
        %v751 = vpack.c.b16 %v705, %v704
        %v752 = vpack.c.b16 %v707, %v706
        %v753 = vpack.c.b16 %v709, %v708
        %v754 = vpack.c.b16 %v711, %v710
        %v755 = vpack.c.b16 %v713, %v712
        %v756 = vpack.c.b16 %v715, %v714
        %v757 = vpack.c.b16 %v717, %v716
        %v758 = vpack.c.b16 %v719, %v718
        %v759 = vpack.c.b16 %v721, %v720
        %v760 = vpack.c.b16 %v723, %v722
        %v761 = vpack.c.b16 %v725, %v724
        %v762 = vpack.c.b16 %v727, %v726
        %v763 = vpack.c.b16 %v729, %v728
        %v764 = vpack.c.b16 %v731, %v730
        %v765 = vpack.c.b16 %v733, %v732
        %v766 = vpack.c.b16 %v735, %v734
        %v767 = vpack.c.b16 %v737, %v736
        %v768 = vpack.c.b16 %v739, %v738
        %v769 = vpack.c.b16 %v741, %v740
        %v770 = vpack.c.b16 %v743, %v742
        %v771 = vpack.c.b16 %v745, %v744
        %v772 = vpack.c.b16 %v747, %v746
        %v773 = vpack.c.b16 %v749, %v748
        %v774 = vpack.c.b16 %v750, %v750
        %v783 = vunpack.c.l.b16 %v642
        %v784 = vunpack.c.l.b16 %v643
        %v785 = vunpack.c.l.b16 %v644
        %v786 = vunpack.c.l.b16 %v645
        %v787 = vunpack.c.l.b16 %v646
        %v788 = vunpack.c.l.b16 %v647
        %v789 = vunpack.c.l.b16 %v648
        %v790 = vunpack.c.l.b16 %v649
        %v791 = vpack.c.b16 %v784, %v783
        %v792 = vpack.c.b16 %v786, %v785
        %v793 = vpack.c.b16 %v788, %v787
        %v794 = vpack.c.b16 %v790, %v789
        %vm799 = vcmask 523264
        %v801 = vsel %vm799, %v751, 0
        %v804 = vsel %vm799, %v752, 0
        %v807 = vsel %vm799, %v753, 0
        %v810 = vsel %vm799, %v754, 0
        %v813 = vsel %vm799, %v755, 0
        %v816 = vsel %vm799, %v756, 0
        %v819 = vsel %vm799, %v757, 0
        %v822 = vsel %vm799, %v758, 0
        %v825 = vsel %vm799, %v759, 0
        %v828 = vsel %vm799, %v760, 0
        %v831 = vsel %vm799, %v761, 0
        %v834 = vsel %vm799, %v762, 0
        %v837 = vsel %vm799, %v763, 0
        %v840 = vsel %vm799, %v764, 0
        %v843 = vsel %vm799, %v765, 0
        %v846 = vsel %vm799, %v766, 0
        %v849 = vsel %vm799, %v767, 0
        %v852 = vsel %vm799, %v768, 0
        %v855 = vsel %vm799, %v769, 0
        %v858 = vsel %vm799, %v770, 0
        %v861 = vsel %vm799, %v771, 0
        %v864 = vsel %vm799, %v772, 0
        %v867 = vsel %vm799, %v773, 0
        %v870 = vsel %vm799, %v774, 0
        %872 = vmatprep.subr.bf16.mxu0 0
        %873 = vmatpush1.bf16.msra.mxu0 %v791
        %874 = vmatprep.subr.bf16.mxu0 0
        %875 = vmatpush1.bf16.msra.mxu0 %v792
        %876 = vmatprep.subr.bf16.mxu0 0
        %877 = vmatpush1.bf16.msra.mxu0 %v793
        %878 = vmatprep.subr.bf16.mxu0 0
        %879 = vmatpush1.bf16.msra.mxu0 %v794
        %880 = vmatprep.subr.bf16.mxu0 0
        %881 = vmatpush1.bf16.msra.mxu0 0
        %882 = vmatprep.subr.bf16.mxu0 0
        %883 = vmatpush1.bf16.msra.mxu0 0
        %884 = vmatprep.subr.bf16.mxu0 0
        %885 = vmatpush1.bf16.msra.mxu0 0
        %886 = vmatprep.subr.bf16.mxu0 0
        %887 = vmatpush1.bf16.msra.mxu0 0
        %888 = vmatprep.subr.bf16.mxu0 0
        %889 = vmatpush1.bf16.msra.mxu0 0
        %890 = vmatprep.subr.bf16.mxu0 0
        %891 = vmatpush1.bf16.msra.mxu0 0
        %892 = vmatprep.subr.bf16.mxu0 0
        %893 = vmatpush1.bf16.msra.mxu0 0
        %894 = vmatprep.subr.bf16.mxu0 0
        %895 = vmatpush1.bf16.msra.mxu0 0
        %896 = vmatprep.subr.bf16.mxu0 0
        %897 = vmatpush1.bf16.msra.mxu0 0
        %898 = vmatprep.subr.bf16.mxu0 0
        %899 = vmatpush1.bf16.msra.mxu0 0
        %900 = vmatprep.subr.bf16.mxu0 0
        %901 = vmatpush1.bf16.msra.mxu0 0
        %902 = vmatprep.subr.bf16.mxu0 0
        %903 = vmatpush1.bf16.msra.mxu0 0
        %904 = vmatprep.mubr.bf16.mxu0 0
        %905 = vmatmul.mubr.bf16.gmra.mrb[0].mxu0 %v801
        %v906 = vpop.f32.mrb[0].mxu0
        %v907 = vadd.f32 %v655, %v906
        %v908 = vpop.f32.mrb[0].mxu0
        %v909 = vpop.f32.mrb[0].mxu0
        %v910 = vadd.f32 %v655, %v909
        %v911 = vpop.f32.mrb[0].mxu0
        %912 = vmatprep.mubr.bf16.mxu0 0
        %913 = vmatmul.mubr.bf16.gmra.mrb[0].mxu0 %v804
        %v914 = vpop.f32.mrb[0].mxu0
        %v915 = vadd.f32 %v655, %v914
        %v916 = vpop.f32.mrb[0].mxu0
        %v917 = vpop.f32.mrb[0].mxu0
        %v918 = vadd.f32 %v655, %v917
        %v919 = vpop.f32.mrb[0].mxu0
        %920 = vmatprep.mubr.bf16.mxu0 0
        %921 = vmatmul.mubr.bf16.gmra.mrb[0].mxu0 %v807
        %v922 = vpop.f32.mrb[0].mxu0
        %v923 = vadd.f32 %v655, %v922
        %v924 = vpop.f32.mrb[0].mxu0
        %v925 = vpop.f32.mrb[0].mxu0
        %v926 = vadd.f32 %v655, %v925
        %v927 = vpop.f32.mrb[0].mxu0
        %928 = vmatprep.mubr.bf16.mxu0 0
        %929 = vmatmul.mubr.bf16.gmra.mrb[0].mxu0 %v810
        %v930 = vpop.f32.mrb[0].mxu0
        %v931 = vadd.f32 %v655, %v930
        %v932 = vpop.f32.mrb[0].mxu0
        %v933 = vpop.f32.mrb[0].mxu0
        %v934 = vadd.f32 %v655, %v933
        %v935 = vpop.f32.mrb[0].mxu0
        %936 = vmatprep.mubr.bf16.mxu0 0
        %937 = vmatmul.mubr.bf16.gmra.mrb[0].mxu0 %v813
        %v938 = vpop.f32.mrb[0].mxu0
        %v939 = vadd.f32 %v655, %v938
        %v940 = vpop.f32.mrb[0].mxu0
        %v941 = vpop.f32.mrb[0].mxu0
        %v942 = vadd.f32 %v655, %v941
        %v943 = vpop.f32.mrb[0].mxu0
        %944 = vmatprep.mubr.bf16.mxu0 0
        %945 = vmatmul.mubr.bf16.gmra.mrb[0].mxu0 %v816
        %v946 = vpop.f32.mrb[0].mxu0
        %v947 = vadd.f32 %v655, %v946
        %v948 = vpop.f32.mrb[0].mxu0
        %v949 = vpop.f32.mrb[0].mxu0
        %v950 = vadd.f32 %v655, %v949
        %v951 = vpop.f32.mrb[0].mxu0
        %952 = vmatprep.mubr.bf16.mxu0 0
        %953 = vmatmul.mubr.bf16.gmra.mrb[0].mxu0 %v819
        %v954 = vpop.f32.mrb[0].mxu0
        %v955 = vadd.f32 %v655, %v954
        %v956 = vpop.f32.mrb[0].mxu0
        %v957 = vpop.f32.mrb[0].mxu0
        %v958 = vadd.f32 %v655, %v957
        %v959 = vpop.f32.mrb[0].mxu0
        %960 = vmatprep.mubr.bf16.mxu0 0
        %961 = vmatmul.mubr.bf16.gmra.mrb[0].mxu0 %v822
        %v962 = vpop.f32.mrb[0].mxu0
        %v963 = vadd.f32 %v655, %v962
        %v964 = vpop.f32.mrb[0].mxu0
        %v965 = vpop.f32.mrb[0].mxu0
        %v966 = vadd.f32 %v655, %v965
        %v967 = vpop.f32.mrb[0].mxu0
        %968 = vmatprep.mubr.bf16.mxu0 0
        %969 = vmatmul.mubr.bf16.gmra.mrb[0].mxu0 %v825
        %v970 = vpop.f32.mrb[0].mxu0
        %v971 = vadd.f32 %v655, %v970
        %v972 = vpop.f32.mrb[0].mxu0
        %v973 = vpop.f32.mrb[0].mxu0
        %v974 = vadd.f32 %v655, %v973
        %v975 = vpop.f32.mrb[0].mxu0
        %976 = vmatprep.mubr.bf16.mxu0 0
        %977 = vmatmul.mubr.bf16.gmra.mrb[0].mxu0 %v828
        %v978 = vpop.f32.mrb[0].mxu0
        %v979 = vadd.f32 %v655, %v978
        %v980 = vpop.f32.mrb[0].mxu0
        %v981 = vpop.f32.mrb[0].mxu0
        %v982 = vadd.f32 %v655, %v981
        %v983 = vpop.f32.mrb[0].mxu0
        %984 = vmatprep.mubr.bf16.mxu0 0
        %985 = vmatmul.mubr.bf16.gmra.mrb[0].mxu0 %v831
        %v986 = vpop.f32.mrb[0].mxu0
        %v987 = vadd.f32 %v655, %v986
        %v988 = vpop.f32.mrb[0].mxu0
        %v989 = vpop.f32.mrb[0].mxu0
        %v990 = vadd.f32 %v655, %v989
        %v991 = vpop.f32.mrb[0].mxu0
        %992 = vmatprep.mubr.bf16.mxu0 0
        %993 = vmatmul.mubr.bf16.gmra.mrb[0].mxu0 %v834
        %v994 = vpop.f32.mrb[0].mxu0
        %v995 = vadd.f32 %v655, %v994
        %v996 = vpop.f32.mrb[0].mxu0
        %v997 = vpop.f32.mrb[0].mxu0
        %v998 = vadd.f32 %v655, %v997
        %v999 = vpop.f32.mrb[0].mxu0
        %1000 = vmatprep.mubr.bf16.mxu0 0
        %1001 = vmatmul.mubr.bf16.gmra.mrb[0].mxu0 %v837
        %v1002 = vpop.f32.mrb[0].mxu0
        %v1003 = vadd.f32 %v655, %v1002
        %v1004 = vpop.f32.mrb[0].mxu0
        %v1005 = vpop.f32.mrb[0].mxu0
        %v1006 = vadd.f32 %v655, %v1005
        %v1007 = vpop.f32.mrb[0].mxu0
        %1008 = vmatprep.mubr.bf16.mxu0 0
        %1009 = vmatmul.mubr.bf16.gmra.mrb[0].mxu0 %v840
        %v1010 = vpop.f32.mrb[0].mxu0
        %v1011 = vadd.f32 %v655, %v1010
        %v1012 = vpop.f32.mrb[0].mxu0
        %v1013 = vpop.f32.mrb[0].mxu0
        %v1014 = vadd.f32 %v655, %v1013
        %v1015 = vpop.f32.mrb[0].mxu0
        %1016 = vmatprep.mubr.bf16.mxu0 0
        %1017 = vmatmul.mubr.bf16.gmra.mrb[0].mxu0 %v843
        %v1018 = vpop.f32.mrb[0].mxu0
        %v1019 = vadd.f32 %v655, %v1018
        %v1020 = vpop.f32.mrb[0].mxu0
        %v1021 = vpop.f32.mrb[0].mxu0
        %v1022 = vadd.f32 %v655, %v1021
        %v1023 = vpop.f32.mrb[0].mxu0
        %1024 = vmatprep.mubr.bf16.mxu0 0
        %1025 = vmatmul.mubr.bf16.gmra.mrb[0].mxu0 %v846
        %v1026 = vpop.f32.mrb[0].mxu0
        %v1027 = vadd.f32 %v655, %v1026
        %v1028 = vpop.f32.mrb[0].mxu0
        %v1029 = vpop.f32.mrb[0].mxu0
        %v1030 = vadd.f32 %v655, %v1029
        %v1031 = vpop.f32.mrb[0].mxu0
        %1032 = vmatprep.mubr.bf16.mxu0 0
        %1033 = vmatmul.mubr.bf16.gmra.mrb[0].mxu0 %v849
        %v1034 = vpop.f32.mrb[0].mxu0
        %v1035 = vadd.f32 %v655, %v1034
        %v1036 = vpop.f32.mrb[0].mxu0
        %v1037 = vpop.f32.mrb[0].mxu0
        %v1038 = vadd.f32 %v655, %v1037
        %v1039 = vpop.f32.mrb[0].mxu0
        %1040 = vmatprep.mubr.bf16.mxu0 0
        %1041 = vmatmul.mubr.bf16.gmra.mrb[0].mxu0 %v852
        %v1042 = vpop.f32.mrb[0].mxu0
        %v1043 = vadd.f32 %v655, %v1042
        %v1044 = vpop.f32.mrb[0].mxu0
        %v1045 = vpop.f32.mrb[0].mxu0
        %v1046 = vadd.f32 %v655, %v1045
        %v1047 = vpop.f32.mrb[0].mxu0
        %1048 = vmatprep.mubr.bf16.mxu0 0
        %1049 = vmatmul.mubr.bf16.gmra.mrb[0].mxu0 %v855
        %v1050 = vpop.f32.mrb[0].mxu0
        %v1051 = vadd.f32 %v655, %v1050
        %v1052 = vpop.f32.mrb[0].mxu0
        %v1053 = vpop.f32.mrb[0].mxu0
        %v1054 = vadd.f32 %v655, %v1053
        %v1055 = vpop.f32.mrb[0].mxu0
        %1056 = vmatprep.mubr.bf16.mxu0 0
        %1057 = vmatmul.mubr.bf16.gmra.mrb[0].mxu0 %v858
        %v1058 = vpop.f32.mrb[0].mxu0
        %v1059 = vadd.f32 %v655, %v1058
        %v1060 = vpop.f32.mrb[0].mxu0
        %v1061 = vpop.f32.mrb[0].mxu0
        %v1062 = vadd.f32 %v655, %v1061
        %v1063 = vpop.f32.mrb[0].mxu0
        %1064 = vmatprep.mubr.bf16.mxu0 0
        %1065 = vmatmul.mubr.bf16.gmra.mrb[0].mxu0 %v861
        %v1066 = vpop.f32.mrb[0].mxu0
        %v1067 = vadd.f32 %v655, %v1066
        %v1068 = vpop.f32.mrb[0].mxu0
        %v1069 = vpop.f32.mrb[0].mxu0
        %v1070 = vadd.f32 %v655, %v1069
        %v1071 = vpop.f32.mrb[0].mxu0
        %1072 = vmatprep.mubr.bf16.mxu0 0
        %1073 = vmatmul.mubr.bf16.gmra.mrb[0].mxu0 %v864
        %v1074 = vpop.f32.mrb[0].mxu0
        %v1075 = vadd.f32 %v655, %v1074
        %v1076 = vpop.f32.mrb[0].mxu0
        %v1077 = vpop.f32.mrb[0].mxu0
        %v1078 = vadd.f32 %v655, %v1077
        %v1079 = vpop.f32.mrb[0].mxu0
        %1080 = vmatprep.mubr.bf16.mxu0 0
        %1081 = vmatmul.mubr.bf16.gmra.mrb[0].mxu0 %v867
        %v1082 = vpop.f32.mrb[0].mxu0
        %v1083 = vadd.f32 %v655, %v1082
        %v1084 = vpop.f32.mrb[0].mxu0
        %v1085 = vpop.f32.mrb[0].mxu0
        %v1086 = vadd.f32 %v655, %v1085
        %v1087 = vpop.f32.mrb[0].mxu0
        %1088 = vmatprep.mubr.bf16.mxu0 0
        %1089 = vmatmul.mubr.bf16.gmra.mrb[0].mxu0 %v870
        %v1090 = vpop.f32.mrb[0].mxu0
        %v1091 = vadd.f32 %v655, %v1090
        %v1092 = vpop.f32.mrb[0].mxu0
        %v1093 = vpop.f32.mrb[0].mxu0
        %v1094 = vpop.f32.mrb[0].mxu0
        %1095 = vdwg.mxu0
        %vm1096 = vcmp.ge.f32.partialorder %v907, 0.0
        %vm1097 = vcmp.ge.f32.partialorder %v910, 0.0
        %vm1098 = vcmp.ge.f32.partialorder %v915, 0.0
        %vm1099 = vcmp.ge.f32.partialorder %v918, 0.0
        %vm1100 = vcmp.ge.f32.partialorder %v923, 0.0
        %vm1101 = vcmp.ge.f32.partialorder %v926, 0.0
        %vm1102 = vcmp.ge.f32.partialorder %v931, 0.0
        %vm1103 = vcmp.ge.f32.partialorder %v934, 0.0
        %vm1104 = vcmp.ge.f32.partialorder %v939, 0.0
        %vm1105 = vcmp.ge.f32.partialorder %v942, 0.0
        %vm1106 = vcmp.ge.f32.partialorder %v947, 0.0
        %vm1107 = vcmp.ge.f32.partialorder %v950, 0.0
        %vm1108 = vcmp.ge.f32.partialorder %v955, 0.0
        %vm1109 = vcmp.ge.f32.partialorder %v958, 0.0
        %vm1110 = vcmp.ge.f32.partialorder %v963, 0.0
        %vm1111 = vcmp.ge.f32.partialorder %v966, 0.0
        %vm1112 = vcmp.ge.f32.partialorder %v971, 0.0
        %vm1113 = vcmp.ge.f32.partialorder %v974, 0.0
        %vm1114 = vcmp.ge.f32.partialorder %v979, 0.0
        %vm1115 = vcmp.ge.f32.partialorder %v982, 0.0
        %vm1116 = vcmp.ge.f32.partialorder %v987, 0.0
        %vm1117 = vcmp.ge.f32.partialorder %v990, 0.0
        %vm1118 = vcmp.ge.f32.partialorder %v995, 0.0
        %vm1119 = vcmp.ge.f32.partialorder %v998, 0.0
        %vm1120 = vcmp.ge.f32.partialorder %v1003, 0.0
        %vm1121 = vcmp.ge.f32.partialorder %v1006, 0.0
        %vm1122 = vcmp.ge.f32.partialorder %v1011, 0.0
        %vm1123 = vcmp.ge.f32.partialorder %v1014, 0.0
        %vm1124 = vcmp.ge.f32.partialorder %v1019, 0.0
        %vm1125 = vcmp.ge.f32.partialorder %v1022, 0.0
        %vm1126 = vcmp.ge.f32.partialorder %v1027, 0.0
        %vm1127 = vcmp.ge.f32.partialorder %v1030, 0.0
        %vm1128 = vcmp.ge.f32.partialorder %v1035, 0.0
        %vm1129 = vcmp.ge.f32.partialorder %v1038, 0.0
        %vm1130 = vcmp.ge.f32.partialorder %v1043, 0.0
        %vm1131 = vcmp.ge.f32.partialorder %v1046, 0.0
        %vm1132 = vcmp.ge.f32.partialorder %v1051, 0.0
        %vm1133 = vcmp.ge.f32.partialorder %v1054, 0.0
        %vm1134 = vcmp.ge.f32.partialorder %v1059, 0.0
        %vm1135 = vcmp.ge.f32.partialorder %v1062, 0.0
        %vm1136 = vcmp.ge.f32.partialorder %v1067, 0.0
        %vm1137 = vcmp.ge.f32.partialorder %v1070, 0.0
        %vm1138 = vcmp.ge.f32.partialorder %v1075, 0.0
        %vm1139 = vcmp.ge.f32.partialorder %v1078, 0.0
        %vm1140 = vcmp.ge.f32.partialorder %v1083, 0.0
        %vm1141 = vcmp.ge.f32.partialorder %v1086, 0.0
        %vm1142 = vcmp.ge.f32.partialorder %v1091, 0.0
        %v1143 = vmul.f32 %v907, 0.01
        %v1144 = vmul.f32 %v910, 0.01
        %v1145 = vmul.f32 %v915, 0.01
        %v1146 = vmul.f32 %v918, 0.01
        %v1147 = vmul.f32 %v923, 0.01
        %v1148 = vmul.f32 %v926, 0.01
        %v1149 = vmul.f32 %v931, 0.01
        %v1150 = vmul.f32 %v934, 0.01
        %v1151 = vmul.f32 %v939, 0.01
        %v1152 = vmul.f32 %v942, 0.01
        %v1153 = vmul.f32 %v947, 0.01
        %v1154 = vmul.f32 %v950, 0.01
        %v1155 = vmul.f32 %v955, 0.01
        %v1156 = vmul.f32 %v958, 0.01
        %v1157 = vmul.f32 %v963, 0.01
        %v1158 = vmul.f32 %v966, 0.01
        %v1159 = vmul.f32 %v971, 0.01
        %v1160 = vmul.f32 %v974, 0.01
        %v1161 = vmul.f32 %v979, 0.01
        %v1162 = vmul.f32 %v982, 0.01
        %v1163 = vmul.f32 %v987, 0.01
        %v1164 = vmul.f32 %v990, 0.01
        %v1165 = vmul.f32 %v995, 0.01
        %v1166 = vmul.f32 %v998, 0.01
        %v1167 = vmul.f32 %v1003, 0.01
        %v1168 = vmul.f32 %v1006, 0.01
        %v1169 = vmul.f32 %v1011, 0.01
        %v1170 = vmul.f32 %v1014, 0.01
        %v1171 = vmul.f32 %v1019, 0.01
        %v1172 = vmul.f32 %v1022, 0.01
        %v1173 = vmul.f32 %v1027, 0.01
        %v1174 = vmul.f32 %v1030, 0.01
        %v1175 = vmul.f32 %v1035, 0.01
        %v1176 = vmul.f32 %v1038, 0.01
        %v1177 = vmul.f32 %v1043, 0.01
        %v1178 = vmul.f32 %v1046, 0.01
        %v1179 = vmul.f32 %v1051, 0.01
        %v1180 = vmul.f32 %v1054, 0.01
        %v1181 = vmul.f32 %v1059, 0.01
        %v1182 = vmul.f32 %v1062, 0.01
        %v1183 = vmul.f32 %v1067, 0.01
        %v1184 = vmul.f32 %v1070, 0.01
        %v1185 = vmul.f32 %v1075, 0.01
        %v1186 = vmul.f32 %v1078, 0.01
        %v1187 = vmul.f32 %v1083, 0.01
        %v1188 = vmul.f32 %v1086, 0.01
        %v1189 = vmul.f32 %v1091, 0.01
        %v1190 = vsel %vm1096, %v907, %v1143
        %v1191 = vsel %vm1097, %v910, %v1144
        %v1192 = vsel %vm1098, %v915, %v1145
        %v1193 = vsel %vm1099, %v918, %v1146
        %v1194 = vsel %vm1100, %v923, %v1147
        %v1195 = vsel %vm1101, %v926, %v1148
        %v1196 = vsel %vm1102, %v931, %v1149
        %v1197 = vsel %vm1103, %v934, %v1150
        %v1198 = vsel %vm1104, %v939, %v1151
        %v1199 = vsel %vm1105, %v942, %v1152
        %v1200 = vsel %vm1106, %v947, %v1153
        %v1201 = vsel %vm1107, %v950, %v1154
        %v1202 = vsel %vm1108, %v955, %v1155
        %v1203 = vsel %vm1109, %v958, %v1156
        %v1204 = vsel %vm1110, %v963, %v1157
        %v1205 = vsel %vm1111, %v966, %v1158
        %v1206 = vsel %vm1112, %v971, %v1159
        %v1207 = vsel %vm1113, %v974, %v1160
        %v1208 = vsel %vm1114, %v979, %v1161
        %v1209 = vsel %vm1115, %v982, %v1162
        %v1210 = vsel %vm1116, %v987, %v1163
        %v1211 = vsel %vm1117, %v990, %v1164
        %v1212 = vsel %vm1118, %v995, %v1165
        %v1213 = vsel %vm1119, %v998, %v1166
        %v1214 = vsel %vm1120, %v1003, %v1167
        %v1215 = vsel %vm1121, %v1006, %v1168
        %v1216 = vsel %vm1122, %v1011, %v1169
        %v1217 = vsel %vm1123, %v1014, %v1170
        %v1218 = vsel %vm1124, %v1019, %v1171
        %v1219 = vsel %vm1125, %v1022, %v1172
        %v1220 = vsel %vm1126, %v1027, %v1173
        %v1221 = vsel %vm1127, %v1030, %v1174
        %v1222 = vsel %vm1128, %v1035, %v1175
        %v1223 = vsel %vm1129, %v1038, %v1176
        %v1224 = vsel %vm1130, %v1043, %v1177
        %v1225 = vsel %vm1131, %v1046, %v1178
        %v1226 = vsel %vm1132, %v1051, %v1179
        %v1227 = vsel %vm1133, %v1054, %v1180
        %v1228 = vsel %vm1134, %v1059, %v1181
        %v1229 = vsel %vm1135, %v1062, %v1182
        %v1230 = vsel %vm1136, %v1067, %v1183
        %v1231 = vsel %vm1137, %v1070, %v1184
        %v1232 = vsel %vm1138, %v1075, %v1185
        %v1233 = vsel %vm1139, %v1078, %v1186
        %v1234 = vsel %vm1140, %v1083, %v1187
        %v1235 = vsel %vm1141, %v1086, %v1188
        %v1236 = vsel %vm1142, %v1091, %v1189
        %vm1237 = vcmask 519168
        %1238 = vst.msk [vmem:[#allocation2] sm:$0xf] %vm1237, -inf
        %1239 = vst.msk [vmem:[#allocation2 + $0x4] sm:$0xff] %vm799, %v1190
        %1240 = vst.msk [vmem:[#allocation2 + $0xc] sm:$0xff] %vm799, %v1191
        %1241 = vst.msk [vmem:[#allocation2 + $0x14] sm:$0xff] %vm799, %v1192
        %1242 = vst.msk [vmem:[#allocation2 + $0x1c] sm:$0xff] %vm799, %v1193
        %1243 = vst.msk [vmem:[#allocation2 + $0x24] sm:$0xff] %vm799, %v1194
        %1244 = vst.msk [vmem:[#allocation2 + $0x2c] sm:$0xff] %vm799, %v1195
        %1245 = vst.msk [vmem:[#allocation2 + $0x34] sm:$0xff] %vm799, %v1196
        %1246 = vst.msk [vmem:[#allocation2 + $0x3c] sm:$0xff] %vm799, %v1197
        %1247 = vst.msk [vmem:[#allocation2 + $0x44] sm:$0xff] %vm799, %v1198
        %1248 = vst.msk [vmem:[#allocation2 + $0x4c] sm:$0xff] %vm799, %v1199
        %1249 = vst.msk [vmem:[#allocation2 + $0x54] sm:$0xff] %vm799, %v1200
        %1250 = vst.msk [vmem:[#allocation2 + $0x5c] sm:$0xff] %vm799, %v1201
        %1251 = vst.msk [vmem:[#allocation2 + $0x64] sm:$0xff] %vm799, %v1202
        %1252 = vst.msk [vmem:[#allocation2 + $0x6c] sm:$0xff] %vm799, %v1203
        %1253 = vst.msk [vmem:[#allocation2 + $0x74] sm:$0xff] %vm799, %v1204
        %1254 = vst.msk [vmem:[#allocation2 + $0x7c] sm:$0xff] %vm799, %v1205
        %1255 = vst.msk [vmem:[#allocation2 + $0x84] sm:$0xff] %vm799, %v1206
        %1256 = vst.msk [vmem:[#allocation2 + $0x8c] sm:$0xff] %vm799, %v1207
        %1257 = vst.msk [vmem:[#allocation2 + $0x94] sm:$0xff] %vm799, %v1208
        %1258 = vst.msk [vmem:[#allocation2 + $0x9c] sm:$0xff] %vm799, %v1209
        %1259 = vst.msk [vmem:[#allocation2 + $0xa4] sm:$0xff] %vm799, %v1210
        %1260 = vst.msk [vmem:[#allocation2 + $0xac] sm:$0xff] %vm799, %v1211
        %1261 = vst.msk [vmem:[#allocation2 + $0xb4] sm:$0xff] %vm799, %v1212
        %1262 = vst.msk [vmem:[#allocation2 + $0xbc] sm:$0xff] %vm799, %v1213
        %1263 = vst.msk [vmem:[#allocation2 + $0xc4] sm:$0xff] %vm799, %v1214
        %1264 = vst.msk [vmem:[#allocation2 + $0xcc] sm:$0xff] %vm799, %v1215
        %1265 = vst.msk [vmem:[#allocation2 + $0xd4] sm:$0xff] %vm799, %v1216
        %1266 = vst.msk [vmem:[#allocation2 + $0xdc] sm:$0xff] %vm799, %v1217
        %1267 = vst.msk [vmem:[#allocation2 + $0xe4] sm:$0xff] %vm799, %v1218
        %1268 = vst.msk [vmem:[#allocation2 + $0xec] sm:$0xff] %vm799, %v1219
        %1269 = vst.msk [vmem:[#allocation2 + $0xf4] sm:$0xff] %vm799, %v1220
        %1270 = vst.msk [vmem:[#allocation2 + $0xfc] sm:$0xff] %vm799, %v1221
        %1271 = vst.msk [vmem:[#allocation2 + $0x104] sm:$0xff] %vm799, %v1222
        %1272 = vst.msk [vmem:[#allocation2 + $0x10c] sm:$0xff] %vm799, %v1223
        %1273 = vst.msk [vmem:[#allocation2 + $0x114] sm:$0xff] %vm799, %v1224
        %1274 = vst.msk [vmem:[#allocation2 + $0x11c] sm:$0xff] %vm799, %v1225
        %1275 = vst.msk [vmem:[#allocation2 + $0x124] sm:$0xff] %vm799, %v1226
        %1276 = vst.msk [vmem:[#allocation2 + $0x12c] sm:$0xff] %vm799, %v1227
        %1277 = vst.msk [vmem:[#allocation2 + $0x134] sm:$0xff] %vm799, %v1228
        %1278 = vst.msk [vmem:[#allocation2 + $0x13c] sm:$0xff] %vm799, %v1229
        %1279 = vst.msk [vmem:[#allocation2 + $0x144] sm:$0xff] %vm799, %v1230
        %1280 = vst.msk [vmem:[#allocation2 + $0x14c] sm:$0xff] %vm799, %v1231
        %1281 = vst.msk [vmem:[#allocation2 + $0x154] sm:$0xff] %vm799, %v1232
        %1282 = vst.msk [vmem:[#allocation2 + $0x15c] sm:$0xff] %vm799, %v1233
        %1283 = vst.msk [vmem:[#allocation2 + $0x164] sm:$0xff] %vm799, %v1234
        %1284 = vst.msk [vmem:[#allocation2 + $0x16c] sm:$0xff] %vm799, %v1235
        %1285 = vst.msk [vmem:[#allocation2 + $0x174] sm:$0xf] %vm1237, %v1236
        %v1286 = vld [vmem:[#allocation2] ss:$8 sm:$0xf]
        %v1287 = vld [vmem:[#allocation2] ss:$8 sm:$0xf0]
        %v1288 = vor.u32 %v1286, %v1287
        %s1289 = scalar_lea.vmem [#allocation2], 64
        %v1290 = vld [vmem:[%s1289] ss:$8 sm:$0xf]
        %v1291 = vld [vmem:[%s1289] ss:$8 sm:$0xf0]
        %v1292 = vor.u32 %v1290, %v1291
        %s1293 = scalar_lea.vmem [#allocation2], 128
        %v1294 = vld [vmem:[%s1293] ss:$8 sm:$0xf]
        %v1295 = vld [vmem:[%s1293] ss:$8 sm:$0xf0]
        %v1296 = vor.u32 %v1294, %v1295
        %s1297 = scalar_lea.vmem [#allocation2], 192
        %v1298 = vld [vmem:[%s1297] ss:$8 sm:$0xf]
        %v1299 = vld [vmem:[%s1297] ss:$8 sm:$0xf0]
        %v1300 = vor.u32 %v1298, %v1299
        %s1301 = scalar_lea.vmem [#allocation2], 256
        %v1302 = vld [vmem:[%s1301] ss:$8 sm:$0xf]
        %v1303 = vld [vmem:[%s1301] ss:$8 sm:$0xf0]
        %v1304 = vor.u32 %v1302, %v1303
        %s1305 = scalar_lea.vmem [#allocation2], 320
        %v1306 = vld [vmem:[%s1305] ss:$8 sm:$0xf]
        %v1307 = vld [vmem:[%s1305] ss:$8 sm:$0x70]
        %v1308 = vor.u32 %v1306, %v1307
        %s1309 = scalar_lea.vmem [#allocation2], 1
        %v1310 = vld [vmem:[%s1309] ss:$8 sm:$0xf]
        %v1311 = vld [vmem:[%s1309] ss:$8 sm:$0xf0]
        %v1312 = vor.u32 %v1310, %v1311
        %s1313 = scalar_lea.vmem [#allocation2], 65
        %v1314 = vld [vmem:[%s1313] ss:$8 sm:$0xf]
        %v1315 = vld [vmem:[%s1313] ss:$8 sm:$0xf0]
        %v1316 = vor.u32 %v1314, %v1315
        %s1317 = scalar_lea.vmem [#allocation2], 129
        %v1318 = vld [vmem:[%s1317] ss:$8 sm:$0xf]
        %v1319 = vld [vmem:[%s1317] ss:$8 sm:$0xf0]
        %v1320 = vor.u32 %v1318, %v1319
        %s1321 = scalar_lea.vmem [#allocation2], 193
        %v1322 = vld [vmem:[%s1321] ss:$8 sm:$0xf]
        %v1323 = vld [vmem:[%s1321] ss:$8 sm:$0xf0]
        %v1324 = vor.u32 %v1322, %v1323
        %s1325 = scalar_lea.vmem [#allocation2], 257
        %v1326 = vld [vmem:[%s1325] ss:$8 sm:$0xf]
        %v1327 = vld [vmem:[%s1325] ss:$8 sm:$0xf0]
        %v1328 = vor.u32 %v1326, %v1327
        %s1329 = scalar_lea.vmem [#allocation2], 321
        %v1330 = vld [vmem:[%s1329] ss:$8 sm:$0xf]
        %v1331 = vld [vmem:[%s1329] ss:$8 sm:$0x70]
        %v1332 = vor.u32 %v1330, %v1331
        %v1333 = vmax.f32 %v1288, %v1312
        %v1334 = vmax.f32 %v1292, %v1316
        %v1335 = vmax.f32 %v1296, %v1320
        %v1336 = vmax.f32 %v1300, %v1324
        %v1337 = vmax.f32 %v1304, %v1328
        %v1338 = vmax.f32 %v1308, %v1332
        %s1339 = scalar_lea.vmem [#allocation2], 2
        %v1340 = vld [vmem:[%s1339] ss:$8 sm:$0xf]
        %v1341 = vld [vmem:[%s1339] ss:$8 sm:$0xf0]
        %v1342 = vor.u32 %v1340, %v1341
        %s1343 = scalar_lea.vmem [#allocation2], 66
        %v1344 = vld [vmem:[%s1343] ss:$8 sm:$0xf]
        %v1345 = vld [vmem:[%s1343] ss:$8 sm:$0xf0]
        %v1346 = vor.u32 %v1344, %v1345
        %s1347 = scalar_lea.vmem [#allocation2], 130
        %v1348 = vld [vmem:[%s1347] ss:$8 sm:$0xf]
        %v1349 = vld [vmem:[%s1347] ss:$8 sm:$0xf0]
        %v1350 = vor.u32 %v1348, %v1349
        %s1351 = scalar_lea.vmem [#allocation2], 194
        %v1352 = vld [vmem:[%s1351] ss:$8 sm:$0xf]
        %v1353 = vld [vmem:[%s1351] ss:$8 sm:$0xf0]
        %v1354 = vor.u32 %v1352, %v1353
        %s1355 = scalar_lea.vmem [#allocation2], 258
        %v1356 = vld [vmem:[%s1355] ss:$8 sm:$0xf]
        %v1357 = vld [vmem:[%s1355] ss:$8 sm:$0xf0]
        %v1358 = vor.u32 %v1356, %v1357
        %s1359 = scalar_lea.vmem [#allocation2], 322
        %v1360 = vld [vmem:[%s1359] ss:$8 sm:$0xf]
        %v1361 = vld [vmem:[%s1359] ss:$8 sm:$0x70]
        %v1362 = vor.u32 %v1360, %v1361
        %v1363 = vmax.f32 %v1333, %v1342
        %v1364 = vmax.f32 %v1334, %v1346
        %v1365 = vmax.f32 %v1335, %v1350
        %v1366 = vmax.f32 %v1336, %v1354
        %v1367 = vmax.f32 %v1337, %v1358
        %v1368 = vmax.f32 %v1338, %v1362
        %s1369 = scalar_lea.vmem [#allocation2], 3
        %v1370 = vld [vmem:[%s1369] ss:$8 sm:$0xf]
        %v1371 = vld [vmem:[%s1369] ss:$8 sm:$0xf0]
        %v1372 = vor.u32 %v1370, %v1371
        %s1373 = scalar_lea.vmem [#allocation2], 67
        %v1374 = vld [vmem:[%s1373] ss:$8 sm:$0xf]
        %v1375 = vld [vmem:[%s1373] ss:$8 sm:$0xf0]
        %v1376 = vor.u32 %v1374, %v1375
        %s1377 = scalar_lea.vmem [#allocation2], 131
        %v1378 = vld [vmem:[%s1377] ss:$8 sm:$0xf]
        %v1379 = vld [vmem:[%s1377] ss:$8 sm:$0xf0]
        %v1380 = vor.u32 %v1378, %v1379
        %s1381 = scalar_lea.vmem [#allocation2], 195
        %v1382 = vld [vmem:[%s1381] ss:$8 sm:$0xf]
        %v1383 = vld [vmem:[%s1381] ss:$8 sm:$0xf0]
        %v1384 = vor.u32 %v1382, %v1383
        %s1385 = scalar_lea.vmem [#allocation2], 259
        %v1386 = vld [vmem:[%s1385] ss:$8 sm:$0xf]
        %v1387 = vld [vmem:[%s1385] ss:$8 sm:$0xf0]
        %v1388 = vor.u32 %v1386, %v1387
        %s1389 = scalar_lea.vmem [#allocation2], 323
        %v1390 = vld [vmem:[%s1389] ss:$8 sm:$0xf]
        %v1391 = vld [vmem:[%s1389] ss:$8 sm:$0x70]
        %v1392 = vor.u32 %v1390, %v1391
        %v1393 = vmax.f32 %v1363, %v1372
        %v1394 = vmax.f32 %v1364, %v1376
        %v1395 = vmax.f32 %v1365, %v1380
        %v1396 = vmax.f32 %v1366, %v1384
        %v1397 = vmax.f32 %v1367, %v1388
        %v1398 = vmax.f32 %v1368, %v1392
        %s1399 = scalar_lea.vmem [#allocation2], 4
        %v1400 = vld [vmem:[%s1399] ss:$8 sm:$0xf]
        %v1401 = vld [vmem:[%s1399] ss:$8 sm:$0xf0]
        %v1402 = vor.u32 %v1400, %v1401
        %s1403 = scalar_lea.vmem [#allocation2], 68
        %v1404 = vld [vmem:[%s1403] ss:$8 sm:$0xf]
        %v1405 = vld [vmem:[%s1403] ss:$8 sm:$0xf0]
        %v1406 = vor.u32 %v1404, %v1405
        %s1407 = scalar_lea.vmem [#allocation2], 132
        %v1408 = vld [vmem:[%s1407] ss:$8 sm:$0xf]
        %v1409 = vld [vmem:[%s1407] ss:$8 sm:$0xf0]
        %v1410 = vor.u32 %v1408, %v1409
        %s1411 = scalar_lea.vmem [#allocation2], 196
        %v1412 = vld [vmem:[%s1411] ss:$8 sm:$0xf]
        %v1413 = vld [vmem:[%s1411] ss:$8 sm:$0xf0]
        %v1414 = vor.u32 %v1412, %v1413
        %s1415 = scalar_lea.vmem [#allocation2], 260
        %v1416 = vld [vmem:[%s1415] ss:$8 sm:$0xf]
        %v1417 = vld [vmem:[%s1415] ss:$8 sm:$0xf0]
        %v1418 = vor.u32 %v1416, %v1417
        %s1419 = scalar_lea.vmem [#allocation2], 324
        %v1420 = vld [vmem:[%s1419] ss:$8 sm:$0xf]
        %v1421 = vld [vmem:[%s1419] ss:$8 sm:$0x70]
        %v1422 = vor.u32 %v1420, %v1421
        %v1423 = vmax.f32 %v1393, %v1402
        %v1424 = vmax.f32 %v1394, %v1406
        %v1425 = vmax.f32 %v1395, %v1410
        %v1426 = vmax.f32 %v1396, %v1414
        %v1427 = vmax.f32 %v1397, %v1418
        %v1428 = vmax.f32 %v1398, %v1422
        %s1429 = scalar_lea.vmem [#allocation2], 5
        %v1430 = vld [vmem:[%s1429] ss:$8 sm:$0xf]
        %v1431 = vld [vmem:[%s1429] ss:$8 sm:$0xf0]
        %v1432 = vor.u32 %v1430, %v1431
        %s1433 = scalar_lea.vmem [#allocation2], 69
        %v1434 = vld [vmem:[%s1433] ss:$8 sm:$0xf]
        %v1435 = vld [vmem:[%s1433] ss:$8 sm:$0xf0]
        %v1436 = vor.u32 %v1434, %v1435
        %s1437 = scalar_lea.vmem [#allocation2], 133
        %v1438 = vld [vmem:[%s1437] ss:$8 sm:$0xf]
        %v1439 = vld [vmem:[%s1437] ss:$8 sm:$0xf0]
        %v1440 = vor.u32 %v1438, %v1439
        %s1441 = scalar_lea.vmem [#allocation2], 197
        %v1442 = vld [vmem:[%s1441] ss:$8 sm:$0xf]
        %v1443 = vld [vmem:[%s1441] ss:$8 sm:$0xf0]
        %v1444 = vor.u32 %v1442, %v1443
        %s1445 = scalar_lea.vmem [#allocation2], 261
        %v1446 = vld [vmem:[%s1445] ss:$8 sm:$0xf]
        %v1447 = vld [vmem:[%s1445] ss:$8 sm:$0xf0]
        %v1448 = vor.u32 %v1446, %v1447
        %s1449 = scalar_lea.vmem [#allocation2], 325
        %v1450 = vld [vmem:[%s1449] ss:$8 sm:$0xf]
        %v1451 = vld [vmem:[%s1449] ss:$8 sm:$0x70]
        %v1452 = vor.u32 %v1450, %v1451
        %v1453 = vmax.f32 %v1423, %v1432
        %v1454 = vmax.f32 %v1424, %v1436
        %v1455 = vmax.f32 %v1425, %v1440
        %v1456 = vmax.f32 %v1426, %v1444
        %v1457 = vmax.f32 %v1427, %v1448
        %v1458 = vmax.f32 %v1428, %v1452
        %s1459 = scalar_lea.vmem [#allocation2], 6
        %v1460 = vld [vmem:[%s1459] ss:$8 sm:$0xf]
        %v1461 = vld [vmem:[%s1459] ss:$8 sm:$0xf0]
        %v1462 = vor.u32 %v1460, %v1461
        %s1463 = scalar_lea.vmem [#allocation2], 70
        %v1464 = vld [vmem:[%s1463] ss:$8 sm:$0xf]
        %v1465 = vld [vmem:[%s1463] ss:$8 sm:$0xf0]
        %v1466 = vor.u32 %v1464, %v1465
        %s1467 = scalar_lea.vmem [#allocation2], 134
        %v1468 = vld [vmem:[%s1467] ss:$8 sm:$0xf]
        %v1469 = vld [vmem:[%s1467] ss:$8 sm:$0xf0]
        %v1470 = vor.u32 %v1468, %v1469
        %s1471 = scalar_lea.vmem [#allocation2], 198
        %v1472 = vld [vmem:[%s1471] ss:$8 sm:$0xf]
        %v1473 = vld [vmem:[%s1471] ss:$8 sm:$0xf0]
        %v1474 = vor.u32 %v1472, %v1473
        %s1475 = scalar_lea.vmem [#allocation2], 262
        %v1476 = vld [vmem:[%s1475] ss:$8 sm:$0xf]
        %v1477 = vld [vmem:[%s1475] ss:$8 sm:$0xf0]
        %v1478 = vor.u32 %v1476, %v1477
        %s1479 = scalar_lea.vmem [#allocation2], 326
        %v1480 = vld [vmem:[%s1479] ss:$8 sm:$0xf]
        %v1481 = vld [vmem:[%s1479] ss:$8 sm:$0x70]
        %v1482 = vor.u32 %v1480, %v1481
        %v1483 = vmax.f32 %v1453, %v1462
        %v1484 = vmax.f32 %v1454, %v1466
        %v1485 = vmax.f32 %v1455, %v1470
        %v1486 = vmax.f32 %v1456, %v1474
        %v1487 = vmax.f32 %v1457, %v1478
        %v1488 = vmax.f32 %v1458, %v1482
        %s1489 = scalar_lea.vmem [#allocation2], 7
        %v1490 = vld [vmem:[%s1489] ss:$8 sm:$0xf]
        %v1491 = vld [vmem:[%s1489] ss:$8 sm:$0xf0]
        %v1492 = vor.u32 %v1490, %v1491
        %s1493 = scalar_lea.vmem [#allocation2], 71
        %v1494 = vld [vmem:[%s1493] ss:$8 sm:$0xf]
        %v1495 = vld [vmem:[%s1493] ss:$8 sm:$0xf0]
        %v1496 = vor.u32 %v1494, %v1495
        %s1497 = scalar_lea.vmem [#allocation2], 135
        %v1498 = vld [vmem:[%s1497] ss:$8 sm:$0xf]
        %v1499 = vld [vmem:[%s1497] ss:$8 sm:$0xf0]
        %v1500 = vor.u32 %v1498, %v1499
        %s1501 = scalar_lea.vmem [#allocation2], 199
        %v1502 = vld [vmem:[%s1501] ss:$8 sm:$0xf]
        %v1503 = vld [vmem:[%s1501] ss:$8 sm:$0xf0]
        %v1504 = vor.u32 %v1502, %v1503
        %s1505 = scalar_lea.vmem [#allocation2], 263
        %v1506 = vld [vmem:[%s1505] ss:$8 sm:$0xf]
        %v1507 = vld [vmem:[%s1505] ss:$8 sm:$0xf0]
        %v1508 = vor.u32 %v1506, %v1507
        %s1509 = scalar_lea.vmem [#allocation2], 327
        %v1510 = vld [vmem:[%s1509] ss:$8 sm:$0xf]
        %v1511 = vld [vmem:[%s1509] ss:$8 sm:$0x70]
        %v1512 = vor.u32 %v1510, %v1511
        %v1513 = vmax.f32 %v1483, %v1492
        %v1514 = vmax.f32 %v1484, %v1496
        %v1515 = vmax.f32 %v1485, %v1500
        %v1516 = vmax.f32 %v1486, %v1504
        %v1517 = vmax.f32 %v1487, %v1508
        %v1518 = vmax.f32 %v1488, %v1512
        %v1519 = vld [vmem:[%s5] sm:$0x1]
        %vm1526 = vcmask 1043456
        %v1527 = vrot.slane %v1513, 4
        %v1528 = vrot.slane %v1514, 4
        %v1529 = vsel %vm1526, %v1527, %v1528
        %v1530 = vrot.slane %v1515, 4
        %v1531 = vsel %vm1526, %v1528, %v1530
        %v1532 = vrot.slane %v1516, 4
        %v1533 = vsel %vm1526, %v1530, %v1532
        %v1534 = vrot.slane %v1517, 4
        %v1535 = vsel %vm1526, %v1532, %v1534
        %v1536 = vrot.slane %v1518, 4
        %v1537 = vsel %vm1526, %v1534, %v1536
        %v1545 = vsel %vm1526, 0.0, %v1527
        %vm1546 = vcmask 1042432
        %v1547 = vsel %vm1546, %v1536, 0.0
        %vm1550 = vcmask 1046528
        %v1551 = vrot.slane %v1545, 1
        %v1552 = vrot.slane %v1529, 1
        %v1553 = vsel %vm1550, %v1551, %v1552
        %v1554 = vrot.slane %v1531, 1
        %v1555 = vsel %vm1550, %v1552, %v1554
        %v1556 = vrot.slane %v1533, 1
        %v1557 = vsel %vm1550, %v1554, %v1556
        %v1558 = vrot.slane %v1535, 1
        %v1559 = vsel %vm1550, %v1556, %v1558
        %v1560 = vrot.slane %v1537, 1
        %v1561 = vsel %vm1550, %v1558, %v1560
        %v1562 = vrot.slane %v1547, 1
        %v1563 = vsel %vm1550, %v1560, %v1562
        %1564 = vrot.lane.b32.xlu0 %v1553, 64
        %v1565 = vpop.permute.xlu0 %1564
        %1566 = vrot.lane.b32.xlu0 %v1555, 64
        %v1567 = vpop.permute.xlu0 %1566
        %1568 = vrot.lane.b32.xlu0 %v1557, 64
        %v1569 = vpop.permute.xlu0 %1568
        %1570 = vrot.lane.b32.xlu0 %v1559, 64
        %v1571 = vpop.permute.xlu0 %1570
        %1572 = vrot.lane.b32.xlu0 %v1561, 64
        %v1573 = vpop.permute.xlu0 %1572
        %1574 = vrot.lane.b32.xlu0 %v1563, 64
        %v1575 = vpop.permute.xlu0 %1574
        %vm1582 = vcmask 1045504
        %v1583 = vrot.slane %v1545, 2
        %v1584 = vrot.slane %v1529, 2
        %v1585 = vsel %vm1582, %v1583, %v1584
        %v1586 = vrot.slane %v1531, 2
        %v1587 = vsel %vm1582, %v1584, %v1586
        %v1588 = vrot.slane %v1533, 2
        %v1589 = vsel %vm1582, %v1586, %v1588
        %v1590 = vrot.slane %v1535, 2
        %v1591 = vsel %vm1582, %v1588, %v1590
        %v1592 = vrot.slane %v1537, 2
        %v1593 = vsel %vm1582, %v1590, %v1592
        %v1594 = vrot.slane %v1547, 2
        %v1595 = vsel %vm1582, %v1592, %v1594
        %vm1602 = vcmask 1044480
        %v1603 = vrot.slane %v1545, 3
        %v1604 = vrot.slane %v1529, 3
        %v1605 = vsel %vm1602, %v1603, %v1604
        %v1606 = vrot.slane %v1531, 3
        %v1607 = vsel %vm1602, %v1604, %v1606
        %v1608 = vrot.slane %v1533, 3
        %v1609 = vsel %vm1602, %v1606, %v1608
        %v1610 = vrot.slane %v1535, 3
        %v1611 = vsel %vm1602, %v1608, %v1610
        %v1612 = vrot.slane %v1537, 3
        %v1613 = vsel %vm1602, %v1610, %v1612
        %v1614 = vrot.slane %v1547, 3
        %v1615 = vsel %vm1602, %v1612, %v1614
        %1616 = vrot.lane.b32.xlu0 %v1605, 64
        %v1617 = vpop.permute.xlu0 %1616
        %1618 = vrot.lane.b32.xlu0 %v1607, 64
        %v1619 = vpop.permute.xlu0 %1618
        %1620 = vrot.lane.b32.xlu0 %v1609, 64
        %v1621 = vpop.permute.xlu0 %1620
        %1622 = vrot.lane.b32.xlu0 %v1611, 64
        %v1623 = vpop.permute.xlu0 %1622
        %1624 = vrot.lane.b32.xlu0 %v1613, 64
        %v1625 = vpop.permute.xlu0 %1624
        %1626 = vrot.lane.b32.xlu0 %v1615, 64
        %v1627 = vpop.permute.xlu0 %1626
        %v1634 = vrot.slane %v1545, 4
        %v1635 = vrot.slane %v1529, 4
        %v1636 = vsel %vm1526, %v1634, %v1635
        %v1637 = vrot.slane %v1531, 4
        %v1638 = vsel %vm1526, %v1635, %v1637
        %v1639 = vrot.slane %v1533, 4
        %v1640 = vsel %vm1526, %v1637, %v1639
        %v1641 = vrot.slane %v1535, 4
        %v1642 = vsel %vm1526, %v1639, %v1641
        %v1643 = vrot.slane %v1537, 4
        %v1644 = vsel %vm1526, %v1641, %v1643
        %v1645 = vrot.slane %v1547, 4
        %v1646 = vsel %vm1526, %v1643, %v1645
        %v1653 = vrot.slane %v1545, 5
        %v1654 = vrot.slane %v1529, 5
        %v1655 = vsel %vm1546, %v1653, %v1654
        %v1656 = vrot.slane %v1531, 5
        %v1657 = vsel %vm1546, %v1654, %v1656
        %v1658 = vrot.slane %v1533, 5
        %v1659 = vsel %vm1546, %v1656, %v1658
        %v1660 = vrot.slane %v1535, 5
        %v1661 = vsel %vm1546, %v1658, %v1660
        %v1662 = vrot.slane %v1537, 5
        %v1663 = vsel %vm1546, %v1660, %v1662
        %v1664 = vrot.slane %v1547, 5
        %v1665 = vsel %vm1546, %v1662, %v1664
        %1666 = vrot.lane.b32.xlu0 %v1655, 64
        %v1667 = vpop.permute.xlu0 %1666
        %1668 = vrot.lane.b32.xlu0 %v1657, 64
        %v1669 = vpop.permute.xlu0 %1668
        %1670 = vrot.lane.b32.xlu0 %v1659, 64
        %v1671 = vpop.permute.xlu0 %1670
        %1672 = vrot.lane.b32.xlu0 %v1661, 64
        %v1673 = vpop.permute.xlu0 %1672
        %1674 = vrot.lane.b32.xlu0 %v1663, 64
        %v1675 = vpop.permute.xlu0 %1674
        %1676 = vrot.lane.b32.xlu0 %v1665, 64
        %v1677 = vpop.permute.xlu0 %1676
        %vm1684 = vcmask 1041408
        %v1685 = vrot.slane %v1545, 6
        %v1686 = vrot.slane %v1529, 6
        %v1687 = vsel %vm1684, %v1685, %v1686
        %v1688 = vrot.slane %v1531, 6
        %v1689 = vsel %vm1684, %v1686, %v1688
        %v1690 = vrot.slane %v1533, 6
        %v1691 = vsel %vm1684, %v1688, %v1690
        %v1692 = vrot.slane %v1535, 6
        %v1693 = vsel %vm1684, %v1690, %v1692
        %v1694 = vrot.slane %v1537, 6
        %v1695 = vsel %vm1684, %v1692, %v1694
        %v1696 = vrot.slane %v1547, 6
        %v1697 = vsel %vm1684, %v1694, %v1696
        %vm1704 = vcmask 1040384
        %v1705 = vrot.slane %v1545, 7
        %v1706 = vrot.slane %v1529, 7
        %v1707 = vsel %vm1704, %v1705, %v1706
        %v1708 = vrot.slane %v1531, 7
        %v1709 = vsel %vm1704, %v1706, %v1708
        %v1710 = vrot.slane %v1533, 7
        %v1711 = vsel %vm1704, %v1708, %v1710
        %v1712 = vrot.slane %v1535, 7
        %v1713 = vsel %vm1704, %v1710, %v1712
        %v1714 = vrot.slane %v1537, 7
        %v1715 = vsel %vm1704, %v1712, %v1714
        %v1716 = vrot.slane %v1547, 7
        %v1717 = vsel %vm1704, %v1714, %v1716
        %1718 = vrot.lane.b32.xlu0 %v1707, 64
        %v1719 = vpop.permute.xlu0 %1718
        %1720 = vrot.lane.b32.xlu0 %v1709, 64
        %v1721 = vpop.permute.xlu0 %1720
        %1722 = vrot.lane.b32.xlu0 %v1711, 64
        %v1723 = vpop.permute.xlu0 %1722
        %1724 = vrot.lane.b32.xlu0 %v1713, 64
        %v1725 = vpop.permute.xlu0 %1724
        %1726 = vrot.lane.b32.xlu0 %v1715, 64
        %v1727 = vpop.permute.xlu0 %1726
        %1728 = vrot.lane.b32.xlu0 %v1717, 64
        %v1729 = vpop.permute.xlu0 %1728
        %v1736 = vsel %vm799, %v1545, %v1565
        %v1737 = vsel %vm799, %v1529, %v1567
        %v1738 = vsel %vm799, %v1531, %v1569
        %v1739 = vsel %vm799, %v1533, %v1571
        %v1740 = vsel %vm799, %v1535, %v1573
        %v1741 = vsel %vm799, %v1537, %v1575
        %v1742 = vsel %vm799, %v1585, %v1617
        %v1743 = vsel %vm799, %v1587, %v1619
        %v1744 = vsel %vm799, %v1589, %v1621
        %v1745 = vsel %vm799, %v1591, %v1623
        %v1746 = vsel %vm799, %v1593, %v1625
        %v1747 = vsel %vm799, %v1595, %v1627
        %v1748 = vsel %vm799, %v1636, %v1667
        %v1749 = vsel %vm799, %v1638, %v1669
        %v1750 = vsel %vm799, %v1640, %v1671
        %v1751 = vsel %vm799, %v1642, %v1673
        %v1752 = vsel %vm799, %v1644, %v1675
        %v1753 = vsel %vm799, %v1646, %v1677
        %v1754 = vsel %vm799, %v1687, %v1719
        %v1755 = vsel %vm799, %v1689, %v1721
        %v1756 = vsel %vm799, %v1691, %v1723
        %v1757 = vsel %vm799, %v1693, %v1725
        %v1758 = vsel %vm799, %v1695, %v1727
        %v1759 = vsel %vm799, %v1697, %v1729
        %v1760 = vpack.c.bf16 %v1737, %v1736
        %v1761 = vpack.c.bf16 %v1743, %v1742
        %v1762 = vpack.c.bf16 %v1749, %v1748
        %v1763 = vpack.c.bf16 %v1755, %v1754
        %v1764 = vpack.c.bf16 %v1739, %v1738
        %v1765 = vpack.c.bf16 %v1745, %v1744
        %v1766 = vpack.c.bf16 %v1751, %v1750
        %v1767 = vpack.c.bf16 %v1757, %v1756
        %v1768 = vpack.c.bf16 %v1741, %v1740
        %v1769 = vpack.c.bf16 %v1747, %v1746
        %v1770 = vpack.c.bf16 %v1753, %v1752
        %v1771 = vpack.c.bf16 %v1759, %v1758
        %v1772 = vld [vmem:[%s4] sm:$0xf]
        %v1773 = vld [vmem:[%s4 + $0x4] sm:$0xf]
        %v1774 = vld [vmem:[%s4 + $0x8] sm:$0xf]
        %v1775 = vld [vmem:[%s4 + $0xc] sm:$0xf]
        %v1776 = vld [vmem:[%s4 + $0x10] sm:$0xf]
        %v1777 = vld [vmem:[%s4 + $0x14] sm:$0xf]
        %v1778 = vld [vmem:[%s4 + $0x18] sm:$0xf]
        %v1779 = vld [vmem:[%s4 + $0x1c] sm:$0xf]
        %v1780 = vld [vmem:[%s4 + $0x20] sm:$0xf]
        %v1781 = vld [vmem:[%s4 + $0x24] sm:$0xf]
        %v1782 = vld [vmem:[%s4 + $0x28] sm:$0xf]
        %v1783 = vld [vmem:[%s4 + $0x2c] sm:$0xf]
        %v1784 = vld [vmem:[%s4 + $0x30] sm:$0xf]
        %v1785 = vld [vmem:[%s4 + $0x34] sm:$0xf]
        %v1786 = vld [vmem:[%s4 + $0x38] sm:$0xf]
        %v1787 = vld [vmem:[%s4 + $0x3c] sm:$0xf]
        %v1788 = vld [vmem:[%s4 + $0x40] sm:$0xf]
        %v1789 = vld [vmem:[%s4 + $0x44] sm:$0xf]
        %v1790 = vld [vmem:[%s4 + $0x48] sm:$0xf]
        %v1791 = vld [vmem:[%s4 + $0x4c] sm:$0xf]
        %v1792 = vld [vmem:[%s4 + $0x50] sm:$0xf]
        %v1793 = vld [vmem:[%s4 + $0x54] sm:$0xf]
        %v1794 = vld [vmem:[%s4 + $0x58] sm:$0xf]
        %v1795 = vld [vmem:[%s4 + $0x5c] sm:$0xf]
        %v1796 = vld [vmem:[%s4 + $0x60] sm:$0xf]
        %v1797 = vld [vmem:[%s4 + $0x64] sm:$0xf]
        %v1798 = vld [vmem:[%s4 + $0x68] sm:$0xf]
        %v1799 = vld [vmem:[%s4 + $0x6c] sm:$0xf]
        %v1800 = vld [vmem:[%s4 + $0x70] sm:$0xf]
        %v1801 = vld [vmem:[%s4 + $0x74] sm:$0xf]
        %v1802 = vld [vmem:[%s4 + $0x78] sm:$0xf]
        %v1803 = vld [vmem:[%s4 + $0x7c] sm:$0xf]
        %v1804 = vld [vmem:[%s4 + $0x80] sm:$0xf]
        %v1805 = vld [vmem:[%s4 + $0x84] sm:$0xf]
        %v1806 = vld [vmem:[%s4 + $0x88] sm:$0xf]
        %v1807 = vld [vmem:[%s4 + $0x8c] sm:$0xf]
        %v1808 = vld [vmem:[%s4 + $0x90] sm:$0xf]
        %v1809 = vld [vmem:[%s4 + $0x94] sm:$0xf]
        %v1810 = vld [vmem:[%s4 + $0x98] sm:$0xf]
        %v1811 = vld [vmem:[%s4 + $0x9c] sm:$0xf]
        %v1812 = vld [vmem:[%s4 + $0xa0] sm:$0xf]
        %v1813 = vld [vmem:[%s4 + $0xa4] sm:$0xf]
        %v1814 = vld [vmem:[%s4 + $0xa8] sm:$0xf]
        %v1815 = vld [vmem:[%s4 + $0xac] sm:$0xf]
        %v1816 = vld [vmem:[%s4 + $0xb0] sm:$0xf]
        %v1817 = vld [vmem:[%s4 + $0xb4] sm:$0xf]
        %v1818 = vld [vmem:[%s4 + $0xb8] sm:$0xf]
        %v1819 = vld [vmem:[%s4 + $0xbc] sm:$0xf]
        %v1820 = vld [vmem:[%s4 + $0xc0] sm:$0xf]
        %v1821 = vld [vmem:[%s4 + $0xc4] sm:$0xf]
        %v1822 = vld [vmem:[%s4 + $0xc8] sm:$0xf]
        %v1823 = vld [vmem:[%s4 + $0xcc] sm:$0xf]
        %v1824 = vld [vmem:[%s4 + $0xd0] sm:$0xf]
        %v1825 = vld [vmem:[%s4 + $0xd4] sm:$0xf]
        %v1826 = vld [vmem:[%s4 + $0xd8] sm:$0xf]
        %v1827 = vld [vmem:[%s4 + $0xdc] sm:$0xf]
        %v1828 = vld [vmem:[%s4 + $0xe0] sm:$0xf]
        %v1829 = vld [vmem:[%s4 + $0xe4] sm:$0xf]
        %v1830 = vld [vmem:[%s4 + $0xe8] sm:$0xf]
        %v1831 = vld [vmem:[%s4 + $0xec] sm:$0xf]
        %v1832 = vld [vmem:[%s4 + $0xf0] sm:$0xf]
        %v1833 = vld [vmem:[%s4 + $0xf4] sm:$0xf]
        %v1834 = vld [vmem:[%s4 + $0xf8] sm:$0xf]
        %v1835 = vld [vmem:[%s4 + $0xfc] sm:$0xf]
        %v1837 = vlaneseq
        %v1838 = vshrl.u32 %v1837, 7
        %v1839 = vsub.s32 0, %v1838
        %v1840 = vrot.slane %v1519, %v1839
        %v1906 = vunpack.c.l.b16 %v1772
        %v1907 = vunpack.c.l.b16 %v1773
        %v1908 = vunpack.c.l.b16 %v1774
        %v1909 = vunpack.c.l.b16 %v1775
        %v1910 = vunpack.c.l.b16 %v1776
        %v1911 = vunpack.c.l.b16 %v1777
        %v1912 = vunpack.c.l.b16 %v1778
        %v1913 = vunpack.c.l.b16 %v1779
        %v1914 = vunpack.c.l.b16 %v1780
        %v1915 = vunpack.c.l.b16 %v1781
        %v1916 = vunpack.c.l.b16 %v1782
        %v1917 = vunpack.c.l.b16 %v1783
        %v1918 = vunpack.c.l.b16 %v1784
        %v1919 = vunpack.c.l.b16 %v1785
        %v1920 = vunpack.c.l.b16 %v1786
        %v1921 = vunpack.c.l.b16 %v1787
        %v1922 = vunpack.c.l.b16 %v1788
        %v1923 = vunpack.c.l.b16 %v1789
        %v1924 = vunpack.c.l.b16 %v1790
        %v1925 = vunpack.c.l.b16 %v1791
        %v1926 = vunpack.c.l.b16 %v1792
        %v1927 = vunpack.c.l.b16 %v1793
        %v1928 = vunpack.c.l.b16 %v1794
        %v1929 = vunpack.c.l.b16 %v1795
        %v1930 = vunpack.c.l.b16 %v1796
        %v1931 = vunpack.c.l.b16 %v1797
        %v1932 = vunpack.c.l.b16 %v1798
        %v1933 = vunpack.c.l.b16 %v1799
        %v1934 = vunpack.c.l.b16 %v1800
        %v1935 = vunpack.c.l.b16 %v1801
        %v1936 = vunpack.c.l.b16 %v1802
        %v1937 = vunpack.c.l.b16 %v1803
        %v1938 = vunpack.c.l.b16 %v1804
        %v1939 = vunpack.c.l.b16 %v1805
        %v1940 = vunpack.c.l.b16 %v1806
        %v1941 = vunpack.c.l.b16 %v1807
        %v1942 = vunpack.c.l.b16 %v1808
        %v1943 = vunpack.c.l.b16 %v1809
        %v1944 = vunpack.c.l.b16 %v1810
        %v1945 = vunpack.c.l.b16 %v1811
        %v1946 = vunpack.c.l.b16 %v1812
        %v1947 = vunpack.c.l.b16 %v1813
        %v1948 = vunpack.c.l.b16 %v1814
        %v1949 = vunpack.c.l.b16 %v1815
        %v1950 = vunpack.c.l.b16 %v1816
        %v1951 = vunpack.c.l.b16 %v1817
        %v1952 = vunpack.c.l.b16 %v1818
        %v1953 = vunpack.c.l.b16 %v1819
        %v1954 = vunpack.c.l.b16 %v1820
        %v1955 = vunpack.c.l.b16 %v1821
        %v1956 = vunpack.c.l.b16 %v1822
        %v1957 = vunpack.c.l.b16 %v1823
        %v1958 = vunpack.c.l.b16 %v1824
        %v1959 = vunpack.c.l.b16 %v1825
        %v1960 = vunpack.c.l.b16 %v1826
        %v1961 = vunpack.c.l.b16 %v1827
        %v1962 = vunpack.c.l.b16 %v1828
        %v1963 = vunpack.c.l.b16 %v1829
        %v1964 = vunpack.c.l.b16 %v1830
        %v1965 = vunpack.c.l.b16 %v1831
        %v1966 = vunpack.c.l.b16 %v1832
        %v1967 = vunpack.c.l.b16 %v1833
        %v1968 = vunpack.c.l.b16 %v1834
        %v1969 = vunpack.c.l.b16 %v1835
        %v1970 = vpack.c.b16 %v1907, %v1906
        %v1971 = vpack.c.b16 %v1909, %v1908
        %v1972 = vpack.c.b16 %v1911, %v1910
        %v1973 = vpack.c.b16 %v1913, %v1912
        %v1974 = vpack.c.b16 %v1915, %v1914
        %v1975 = vpack.c.b16 %v1917, %v1916
        %v1976 = vpack.c.b16 %v1919, %v1918
        %v1977 = vpack.c.b16 %v1921, %v1920
        %v1978 = vpack.c.b16 %v1923, %v1922
        %v1979 = vpack.c.b16 %v1925, %v1924
        %v1980 = vpack.c.b16 %v1927, %v1926
        %v1981 = vpack.c.b16 %v1929, %v1928
        %v1982 = vpack.c.b16 %v1931, %v1930
        %v1983 = vpack.c.b16 %v1933, %v1932
        %v1984 = vpack.c.b16 %v1935, %v1934
        %v1985 = vpack.c.b16 %v1937, %v1936
        %v1986 = vpack.c.b16 %v1939, %v1938
        %v1987 = vpack.c.b16 %v1941, %v1940
        %v1988 = vpack.c.b16 %v1943, %v1942
        %v1989 = vpack.c.b16 %v1945, %v1944
        %v1990 = vpack.c.b16 %v1947, %v1946
        %v1991 = vpack.c.b16 %v1949, %v1948
        %v1992 = vpack.c.b16 %v1951, %v1950
        %v1993 = vpack.c.b16 %v1953, %v1952
        %v1994 = vpack.c.b16 %v1955, %v1954
        %v1995 = vpack.c.b16 %v1957, %v1956
        %v1996 = vpack.c.b16 %v1959, %v1958
        %v1997 = vpack.c.b16 %v1961, %v1960
        %v1998 = vpack.c.b16 %v1963, %v1962
        %v1999 = vpack.c.b16 %v1965, %v1964
        %v2000 = vpack.c.b16 %v1967, %v1966
        %v2001 = vpack.c.b16 %v1969, %v1968
        %2034 = vmatprep.subr.bf16.mxu0 0
        %2035 = vmatpush1.bf16.msra.mxu0 %v1970
        %2036 = vmatprep.subr.bf16.mxu0 0
        %2037 = vmatpush1.bf16.msra.mxu0 %v1971
        %2038 = vmatprep.subr.bf16.mxu0 0
        %2039 = vmatpush1.bf16.msra.mxu0 %v1972
        %2040 = vmatprep.subr.bf16.mxu0 0
        %2041 = vmatpush1.bf16.msra.mxu0 %v1973
        %2042 = vmatprep.subr.bf16.mxu0 0
        %2043 = vmatpush1.bf16.msra.mxu0 %v1974
        %2044 = vmatprep.subr.bf16.mxu0 0
        %2045 = vmatpush1.bf16.msra.mxu0 %v1975
        %2046 = vmatprep.subr.bf16.mxu0 0
        %2047 = vmatpush1.bf16.msra.mxu0 %v1976
        %2048 = vmatprep.subr.bf16.mxu0 0
        %2049 = vmatpush1.bf16.msra.mxu0 %v1977
        %2050 = vmatprep.subr.bf16.mxu0 0
        %2051 = vmatpush1.bf16.msra.mxu0 %v1978
        %2052 = vmatprep.subr.bf16.mxu0 0
        %2053 = vmatpush1.bf16.msra.mxu0 %v1979
        %2054 = vmatprep.subr.bf16.mxu0 0
        %2055 = vmatpush1.bf16.msra.mxu0 %v1980
        %2056 = vmatprep.subr.bf16.mxu0 0
        %2057 = vmatpush1.bf16.msra.mxu0 %v1981
        %2058 = vmatprep.subr.bf16.mxu0 0
        %2059 = vmatpush1.bf16.msra.mxu0 %v1982
        %2060 = vmatprep.subr.bf16.mxu0 0
        %2061 = vmatpush1.bf16.msra.mxu0 %v1983
        %2062 = vmatprep.subr.bf16.mxu0 0
        %2063 = vmatpush1.bf16.msra.mxu0 %v1984
        %2064 = vmatprep.subr.bf16.mxu0 0
        %2065 = vmatpush1.bf16.msra.mxu0 %v1985
        %2066 = vmatprep.mubr.bf16.mxu0 %v1761
        %2067 = vmatmul.mubr.bf16.gmra.mrb[0].mxu0 %v1760
        %v2068 = vpop.f32.mrb[0].mxu0
        %v2069 = vadd.f32 %v1840, %v2068
        %v2070 = vpop.f32.mrb[0].mxu0
        %v2071 = vpop.f32.mrb[0].mxu0
        %v2072 = vadd.f32 %v1840, %v2071
        %v2073 = vpop.f32.mrb[0].mxu0
        %2074 = vmatprep.mubr.bf16.mxu0 %v1765
        %2075 = vmatmul.mubr.bf16.gmra.mrb[0].mxu0 %v1764
        %v2076 = vpop.f32.mrb[0].mxu0
        %v2077 = vadd.f32 %v1840, %v2076
        %v2078 = vpop.f32.mrb[0].mxu0
        %v2079 = vpop.f32.mrb[0].mxu0
        %v2080 = vadd.f32 %v1840, %v2079
        %v2081 = vpop.f32.mrb[0].mxu0
        %2082 = vmatprep.mubr.bf16.mxu0 %v1769
        %2083 = vmatmul.mubr.bf16.gmra.mrb[0].mxu0 %v1768
        %v2084 = vpop.f32.mrb[0].mxu0
        %v2085 = vadd.f32 %v1840, %v2084
        %v2086 = vpop.f32.mrb[0].mxu0
        %v2087 = vpop.f32.mrb[0].mxu0
        %v2088 = vadd.f32 %v1840, %v2087
        %v2089 = vpop.f32.mrb[0].mxu0
        %2090 = vdwg.mxu0
        %2091 = vmatprep.subr.bf16.mxu0 0
        %2092 = vmatpush1.bf16.msra.mxu0 %v1986
        %2093 = vmatprep.subr.bf16.mxu0 0
        %2094 = vmatpush1.bf16.msra.mxu0 %v1987
        %2095 = vmatprep.subr.bf16.mxu0 0
        %2096 = vmatpush1.bf16.msra.mxu0 %v1988
        %2097 = vmatprep.subr.bf16.mxu0 0
        %2098 = vmatpush1.bf16.msra.mxu0 %v1989
        %2099 = vmatprep.subr.bf16.mxu0 0
        %2100 = vmatpush1.bf16.msra.mxu0 %v1990
        %2101 = vmatprep.subr.bf16.mxu0 0
        %2102 = vmatpush1.bf16.msra.mxu0 %v1991
        %2103 = vmatprep.subr.bf16.mxu0 0
        %2104 = vmatpush1.bf16.msra.mxu0 %v1992
        %2105 = vmatprep.subr.bf16.mxu0 0
        %2106 = vmatpush1.bf16.msra.mxu0 %v1993
        %2107 = vmatprep.subr.bf16.mxu0 0
        %2108 = vmatpush1.bf16.msra.mxu0 %v1994
        %2109 = vmatprep.subr.bf16.mxu0 0
        %2110 = vmatpush1.bf16.msra.mxu0 %v1995
        %2111 = vmatprep.subr.bf16.mxu0 0
        %2112 = vmatpush1.bf16.msra.mxu0 %v1996
        %2113 = vmatprep.subr.bf16.mxu0 0
        %2114 = vmatpush1.bf16.msra.mxu0 %v1997
        %2115 = vmatprep.subr.bf16.mxu0 0
        %2116 = vmatpush1.bf16.msra.mxu0 %v1998
        %2117 = vmatprep.subr.bf16.mxu0 0
        %2118 = vmatpush1.bf16.msra.mxu0 %v1999
        %2119 = vmatprep.subr.bf16.mxu0 0
        %2120 = vmatpush1.bf16.msra.mxu0 %v2000
        %2121 = vmatprep.subr.bf16.mxu0 0
        %2122 = vmatpush1.bf16.msra.mxu0 %v2001
        %2123 = vmatprep.mubr.bf16.mxu0 %v1763
        %2124 = vmatmul.mubr.bf16.gmra.mrb[0].mxu0 %v1762
        %v2125 = vpop.f32.mrb[0].mxu0
        %v2126 = vadd.f32 %v2069, %v2125
        %v2127 = vpop.f32.mrb[0].mxu0
        %v2128 = vpop.f32.mrb[0].mxu0
        %v2129 = vadd.f32 %v2072, %v2128
        %v2130 = vpop.f32.mrb[0].mxu0
        %2131 = vmatprep.mubr.bf16.mxu0 %v1767
        %2132 = vmatmul.mubr.bf16.gmra.mrb[0].mxu0 %v1766
        %v2133 = vpop.f32.mrb[0].mxu0
        %v2134 = vadd.f32 %v2077, %v2133
        %v2135 = vpop.f32.mrb[0].mxu0
        %v2136 = vpop.f32.mrb[0].mxu0
        %v2137 = vadd.f32 %v2080, %v2136
        %v2138 = vpop.f32.mrb[0].mxu0
        %2139 = vmatprep.mubr.bf16.mxu0 %v1771
        %2140 = vmatmul.mubr.bf16.gmra.mrb[0].mxu0 %v1770
        %v2141 = vpop.f32.mrb[0].mxu0
        %v2142 = vadd.f32 %v2085, %v2141
        %v2143 = vpop.f32.mrb[0].mxu0
        %v2144 = vpop.f32.mrb[0].mxu0
        %v2145 = vadd.f32 %v2088, %v2144
        %v2146 = vpop.f32.mrb[0].mxu0
        %2147 = vdwg.mxu0
        %vm2148 = vcmp.ge.f32.partialorder %v2126, 0.0
        %vm2149 = vcmp.ge.f32.partialorder %v2129, 0.0
        %vm2150 = vcmp.ge.f32.partialorder %v2134, 0.0
        %vm2151 = vcmp.ge.f32.partialorder %v2137, 0.0
        %vm2152 = vcmp.ge.f32.partialorder %v2142, 0.0
        %vm2153 = vcmp.ge.f32.partialorder %v2145, 0.0
        %v2154 = vmul.f32 %v2126, 0.01
        %v2155 = vmul.f32 %v2129, 0.01
        %v2156 = vmul.f32 %v2134, 0.01
        %v2157 = vmul.f32 %v2137, 0.01
        %v2158 = vmul.f32 %v2142, 0.01
        %v2159 = vmul.f32 %v2145, 0.01
        %v2160 = vsel %vm2148, %v2126, %v2154
        %v2161 = vsel %vm2149, %v2129, %v2155
        %v2162 = vsel %vm2150, %v2134, %v2156
        %v2163 = vsel %vm2151, %v2137, %v2157
        %v2164 = vsel %vm2152, %v2142, %v2158
        %v2165 = vsel %vm2153, %v2145, %v2159
        %v2166 = vld [vmem:[%s7] sm:$0x1]
        %v2173 = vrot.slane %v2160, 4
        %v2174 = vrot.slane %v2161, 4
        %v2175 = vsel %vm1526, %v2173, %v2174
        %v2176 = vrot.slane %v2162, 4
        %v2177 = vsel %vm1526, %v2174, %v2176
        %v2178 = vrot.slane %v2163, 4
        %v2179 = vsel %vm1526, %v2176, %v2178
        %v2180 = vrot.slane %v2164, 4
        %v2181 = vsel %vm1526, %v2178, %v2180
        %v2182 = vrot.slane %v2165, 4
        %v2183 = vsel %vm1526, %v2180, %v2182
        %v2191 = vsel %vm1526, 0.0, %v2173
        %v2192 = vsel %vm1526, %v2182, 0.0
        %v2195 = vrot.slane %v2191, 1
        %v2196 = vrot.slane %v2175, 1
        %v2197 = vsel %vm1550, %v2195, %v2196
        %v2198 = vrot.slane %v2177, 1
        %v2199 = vsel %vm1550, %v2196, %v2198
        %v2200 = vrot.slane %v2179, 1
        %v2201 = vsel %vm1550, %v2198, %v2200
        %v2202 = vrot.slane %v2181, 1
        %v2203 = vsel %vm1550, %v2200, %v2202
        %v2204 = vrot.slane %v2183, 1
        %v2205 = vsel %vm1550, %v2202, %v2204
        %v2206 = vrot.slane %v2192, 1
        %v2207 = vsel %vm1550, %v2204, %v2206
        %v2215 = vrot.slane %v2191, 2
        %v2216 = vrot.slane %v2175, 2
        %v2217 = vsel %vm1582, %v2215, %v2216
        %v2218 = vrot.slane %v2177, 2
        %v2219 = vsel %vm1582, %v2216, %v2218
        %v2220 = vrot.slane %v2179, 2
        %v2221 = vsel %vm1582, %v2218, %v2220
        %v2222 = vrot.slane %v2181, 2
        %v2223 = vsel %vm1582, %v2220, %v2222
        %v2224 = vrot.slane %v2183, 2
        %v2225 = vsel %vm1582, %v2222, %v2224
        %v2226 = vrot.slane %v2192, 2
        %v2227 = vsel %vm1582, %v2224, %v2226
        %v2235 = vrot.slane %v2191, 3
        %v2236 = vrot.slane %v2175, 3
        %v2237 = vsel %vm1602, %v2235, %v2236
        %v2238 = vrot.slane %v2177, 3
        %v2239 = vsel %vm1602, %v2236, %v2238
        %v2240 = vrot.slane %v2179, 3
        %v2241 = vsel %vm1602, %v2238, %v2240
        %v2242 = vrot.slane %v2181, 3
        %v2243 = vsel %vm1602, %v2240, %v2242
        %v2244 = vrot.slane %v2183, 3
        %v2245 = vsel %vm1602, %v2242, %v2244
        %v2246 = vrot.slane %v2192, 3
        %v2247 = vsel %vm1602, %v2244, %v2246
        %v2255 = vrot.slane %v2191, 4
        %v2256 = vrot.slane %v2175, 4
        %v2257 = vsel %vm1526, %v2255, %v2256
        %v2258 = vrot.slane %v2177, 4
        %v2259 = vsel %vm1526, %v2256, %v2258
        %v2260 = vrot.slane %v2179, 4
        %v2261 = vsel %vm1526, %v2258, %v2260
        %v2262 = vrot.slane %v2181, 4
        %v2263 = vsel %vm1526, %v2260, %v2262
        %v2264 = vrot.slane %v2183, 4
        %v2265 = vsel %vm1526, %v2262, %v2264
        %v2266 = vrot.slane %v2192, 4
        %v2267 = vsel %vm1526, %v2264, %v2266
        %v2275 = vrot.slane %v2191, 5
        %v2276 = vrot.slane %v2175, 5
        %v2277 = vsel %vm1546, %v2275, %v2276
        %v2278 = vrot.slane %v2177, 5
        %v2279 = vsel %vm1546, %v2276, %v2278
        %v2280 = vrot.slane %v2179, 5
        %v2281 = vsel %vm1546, %v2278, %v2280
        %v2282 = vrot.slane %v2181, 5
        %v2283 = vsel %vm1546, %v2280, %v2282
        %v2284 = vrot.slane %v2183, 5
        %v2285 = vsel %vm1546, %v2282, %v2284
        %v2286 = vrot.slane %v2192, 5
        %v2287 = vsel %vm1546, %v2284, %v2286
        %v2295 = vrot.slane %v2191, 6
        %v2296 = vrot.slane %v2175, 6
        %v2297 = vsel %vm1684, %v2295, %v2296
        %v2298 = vrot.slane %v2177, 6
        %v2299 = vsel %vm1684, %v2296, %v2298
        %v2300 = vrot.slane %v2179, 6
        %v2301 = vsel %vm1684, %v2298, %v2300
        %v2302 = vrot.slane %v2181, 6
        %v2303 = vsel %vm1684, %v2300, %v2302
        %v2304 = vrot.slane %v2183, 6
        %v2305 = vsel %vm1684, %v2302, %v2304
        %v2306 = vrot.slane %v2192, 6
        %v2307 = vsel %vm1684, %v2304, %v2306
        %v2315 = vrot.slane %v2191, 7
        %v2316 = vrot.slane %v2175, 7
        %v2317 = vsel %vm1704, %v2315, %v2316
        %v2318 = vrot.slane %v2177, 7
        %v2319 = vsel %vm1704, %v2316, %v2318
        %v2320 = vrot.slane %v2179, 7
        %v2321 = vsel %vm1704, %v2318, %v2320
        %v2322 = vrot.slane %v2181, 7
        %v2323 = vsel %vm1704, %v2320, %v2322
        %v2324 = vrot.slane %v2183, 7
        %v2325 = vsel %vm1704, %v2322, %v2324
        %v2326 = vrot.slane %v2192, 7
        %v2327 = vsel %vm1704, %v2324, %v2326
        %v2335 = vpack.c.bf16 %v2175, %v2191
        %v2336 = vpack.c.bf16 %v2199, %v2197
        %v2337 = vpack.c.bf16 %v2219, %v2217
        %v2338 = vpack.c.bf16 %v2239, %v2237
        %v2339 = vpack.c.bf16 %v2259, %v2257
        %v2340 = vpack.c.bf16 %v2279, %v2277
        %v2341 = vpack.c.bf16 %v2299, %v2297
        %v2342 = vpack.c.bf16 %v2319, %v2317
        %v2343 = vpack.c.bf16 %v2179, %v2177
        %v2344 = vpack.c.bf16 %v2203, %v2201
        %v2345 = vpack.c.bf16 %v2223, %v2221
        %v2346 = vpack.c.bf16 %v2243, %v2241
        %v2347 = vpack.c.bf16 %v2263, %v2261
        %v2348 = vpack.c.bf16 %v2283, %v2281
        %v2349 = vpack.c.bf16 %v2303, %v2301
        %v2350 = vpack.c.bf16 %v2323, %v2321
        %v2351 = vpack.c.bf16 %v2183, %v2181
        %v2352 = vpack.c.bf16 %v2207, %v2205
        %v2353 = vpack.c.bf16 %v2227, %v2225
        %v2354 = vpack.c.bf16 %v2247, %v2245
        %v2355 = vpack.c.bf16 %v2267, %v2265
        %v2356 = vpack.c.bf16 %v2287, %v2285
        %v2357 = vpack.c.bf16 %v2307, %v2305
        %v2358 = vpack.c.bf16 %v2327, %v2325
        %v2359 = vpack.c.bf16 %v2192, %v2192
        %v2360 = vpack.c.bf16 %v2206, %v2206
        %v2361 = vpack.c.bf16 %v2226, %v2226
        %v2362 = vpack.c.bf16 %v2246, %v2246
        %v2363 = vpack.c.bf16 %v2266, %v2266
        %v2364 = vpack.c.bf16 %v2286, %v2286
        %v2365 = vpack.c.bf16 %v2306, %v2306
        %v2366 = vpack.c.bf16 %v2326, %v2326
        %v2367 = vld [vmem:[%s6] sm:$0xf]
        %v2368 = vld [vmem:[%s6 + $0x4] sm:$0xf]
        %v2369 = vld [vmem:[%s6 + $0x8] sm:$0xf]
        %v2370 = vld [vmem:[%s6 + $0xc] sm:$0xf]
        %v2371 = vld [vmem:[%s6 + $0x10] sm:$0xf]
        %v2372 = vld [vmem:[%s6 + $0x14] sm:$0xf]
        %v2373 = vld [vmem:[%s6 + $0x18] sm:$0xf]
        %v2374 = vld [vmem:[%s6 + $0x1c] sm:$0xf]
        %v2375 = vld [vmem:[%s6 + $0x20] sm:$0xf]
        %v2376 = vld [vmem:[%s6 + $0x24] sm:$0xf]
        %v2377 = vld [vmem:[%s6 + $0x28] sm:$0xf]
        %v2378 = vld [vmem:[%s6 + $0x2c] sm:$0xf]
        %v2379 = vld [vmem:[%s6 + $0x30] sm:$0xf]
        %v2380 = vld [vmem:[%s6 + $0x34] sm:$0xf]
        %v2381 = vld [vmem:[%s6 + $0x38] sm:$0xf]
        %v2382 = vld [vmem:[%s6 + $0x3c] sm:$0xf]
        %v2383 = vld [vmem:[%s6 + $0x40] sm:$0xf]
        %v2384 = vld [vmem:[%s6 + $0x44] sm:$0xf]
        %v2385 = vld [vmem:[%s6 + $0x48] sm:$0xf]
        %v2386 = vld [vmem:[%s6 + $0x4c] sm:$0xf]
        %v2387 = vld [vmem:[%s6 + $0x50] sm:$0xf]
        %v2388 = vld [vmem:[%s6 + $0x54] sm:$0xf]
        %v2389 = vld [vmem:[%s6 + $0x58] sm:$0xf]
        %v2390 = vld [vmem:[%s6 + $0x5c] sm:$0xf]
        %v2391 = vld [vmem:[%s6 + $0x60] sm:$0xf]
        %v2392 = vld [vmem:[%s6 + $0x64] sm:$0xf]
        %v2393 = vld [vmem:[%s6 + $0x68] sm:$0xf]
        %v2394 = vld [vmem:[%s6 + $0x6c] sm:$0xf]
        %v2395 = vld [vmem:[%s6 + $0x70] sm:$0xf]
        %v2396 = vld [vmem:[%s6 + $0x74] sm:$0xf]
        %v2397 = vld [vmem:[%s6 + $0x78] sm:$0xf]
        %v2398 = vld [vmem:[%s6 + $0x7c] sm:$0xf]
        %v2399 = vld [vmem:[%s6 + $0x80] sm:$0xf]
        %v2400 = vld [vmem:[%s6 + $0x84] sm:$0xf]
        %v2401 = vld [vmem:[%s6 + $0x88] sm:$0xf]
        %v2402 = vld [vmem:[%s6 + $0x8c] sm:$0xf]
        %v2403 = vld [vmem:[%s6 + $0x90] sm:$0xf]
        %v2404 = vld [vmem:[%s6 + $0x94] sm:$0xf]
        %v2405 = vld [vmem:[%s6 + $0x98] sm:$0xf]
        %v2406 = vld [vmem:[%s6 + $0x9c] sm:$0xf]
        %v2407 = vld [vmem:[%s6 + $0xa0] sm:$0xf]
        %v2408 = vld [vmem:[%s6 + $0xa4] sm:$0xf]
        %v2409 = vld [vmem:[%s6 + $0xa8] sm:$0xf]
        %v2410 = vld [vmem:[%s6 + $0xac] sm:$0xf]
        %v2411 = vld [vmem:[%s6 + $0xb0] sm:$0xf]
        %v2412 = vld [vmem:[%s6 + $0xb4] sm:$0xf]
        %v2413 = vld [vmem:[%s6 + $0xb8] sm:$0xf]
        %v2414 = vld [vmem:[%s6 + $0xbc] sm:$0xf]
        %v2415 = vld [vmem:[%s6 + $0xc0] sm:$0xf]
        %v2416 = vld [vmem:[%s6 + $0xc4] sm:$0xf]
        %v2417 = vld [vmem:[%s6 + $0xc8] sm:$0xf]
        %v2418 = vld [vmem:[%s6 + $0xcc] sm:$0xf]
        %v2419 = vld [vmem:[%s6 + $0xd0] sm:$0xf]
        %v2420 = vld [vmem:[%s6 + $0xd4] sm:$0xf]
        %v2421 = vld [vmem:[%s6 + $0xd8] sm:$0xf]
        %v2422 = vld [vmem:[%s6 + $0xdc] sm:$0xf]
        %v2423 = vld [vmem:[%s6 + $0xe0] sm:$0xf]
        %v2424 = vld [vmem:[%s6 + $0xe4] sm:$0xf]
        %v2425 = vld [vmem:[%s6 + $0xe8] sm:$0xf]
        %v2426 = vld [vmem:[%s6 + $0xec] sm:$0xf]
        %v2427 = vld [vmem:[%s6 + $0xf0] sm:$0xf]
        %v2428 = vld [vmem:[%s6 + $0xf4] sm:$0xf]
        %v2429 = vld [vmem:[%s6 + $0xf8] sm:$0xf]
        %v2430 = vld [vmem:[%s6 + $0xfc] sm:$0xf]
        %v2431 = vld [vmem:[%s6 + $0x100] sm:$0xf]
        %v2432 = vld [vmem:[%s6 + $0x104] sm:$0xf]
        %v2433 = vld [vmem:[%s6 + $0x108] sm:$0xf]
        %v2434 = vld [vmem:[%s6 + $0x10c] sm:$0xf]
        %v2435 = vld [vmem:[%s6 + $0x110] sm:$0xf]
        %v2436 = vld [vmem:[%s6 + $0x114] sm:$0xf]
        %v2437 = vld [vmem:[%s6 + $0x118] sm:$0xf]
        %v2438 = vld [vmem:[%s6 + $0x11c] sm:$0xf]
        %v2439 = vld [vmem:[%s6 + $0x120] sm:$0xf]
        %v2440 = vld [vmem:[%s6 + $0x124] sm:$0xf]
        %v2441 = vld [vmem:[%s6 + $0x128] sm:$0xf]
        %v2442 = vld [vmem:[%s6 + $0x12c] sm:$0xf]
        %v2443 = vld [vmem:[%s6 + $0x130] sm:$0xf]
        %v2444 = vld [vmem:[%s6 + $0x134] sm:$0xf]
        %v2445 = vld [vmem:[%s6 + $0x138] sm:$0xf]
        %v2446 = vld [vmem:[%s6 + $0x13c] sm:$0xf]
        %v2447 = vld [vmem:[%s6 + $0x140] sm:$0xf]
        %v2448 = vld [vmem:[%s6 + $0x144] sm:$0xf]
        %v2449 = vld [vmem:[%s6 + $0x148] sm:$0xf]
        %v2450 = vld [vmem:[%s6 + $0x14c] sm:$0xf]
        %v2451 = vld [vmem:[%s6 + $0x150] sm:$0xf]
        %v2452 = vld [vmem:[%s6 + $0x154] sm:$0xf]
        %v2453 = vld [vmem:[%s6 + $0x158] sm:$0xf]
        %v2454 = vld [vmem:[%s6 + $0x15c] sm:$0xf]
        %v2455 = vld [vmem:[%s6 + $0x160] sm:$0xf]
        %v2456 = vld [vmem:[%s6 + $0x164] sm:$0xf]
        %v2457 = vld [vmem:[%s6 + $0x168] sm:$0xf]
        %v2458 = vld [vmem:[%s6 + $0x16c] sm:$0xf]
        %v2459 = vld [vmem:[%s6 + $0x170] sm:$0xf]
        %v2460 = vld [vmem:[%s6 + $0x174] sm:$0xf]
        %v2461 = vld [vmem:[%s6 + $0x178] sm:$0xf]
        %v2462 = vld [vmem:[%s6 + $0x17c] sm:$0xf]
        %v2463 = vld [vmem:[%s6 + $0x180] sm:$0xf]
        %v2464 = vld [vmem:[%s6 + $0x184] sm:$0xf]
        %v2465 = vld [vmem:[%s6 + $0x188] sm:$0xf]
        %v2466 = vld [vmem:[%s6 + $0x18c] sm:$0xf]
        %v2467 = vld [vmem:[%s6 + $0x190] sm:$0xf]
        %v2468 = vld [vmem:[%s6 + $0x194] sm:$0xf]
        %v2469 = vld [vmem:[%s6 + $0x198] sm:$0xf]
        %v2470 = vld [vmem:[%s6 + $0x19c] sm:$0xf]
        %v2471 = vld [vmem:[%s6 + $0x1a0] sm:$0xf]
        %v2472 = vld [vmem:[%s6 + $0x1a4] sm:$0xf]
        %v2473 = vld [vmem:[%s6 + $0x1a8] sm:$0xf]
        %v2474 = vld [vmem:[%s6 + $0x1ac] sm:$0xf]
        %v2475 = vld [vmem:[%s6 + $0x1b0] sm:$0xf]
        %v2476 = vld [vmem:[%s6 + $0x1b4] sm:$0xf]
        %v2477 = vld [vmem:[%s6 + $0x1b8] sm:$0xf]
        %v2478 = vld [vmem:[%s6 + $0x1bc] sm:$0xf]
        %v2479 = vld [vmem:[%s6 + $0x1c0] sm:$0xf]
        %v2480 = vld [vmem:[%s6 + $0x1c4] sm:$0xf]
        %v2481 = vld [vmem:[%s6 + $0x1c8] sm:$0xf]
        %v2482 = vld [vmem:[%s6 + $0x1cc] sm:$0xf]
        %v2483 = vld [vmem:[%s6 + $0x1d0] sm:$0xf]
        %v2484 = vld [vmem:[%s6 + $0x1d4] sm:$0xf]
        %v2485 = vld [vmem:[%s6 + $0x1d8] sm:$0xf]
        %v2486 = vld [vmem:[%s6 + $0x1dc] sm:$0xf]
        %v2487 = vld [vmem:[%s6 + $0x1e0] sm:$0xf]
        %v2488 = vld [vmem:[%s6 + $0x1e4] sm:$0xf]
        %v2489 = vld [vmem:[%s6 + $0x1e8] sm:$0xf]
        %v2490 = vld [vmem:[%s6 + $0x1ec] sm:$0xf]
        %v2491 = vld [vmem:[%s6 + $0x1f0] sm:$0xf]
        %v2492 = vld [vmem:[%s6 + $0x1f4] sm:$0xf]
        %v2493 = vld [vmem:[%s6 + $0x1f8] sm:$0xf]
        %v2494 = vld [vmem:[%s6 + $0x1fc] sm:$0xf]
        %v2496 = vlaneseq
        %v2497 = vshrl.u32 %v2496, 7
        %v2498 = vsub.s32 0, %v2497
        %v2499 = vrot.slane %v2166, %v2498
        %v2629 = vunpack.c.l.b16 %v2367
        %v2630 = vunpack.c.l.b16 %v2368
        %v2631 = vunpack.c.l.b16 %v2369
        %v2632 = vunpack.c.l.b16 %v2370
        %v2633 = vunpack.c.l.b16 %v2371
        %v2634 = vunpack.c.l.b16 %v2372
        %v2635 = vunpack.c.l.b16 %v2373
        %v2636 = vunpack.c.l.b16 %v2374
        %v2637 = vunpack.c.l.b16 %v2375
        %v2638 = vunpack.c.l.b16 %v2376
        %v2639 = vunpack.c.l.b16 %v2377
        %v2640 = vunpack.c.l.b16 %v2378
        %v2641 = vunpack.c.l.b16 %v2379
        %v2642 = vunpack.c.l.b16 %v2380
        %v2643 = vunpack.c.l.b16 %v2381
        %v2644 = vunpack.c.l.b16 %v2382
        %v2645 = vunpack.c.l.b16 %v2383
        %v2646 = vunpack.c.l.b16 %v2384
        %v2647 = vunpack.c.l.b16 %v2385
        %v2648 = vunpack.c.l.b16 %v2386
        %v2649 = vunpack.c.l.b16 %v2387
        %v2650 = vunpack.c.l.b16 %v2388
        %v2651 = vunpack.c.l.b16 %v2389
        %v2652 = vunpack.c.l.b16 %v2390
        %v2653 = vunpack.c.l.b16 %v2391
        %v2654 = vunpack.c.l.b16 %v2392
        %v2655 = vunpack.c.l.b16 %v2393
        %v2656 = vunpack.c.l.b16 %v2394
        %v2657 = vunpack.c.l.b16 %v2395
        %v2658 = vunpack.c.l.b16 %v2396
        %v2659 = vunpack.c.l.b16 %v2397
        %v2660 = vunpack.c.l.b16 %v2398
        %v2661 = vunpack.c.l.b16 %v2399
        %v2662 = vunpack.c.l.b16 %v2400
        %v2663 = vunpack.c.l.b16 %v2401
        %v2664 = vunpack.c.l.b16 %v2402
        %v2665 = vunpack.c.l.b16 %v2403
        %v2666 = vunpack.c.l.b16 %v2404
        %v2667 = vunpack.c.l.b16 %v2405
        %v2668 = vunpack.c.l.b16 %v2406
        %v2669 = vunpack.c.l.b16 %v2407
        %v2670 = vunpack.c.l.b16 %v2408
        %v2671 = vunpack.c.l.b16 %v2409
        %v2672 = vunpack.c.l.b16 %v2410
        %v2673 = vunpack.c.l.b16 %v2411
        %v2674 = vunpack.c.l.b16 %v2412
        %v2675 = vunpack.c.l.b16 %v2413
        %v2676 = vunpack.c.l.b16 %v2414
        %v2677 = vunpack.c.l.b16 %v2415
        %v2678 = vunpack.c.l.b16 %v2416
        %v2679 = vunpack.c.l.b16 %v2417
        %v2680 = vunpack.c.l.b16 %v2418
        %v2681 = vunpack.c.l.b16 %v2419
        %v2682 = vunpack.c.l.b16 %v2420
        %v2683 = vunpack.c.l.b16 %v2421
        %v2684 = vunpack.c.l.b16 %v2422
        %v2685 = vunpack.c.l.b16 %v2423
        %v2686 = vunpack.c.l.b16 %v2424
        %v2687 = vunpack.c.l.b16 %v2425
        %v2688 = vunpack.c.l.b16 %v2426
        %v2689 = vunpack.c.l.b16 %v2427
        %v2690 = vunpack.c.l.b16 %v2428
        %v2691 = vunpack.c.l.b16 %v2429
        %v2692 = vunpack.c.l.b16 %v2430
        %v2693 = vunpack.c.l.b16 %v2431
        %v2694 = vunpack.c.l.b16 %v2432
        %v2695 = vunpack.c.l.b16 %v2433
        %v2696 = vunpack.c.l.b16 %v2434
        %v2697 = vunpack.c.l.b16 %v2435
        %v2698 = vunpack.c.l.b16 %v2436
        %v2699 = vunpack.c.l.b16 %v2437
        %v2700 = vunpack.c.l.b16 %v2438
        %v2701 = vunpack.c.l.b16 %v2439
        %v2702 = vunpack.c.l.b16 %v2440
        %v2703 = vunpack.c.l.b16 %v2441
        %v2704 = vunpack.c.l.b16 %v2442
        %v2705 = vunpack.c.l.b16 %v2443
        %v2706 = vunpack.c.l.b16 %v2444
        %v2707 = vunpack.c.l.b16 %v2445
        %v2708 = vunpack.c.l.b16 %v2446
        %v2709 = vunpack.c.l.b16 %v2447
        %v2710 = vunpack.c.l.b16 %v2448
        %v2711 = vunpack.c.l.b16 %v2449
        %v2712 = vunpack.c.l.b16 %v2450
        %v2713 = vunpack.c.l.b16 %v2451
        %v2714 = vunpack.c.l.b16 %v2452
        %v2715 = vunpack.c.l.b16 %v2453
        %v2716 = vunpack.c.l.b16 %v2454
        %v2717 = vunpack.c.l.b16 %v2455
        %v2718 = vunpack.c.l.b16 %v2456
        %v2719 = vunpack.c.l.b16 %v2457
        %v2720 = vunpack.c.l.b16 %v2458
        %v2721 = vunpack.c.l.b16 %v2459
        %v2722 = vunpack.c.l.b16 %v2460
        %v2723 = vunpack.c.l.b16 %v2461
        %v2724 = vunpack.c.l.b16 %v2462
        %v2725 = vunpack.c.l.b16 %v2463
        %v2726 = vunpack.c.l.b16 %v2464
        %v2727 = vunpack.c.l.b16 %v2465
        %v2728 = vunpack.c.l.b16 %v2466
        %v2729 = vunpack.c.l.b16 %v2467
        %v2730 = vunpack.c.l.b16 %v2468
        %v2731 = vunpack.c.l.b16 %v2469
        %v2732 = vunpack.c.l.b16 %v2470
        %v2733 = vunpack.c.l.b16 %v2471
        %v2734 = vunpack.c.l.b16 %v2472
        %v2735 = vunpack.c.l.b16 %v2473
        %v2736 = vunpack.c.l.b16 %v2474
        %v2737 = vunpack.c.l.b16 %v2475
        %v2738 = vunpack.c.l.b16 %v2476
        %v2739 = vunpack.c.l.b16 %v2477
        %v2740 = vunpack.c.l.b16 %v2478
        %v2741 = vunpack.c.l.b16 %v2479
        %v2742 = vunpack.c.l.b16 %v2480
        %v2743 = vunpack.c.l.b16 %v2481
        %v2744 = vunpack.c.l.b16 %v2482
        %v2745 = vunpack.c.l.b16 %v2483
        %v2746 = vunpack.c.l.b16 %v2484
        %v2747 = vunpack.c.l.b16 %v2485
        %v2748 = vunpack.c.l.b16 %v2486
        %v2749 = vunpack.c.l.b16 %v2487
        %v2750 = vunpack.c.l.b16 %v2488
        %v2751 = vunpack.c.l.b16 %v2489
        %v2752 = vunpack.c.l.b16 %v2490
        %v2753 = vunpack.c.l.b16 %v2491
        %v2754 = vunpack.c.l.b16 %v2492
        %v2755 = vunpack.c.l.b16 %v2493
        %v2756 = vunpack.c.l.b16 %v2494
        %v2757 = vpack.c.b16 %v2630, %v2629
        %v2758 = vpack.c.b16 %v2632, %v2631
        %v2759 = vpack.c.b16 %v2634, %v2633
        %v2760 = vpack.c.b16 %v2636, %v2635
        %v2761 = vpack.c.b16 %v2638, %v2637
        %v2762 = vpack.c.b16 %v2640, %v2639
        %v2763 = vpack.c.b16 %v2642, %v2641
        %v2764 = vpack.c.b16 %v2644, %v2643
        %v2765 = vpack.c.b16 %v2646, %v2645
        %v2766 = vpack.c.b16 %v2648, %v2647
        %v2767 = vpack.c.b16 %v2650, %v2649
        %v2768 = vpack.c.b16 %v2652, %v2651
        %v2769 = vpack.c.b16 %v2654, %v2653
        %v2770 = vpack.c.b16 %v2656, %v2655
        %v2771 = vpack.c.b16 %v2658, %v2657
        %v2772 = vpack.c.b16 %v2660, %v2659
        %v2773 = vpack.c.b16 %v2662, %v2661
        %v2774 = vpack.c.b16 %v2664, %v2663
        %v2775 = vpack.c.b16 %v2666, %v2665
        %v2776 = vpack.c.b16 %v2668, %v2667
        %v2777 = vpack.c.b16 %v2670, %v2669
        %v2778 = vpack.c.b16 %v2672, %v2671
        %v2779 = vpack.c.b16 %v2674, %v2673
        %v2780 = vpack.c.b16 %v2676, %v2675
        %v2781 = vpack.c.b16 %v2678, %v2677
        %v2782 = vpack.c.b16 %v2680, %v2679
        %v2783 = vpack.c.b16 %v2682, %v2681
        %v2784 = vpack.c.b16 %v2684, %v2683
        %v2785 = vpack.c.b16 %v2686, %v2685
        %v2786 = vpack.c.b16 %v2688, %v2687
        %v2787 = vpack.c.b16 %v2690, %v2689
        %v2788 = vpack.c.b16 %v2692, %v2691
        %v2789 = vpack.c.b16 %v2694, %v2693
        %v2790 = vpack.c.b16 %v2696, %v2695
        %v2791 = vpack.c.b16 %v2698, %v2697
        %v2792 = vpack.c.b16 %v2700, %v2699
        %v2793 = vpack.c.b16 %v2702, %v2701
        %v2794 = vpack.c.b16 %v2704, %v2703
        %v2795 = vpack.c.b16 %v2706, %v2705
        %v2796 = vpack.c.b16 %v2708, %v2707
        %v2797 = vpack.c.b16 %v2710, %v2709
        %v2798 = vpack.c.b16 %v2712, %v2711
        %v2799 = vpack.c.b16 %v2714, %v2713
        %v2800 = vpack.c.b16 %v2716, %v2715
        %v2801 = vpack.c.b16 %v2718, %v2717
        %v2802 = vpack.c.b16 %v2720, %v2719
        %v2803 = vpack.c.b16 %v2722, %v2721
        %v2804 = vpack.c.b16 %v2724, %v2723
        %v2805 = vpack.c.b16 %v2726, %v2725
        %v2806 = vpack.c.b16 %v2728, %v2727
        %v2807 = vpack.c.b16 %v2730, %v2729
        %v2808 = vpack.c.b16 %v2732, %v2731
        %v2809 = vpack.c.b16 %v2734, %v2733
        %v2810 = vpack.c.b16 %v2736, %v2735
        %v2811 = vpack.c.b16 %v2738, %v2737
        %v2812 = vpack.c.b16 %v2740, %v2739
        %v2813 = vpack.c.b16 %v2742, %v2741
        %v2814 = vpack.c.b16 %v2744, %v2743
        %v2815 = vpack.c.b16 %v2746, %v2745
        %v2816 = vpack.c.b16 %v2748, %v2747
        %v2817 = vpack.c.b16 %v2750, %v2749
        %v2818 = vpack.c.b16 %v2752, %v2751
        %v2819 = vpack.c.b16 %v2754, %v2753
        %v2820 = vpack.c.b16 %v2756, %v2755
        %2885 = vmatprep.subr.bf16.mxu0 0
        %2886 = vmatpush1.bf16.msra.mxu0 %v2757
        %2887 = vmatprep.subr.bf16.mxu0 0
        %2888 = vmatpush1.bf16.msra.mxu0 %v2758
        %2889 = vmatprep.subr.bf16.mxu0 0
        %2890 = vmatpush1.bf16.msra.mxu0 %v2759
        %2891 = vmatprep.subr.bf16.mxu0 0
        %2892 = vmatpush1.bf16.msra.mxu0 %v2760
        %2893 = vmatprep.subr.bf16.mxu0 0
        %2894 = vmatpush1.bf16.msra.mxu0 %v2761
        %2895 = vmatprep.subr.bf16.mxu0 0
        %2896 = vmatpush1.bf16.msra.mxu0 %v2762
        %2897 = vmatprep.subr.bf16.mxu0 0
        %2898 = vmatpush1.bf16.msra.mxu0 %v2763
        %2899 = vmatprep.subr.bf16.mxu0 0
        %2900 = vmatpush1.bf16.msra.mxu0 %v2764
        %2901 = vmatprep.subr.bf16.mxu0 0
        %2902 = vmatpush1.bf16.msra.mxu0 %v2765
        %2903 = vmatprep.subr.bf16.mxu0 0
        %2904 = vmatpush1.bf16.msra.mxu0 %v2766
        %2905 = vmatprep.subr.bf16.mxu0 0
        %2906 = vmatpush1.bf16.msra.mxu0 %v2767
        %2907 = vmatprep.subr.bf16.mxu0 0
        %2908 = vmatpush1.bf16.msra.mxu0 %v2768
        %2909 = vmatprep.subr.bf16.mxu0 0
        %2910 = vmatpush1.bf16.msra.mxu0 %v2769
        %2911 = vmatprep.subr.bf16.mxu0 0
        %2912 = vmatpush1.bf16.msra.mxu0 %v2770
        %2913 = vmatprep.subr.bf16.mxu0 0
        %2914 = vmatpush1.bf16.msra.mxu0 %v2771
        %2915 = vmatprep.subr.bf16.mxu0 0
        %2916 = vmatpush1.bf16.msra.mxu0 %v2772
        %2917 = vmatprep.mubr.bf16.mxu0 %v2336
        %2918 = vmatmul.mubr.bf16.gmra.mrb[0].mxu0 %v2335
        %v2919 = vpop.f32.mrb[0].mxu0
        %v2920 = vadd.f32 %v2499, %v2919
        %v2921 = vpop.f32.mrb[0].mxu0
        %v2922 = vpop.f32.mrb[0].mxu0
        %v2923 = vadd.f32 %v2499, %v2922
        %v2924 = vpop.f32.mrb[0].mxu0
        %2925 = vmatprep.mubr.bf16.mxu0 %v2344
        %2926 = vmatmul.mubr.bf16.gmra.mrb[0].mxu0 %v2343
        %v2927 = vpop.f32.mrb[0].mxu0
        %v2928 = vadd.f32 %v2499, %v2927
        %v2929 = vpop.f32.mrb[0].mxu0
        %v2930 = vpop.f32.mrb[0].mxu0
        %v2931 = vadd.f32 %v2499, %v2930
        %v2932 = vpop.f32.mrb[0].mxu0
        %2933 = vmatprep.mubr.bf16.mxu0 %v2352
        %2934 = vmatmul.mubr.bf16.gmra.mrb[0].mxu0 %v2351
        %v2935 = vpop.f32.mrb[0].mxu0
        %v2936 = vadd.f32 %v2499, %v2935
        %v2937 = vpop.f32.mrb[0].mxu0
        %v2938 = vpop.f32.mrb[0].mxu0
        %v2939 = vadd.f32 %v2499, %v2938
        %v2940 = vpop.f32.mrb[0].mxu0
        %2941 = vmatprep.mubr.bf16.mxu0 %v2360
        %2942 = vmatmul.mubr.bf16.gmra.mrb[0].mxu0 %v2359
        %v2943 = vpop.f32.mrb[0].mxu0
        %v2944 = vadd.f32 %v2499, %v2943
        %v2945 = vpop.f32.mrb[0].mxu0
        %v2946 = vpop.f32.mrb[0].mxu0
        %v2947 = vpop.f32.mrb[0].mxu0
        %2948 = vdwg.mxu0
        %2949 = vmatprep.subr.bf16.mxu0 0
        %2950 = vmatpush1.bf16.msra.mxu0 %v2773
        %2951 = vmatprep.subr.bf16.mxu0 0
        %2952 = vmatpush1.bf16.msra.mxu0 %v2774
        %2953 = vmatprep.subr.bf16.mxu0 0
        %2954 = vmatpush1.bf16.msra.mxu0 %v2775
        %2955 = vmatprep.subr.bf16.mxu0 0
        %2956 = vmatpush1.bf16.msra.mxu0 %v2776
        %2957 = vmatprep.subr.bf16.mxu0 0
        %2958 = vmatpush1.bf16.msra.mxu0 %v2777
        %2959 = vmatprep.subr.bf16.mxu0 0
        %2960 = vmatpush1.bf16.msra.mxu0 %v2778
        %2961 = vmatprep.subr.bf16.mxu0 0
        %2962 = vmatpush1.bf16.msra.mxu0 %v2779
        %2963 = vmatprep.subr.bf16.mxu0 0
        %2964 = vmatpush1.bf16.msra.mxu0 %v2780
        %2965 = vmatprep.subr.bf16.mxu0 0
        %2966 = vmatpush1.bf16.msra.mxu0 %v2781
        %2967 = vmatprep.subr.bf16.mxu0 0
        %2968 = vmatpush1.bf16.msra.mxu0 %v2782
        %2969 = vmatprep.subr.bf16.mxu0 0
        %2970 = vmatpush1.bf16.msra.mxu0 %v2783
        %2971 = vmatprep.subr.bf16.mxu0 0
        %2972 = vmatpush1.bf16.msra.mxu0 %v2784
        %2973 = vmatprep.subr.bf16.mxu0 0
        %2974 = vmatpush1.bf16.msra.mxu0 %v2785
        %2975 = vmatprep.subr.bf16.mxu0 0
        %2976 = vmatpush1.bf16.msra.mxu0 %v2786
        %2977 = vmatprep.subr.bf16.mxu0 0
        %2978 = vmatpush1.bf16.msra.mxu0 %v2787
        %2979 = vmatprep.subr.bf16.mxu0 0
        %2980 = vmatpush1.bf16.msra.mxu0 %v2788
        %2981 = vmatprep.mubr.bf16.mxu0 %v2338
        %2982 = vmatmul.mubr.bf16.gmra.mrb[0].mxu0 %v2337
        %v2983 = vpop.f32.mrb[0].mxu0
        %v2984 = vadd.f32 %v2920, %v2983
        %v2985 = vpop.f32.mrb[0].mxu0
        %v2986 = vpop.f32.mrb[0].mxu0
        %v2987 = vadd.f32 %v2923, %v2986
        %v2988 = vpop.f32.mrb[0].mxu0
        %2989 = vmatprep.mubr.bf16.mxu0 %v2346
        %2990 = vmatmul.mubr.bf16.gmra.mrb[0].mxu0 %v2345
        %v2991 = vpop.f32.mrb[0].mxu0
        %v2992 = vadd.f32 %v2928, %v2991
        %v2993 = vpop.f32.mrb[0].mxu0
        %v2994 = vpop.f32.mrb[0].mxu0
        %v2995 = vadd.f32 %v2931, %v2994
        %v2996 = vpop.f32.mrb[0].mxu0
        %2997 = vmatprep.mubr.bf16.mxu0 %v2354
        %2998 = vmatmul.mubr.bf16.gmra.mrb[0].mxu0 %v2353
        %v2999 = vpop.f32.mrb[0].mxu0
        %v3000 = vadd.f32 %v2936, %v2999
        %v3001 = vpop.f32.mrb[0].mxu0
        %v3002 = vpop.f32.mrb[0].mxu0
        %v3003 = vadd.f32 %v2939, %v3002
        %v3004 = vpop.f32.mrb[0].mxu0
        %3005 = vmatprep.mubr.bf16.mxu0 %v2362
        %3006 = vmatmul.mubr.bf16.gmra.mrb[0].mxu0 %v2361
        %v3007 = vpop.f32.mrb[0].mxu0
        %v3008 = vadd.f32 %v2944, %v3007
        %v3009 = vpop.f32.mrb[0].mxu0
        %v3010 = vpop.f32.mrb[0].mxu0
        %v3011 = vpop.f32.mrb[0].mxu0
        %3012 = vdwg.mxu0
        %3013 = vmatprep.subr.bf16.mxu0 0
        %3014 = vmatpush1.bf16.msra.mxu0 %v2789
        %3015 = vmatprep.subr.bf16.mxu0 0
        %3016 = vmatpush1.bf16.msra.mxu0 %v2790
        %3017 = vmatprep.subr.bf16.mxu0 0
        %3018 = vmatpush1.bf16.msra.mxu0 %v2791
        %3019 = vmatprep.subr.bf16.mxu0 0
        %3020 = vmatpush1.bf16.msra.mxu0 %v2792
        %3021 = vmatprep.subr.bf16.mxu0 0
        %3022 = vmatpush1.bf16.msra.mxu0 %v2793
        %3023 = vmatprep.subr.bf16.mxu0 0
        %3024 = vmatpush1.bf16.msra.mxu0 %v2794
        %3025 = vmatprep.subr.bf16.mxu0 0
        %3026 = vmatpush1.bf16.msra.mxu0 %v2795
        %3027 = vmatprep.subr.bf16.mxu0 0
        %3028 = vmatpush1.bf16.msra.mxu0 %v2796
        %3029 = vmatprep.subr.bf16.mxu0 0
        %3030 = vmatpush1.bf16.msra.mxu0 %v2797
        %3031 = vmatprep.subr.bf16.mxu0 0
        %3032 = vmatpush1.bf16.msra.mxu0 %v2798
        %3033 = vmatprep.subr.bf16.mxu0 0
        %3034 = vmatpush1.bf16.msra.mxu0 %v2799
        %3035 = vmatprep.subr.bf16.mxu0 0
        %3036 = vmatpush1.bf16.msra.mxu0 %v2800
        %3037 = vmatprep.subr.bf16.mxu0 0
        %3038 = vmatpush1.bf16.msra.mxu0 %v2801
        %3039 = vmatprep.subr.bf16.mxu0 0
        %3040 = vmatpush1.bf16.msra.mxu0 %v2802
        %3041 = vmatprep.subr.bf16.mxu0 0
        %3042 = vmatpush1.bf16.msra.mxu0 %v2803
        %3043 = vmatprep.subr.bf16.mxu0 0
        %3044 = vmatpush1.bf16.msra.mxu0 %v2804
        %3045 = vmatprep.mubr.bf16.mxu0 %v2340
        %3046 = vmatmul.mubr.bf16.gmra.mrb[0].mxu0 %v2339
        %v3047 = vpop.f32.mrb[0].mxu0
        %v3048 = vadd.f32 %v2984, %v3047
        %v3049 = vpop.f32.mrb[0].mxu0
        %v3050 = vpop.f32.mrb[0].mxu0
        %v3051 = vadd.f32 %v2987, %v3050
        %v3052 = vpop.f32.mrb[0].mxu0
        %3053 = vmatprep.mubr.bf16.mxu0 %v2348
        %3054 = vmatmul.mubr.bf16.gmra.mrb[0].mxu0 %v2347
        %v3055 = vpop.f32.mrb[0].mxu0
        %v3056 = vadd.f32 %v2992, %v3055
        %v3057 = vpop.f32.mrb[0].mxu0
        %v3058 = vpop.f32.mrb[0].mxu0
        %v3059 = vadd.f32 %v2995, %v3058
        %v3060 = vpop.f32.mrb[0].mxu0
        %3061 = vmatprep.mubr.bf16.mxu0 %v2356
        %3062 = vmatmul.mubr.bf16.gmra.mrb[0].mxu0 %v2355
        %v3063 = vpop.f32.mrb[0].mxu0
        %v3064 = vadd.f32 %v3000, %v3063
        %v3065 = vpop.f32.mrb[0].mxu0
        %v3066 = vpop.f32.mrb[0].mxu0
        %v3067 = vadd.f32 %v3003, %v3066
        %v3068 = vpop.f32.mrb[0].mxu0
        %3069 = vmatprep.mubr.bf16.mxu0 %v2364
        %3070 = vmatmul.mubr.bf16.gmra.mrb[0].mxu0 %v2363
        %v3071 = vpop.f32.mrb[0].mxu0
        %v3072 = vadd.f32 %v3008, %v3071
        %v3073 = vpop.f32.mrb[0].mxu0
        %v3074 = vpop.f32.mrb[0].mxu0
        %v3075 = vpop.f32.mrb[0].mxu0
        %3076 = vdwg.mxu0
        %3077 = vmatprep.subr.bf16.mxu0 0
        %3078 = vmatpush1.bf16.msra.mxu0 %v2805
        %3079 = vmatprep.subr.bf16.mxu0 0
        %3080 = vmatpush1.bf16.msra.mxu0 %v2806
        %3081 = vmatprep.subr.bf16.mxu0 0
        %3082 = vmatpush1.bf16.msra.mxu0 %v2807
        %3083 = vmatprep.subr.bf16.mxu0 0
        %3084 = vmatpush1.bf16.msra.mxu0 %v2808
        %3085 = vmatprep.subr.bf16.mxu0 0
        %3086 = vmatpush1.bf16.msra.mxu0 %v2809
        %3087 = vmatprep.subr.bf16.mxu0 0
        %3088 = vmatpush1.bf16.msra.mxu0 %v2810
        %3089 = vmatprep.subr.bf16.mxu0 0
        %3090 = vmatpush1.bf16.msra.mxu0 %v2811
        %3091 = vmatprep.subr.bf16.mxu0 0
        %3092 = vmatpush1.bf16.msra.mxu0 %v2812
        %3093 = vmatprep.subr.bf16.mxu0 0
        %3094 = vmatpush1.bf16.msra.mxu0 %v2813
        %3095 = vmatprep.subr.bf16.mxu0 0
        %3096 = vmatpush1.bf16.msra.mxu0 %v2814
        %3097 = vmatprep.subr.bf16.mxu0 0
        %3098 = vmatpush1.bf16.msra.mxu0 %v2815
        %3099 = vmatprep.subr.bf16.mxu0 0
        %3100 = vmatpush1.bf16.msra.mxu0 %v2816
        %3101 = vmatprep.subr.bf16.mxu0 0
        %3102 = vmatpush1.bf16.msra.mxu0 %v2817
        %3103 = vmatprep.subr.bf16.mxu0 0
        %3104 = vmatpush1.bf16.msra.mxu0 %v2818
        %3105 = vmatprep.subr.bf16.mxu0 0
        %3106 = vmatpush1.bf16.msra.mxu0 %v2819
        %3107 = vmatprep.subr.bf16.mxu0 0
        %3108 = vmatpush1.bf16.msra.mxu0 %v2820
        %3109 = vmatprep.mubr.bf16.mxu0 %v2342
        %3110 = vmatmul.mubr.bf16.gmra.mrb[0].mxu0 %v2341
        %v3111 = vpop.f32.mrb[0].mxu0
        %v3112 = vadd.f32 %v3048, %v3111
        %v3113 = vpop.f32.mrb[0].mxu0
        %v3114 = vpop.f32.mrb[0].mxu0
        %v3115 = vadd.f32 %v3051, %v3114
        %v3116 = vpop.f32.mrb[0].mxu0
        %3117 = vmatprep.mubr.bf16.mxu0 %v2350
        %3118 = vmatmul.mubr.bf16.gmra.mrb[0].mxu0 %v2349
        %v3119 = vpop.f32.mrb[0].mxu0
        %v3120 = vadd.f32 %v3056, %v3119
        %v3121 = vpop.f32.mrb[0].mxu0
        %v3122 = vpop.f32.mrb[0].mxu0
        %v3123 = vadd.f32 %v3059, %v3122
        %v3124 = vpop.f32.mrb[0].mxu0
        %3125 = vmatprep.mubr.bf16.mxu0 %v2358
        %3126 = vmatmul.mubr.bf16.gmra.mrb[0].mxu0 %v2357
        %v3127 = vpop.f32.mrb[0].mxu0
        %v3128 = vadd.f32 %v3064, %v3127
        %v3129 = vpop.f32.mrb[0].mxu0
        %v3130 = vpop.f32.mrb[0].mxu0
        %v3131 = vadd.f32 %v3067, %v3130
        %v3132 = vpop.f32.mrb[0].mxu0
        %3133 = vmatprep.mubr.bf16.mxu0 %v2366
        %3134 = vmatmul.mubr.bf16.gmra.mrb[0].mxu0 %v2365
        %v3135 = vpop.f32.mrb[0].mxu0
        %v3136 = vadd.f32 %v3072, %v3135
        %v3137 = vpop.f32.mrb[0].mxu0
        %v3138 = vpop.f32.mrb[0].mxu0
        %v3139 = vpop.f32.mrb[0].mxu0
        %3140 = vdwg.mxu0
        %vm3141 = vcmp.ge.f32.partialorder %v3112, 0.0
        %vm3142 = vcmp.ge.f32.partialorder %v3115, 0.0
        %vm3143 = vcmp.ge.f32.partialorder %v3120, 0.0
        %vm3144 = vcmp.ge.f32.partialorder %v3123, 0.0
        %vm3145 = vcmp.ge.f32.partialorder %v3128, 0.0
        %vm3146 = vcmp.ge.f32.partialorder %v3131, 0.0
        %vm3147 = vcmp.ge.f32.partialorder %v3136, 0.0
        %v3148 = vmul.f32 %v3112, 0.01
        %v3149 = vmul.f32 %v3115, 0.01
        %v3150 = vmul.f32 %v3120, 0.01
        %v3151 = vmul.f32 %v3123, 0.01
        %v3152 = vmul.f32 %v3128, 0.01
        %v3153 = vmul.f32 %v3131, 0.01
        %v3154 = vmul.f32 %v3136, 0.01
        %v3155 = vsel %vm3141, %v3112, %v3148
        %v3156 = vsel %vm3142, %v3115, %v3149
        %v3157 = vsel %vm3143, %v3120, %v3150
        %v3158 = vsel %vm3144, %v3123, %v3151
        %v3159 = vsel %vm3145, %v3128, %v3152
        %v3160 = vsel %vm3146, %v3131, %v3153
        %v3161 = vsel %vm3147, %v3136, %v3154
        %v3162 = vld [vmem:[%s9] sm:$0x1]
        %v3170 = vrot.slane %v3155, 4
        %v3171 = vrot.slane %v3156, 4
        %v3172 = vsel %vm1526, %v3170, %v3171
        %v3173 = vrot.slane %v3157, 4
        %v3174 = vsel %vm1526, %v3171, %v3173
        %v3175 = vrot.slane %v3158, 4
        %v3176 = vsel %vm1526, %v3173, %v3175
        %v3177 = vrot.slane %v3159, 4
        %v3178 = vsel %vm1526, %v3175, %v3177
        %v3179 = vrot.slane %v3160, 4
        %v3180 = vsel %vm1526, %v3177, %v3179
        %v3181 = vrot.slane %v3161, 4
        %v3182 = vsel %vm1526, %v3179, %v3181
        %v3190 = vsel %vm1526, 0.0, %v3170
        %v3191 = vsel %vm1602, %v3182, 0.0
        %v3194 = vrot.slane %v3190, 1
        %v3195 = vrot.slane %v3172, 1
        %v3196 = vsel %vm1550, %v3194, %v3195
        %v3197 = vrot.slane %v3174, 1
        %v3198 = vsel %vm1550, %v3195, %v3197
        %v3199 = vrot.slane %v3176, 1
        %v3200 = vsel %vm1550, %v3197, %v3199
        %v3201 = vrot.slane %v3178, 1
        %v3202 = vsel %vm1550, %v3199, %v3201
        %v3203 = vrot.slane %v3180, 1
        %v3204 = vsel %vm1550, %v3201, %v3203
        %v3205 = vrot.slane %v3191, 1
        %v3206 = vsel %vm1550, %v3203, %v3205
        %v3214 = vrot.slane %v3190, 2
        %v3215 = vrot.slane %v3172, 2
        %v3216 = vsel %vm1582, %v3214, %v3215
        %v3217 = vrot.slane %v3174, 2
        %v3218 = vsel %vm1582, %v3215, %v3217
        %v3219 = vrot.slane %v3176, 2
        %v3220 = vsel %vm1582, %v3217, %v3219
        %v3221 = vrot.slane %v3178, 2
        %v3222 = vsel %vm1582, %v3219, %v3221
        %v3223 = vrot.slane %v3180, 2
        %v3224 = vsel %vm1582, %v3221, %v3223
        %v3225 = vrot.slane %v3191, 2
        %v3226 = vsel %vm1582, %v3223, %v3225
        %v3234 = vrot.slane %v3190, 3
        %v3235 = vrot.slane %v3172, 3
        %v3236 = vsel %vm1602, %v3234, %v3235
        %v3237 = vrot.slane %v3174, 3
        %v3238 = vsel %vm1602, %v3235, %v3237
        %v3239 = vrot.slane %v3176, 3
        %v3240 = vsel %vm1602, %v3237, %v3239
        %v3241 = vrot.slane %v3178, 3
        %v3242 = vsel %vm1602, %v3239, %v3241
        %v3243 = vrot.slane %v3180, 3
        %v3244 = vsel %vm1602, %v3241, %v3243
        %v3245 = vrot.slane %v3191, 3
        %v3246 = vsel %vm1602, %v3243, %v3245
        %v3254 = vrot.slane %v3190, 4
        %v3255 = vrot.slane %v3172, 4
        %v3256 = vsel %vm1526, %v3254, %v3255
        %v3257 = vrot.slane %v3174, 4
        %v3258 = vsel %vm1526, %v3255, %v3257
        %v3259 = vrot.slane %v3176, 4
        %v3260 = vsel %vm1526, %v3257, %v3259
        %v3261 = vrot.slane %v3178, 4
        %v3262 = vsel %vm1526, %v3259, %v3261
        %v3263 = vrot.slane %v3180, 4
        %v3264 = vsel %vm1526, %v3261, %v3263
        %v3265 = vrot.slane %v3191, 4
        %v3266 = vsel %vm1526, %v3263, %v3265
        %v3274 = vrot.slane %v3190, 5
        %v3275 = vrot.slane %v3172, 5
        %v3276 = vsel %vm1546, %v3274, %v3275
        %v3277 = vrot.slane %v3174, 5
        %v3278 = vsel %vm1546, %v3275, %v3277
        %v3279 = vrot.slane %v3176, 5
        %v3280 = vsel %vm1546, %v3277, %v3279
        %v3281 = vrot.slane %v3178, 5
        %v3282 = vsel %vm1546, %v3279, %v3281
        %v3283 = vrot.slane %v3180, 5
        %v3284 = vsel %vm1546, %v3281, %v3283
        %v3285 = vrot.slane %v3191, 5
        %v3286 = vsel %vm1546, %v3283, %v3285
        %v3294 = vrot.slane %v3190, 6
        %v3295 = vrot.slane %v3172, 6
        %v3296 = vsel %vm1684, %v3294, %v3295
        %v3297 = vrot.slane %v3174, 6
        %v3298 = vsel %vm1684, %v3295, %v3297
        %v3299 = vrot.slane %v3176, 6
        %v3300 = vsel %vm1684, %v3297, %v3299
        %v3301 = vrot.slane %v3178, 6
        %v3302 = vsel %vm1684, %v3299, %v3301
        %v3303 = vrot.slane %v3180, 6
        %v3304 = vsel %vm1684, %v3301, %v3303
        %v3305 = vrot.slane %v3191, 6
        %v3306 = vsel %vm1684, %v3303, %v3305
        %v3315 = vrot.slane %v3190, 7
        %v3316 = vrot.slane %v3172, 7
        %v3317 = vsel %vm1704, %v3315, %v3316
        %v3318 = vrot.slane %v3174, 7
        %v3319 = vsel %vm1704, %v3316, %v3318
        %v3320 = vrot.slane %v3176, 7
        %v3321 = vsel %vm1704, %v3318, %v3320
        %v3322 = vrot.slane %v3178, 7
        %v3323 = vsel %vm1704, %v3320, %v3322
        %v3324 = vrot.slane %v3180, 7
        %v3325 = vsel %vm1704, %v3322, %v3324
        %v3326 = vrot.slane %v3191, 7
        %v3327 = vsel %vm1704, %v3324, %v3326
        %v3328 = vrot.slane 0.0, 7
        %v3329 = vsel %vm1704, %v3326, %v3328
        %v3337 = vpack.c.bf16 %v3172, %v3190
        %v3338 = vpack.c.bf16 %v3198, %v3196
        %v3339 = vpack.c.bf16 %v3218, %v3216
        %v3340 = vpack.c.bf16 %v3238, %v3236
        %v3341 = vpack.c.bf16 %v3258, %v3256
        %v3342 = vpack.c.bf16 %v3278, %v3276
        %v3343 = vpack.c.bf16 %v3298, %v3296
        %v3344 = vpack.c.bf16 %v3319, %v3317
        %v3345 = vpack.c.bf16 %v3176, %v3174
        %v3346 = vpack.c.bf16 %v3202, %v3200
        %v3347 = vpack.c.bf16 %v3222, %v3220
        %v3348 = vpack.c.bf16 %v3242, %v3240
        %v3349 = vpack.c.bf16 %v3262, %v3260
        %v3350 = vpack.c.bf16 %v3282, %v3280
        %v3351 = vpack.c.bf16 %v3302, %v3300
        %v3352 = vpack.c.bf16 %v3323, %v3321
        %v3353 = vpack.c.bf16 %v3180, %v3178
        %v3354 = vpack.c.bf16 %v3206, %v3204
        %v3355 = vpack.c.bf16 %v3226, %v3224
        %v3356 = vpack.c.bf16 %v3246, %v3244
        %v3357 = vpack.c.bf16 %v3266, %v3264
        %v3358 = vpack.c.bf16 %v3286, %v3284
        %v3359 = vpack.c.bf16 %v3306, %v3304
        %v3360 = vpack.c.bf16 %v3327, %v3325
        %v3361 = vpack.c.bf16 %v3191, %v3191
        %v3362 = vpack.c.bf16 %v3205, %v3205
        %v3363 = vpack.c.bf16 %v3225, %v3225
        %v3364 = vpack.c.bf16 %v3245, %v3245
        %v3365 = vpack.c.bf16 %v3265, %v3265
        %v3366 = vpack.c.bf16 %v3285, %v3285
        %v3367 = vpack.c.bf16 %v3305, %v3305
        %v3368 = vpack.c.bf16 %v3329, %v3329
        %v3369 = vld [vmem:[%s8] sm:$0xf]
        %v3370 = vld [vmem:[%s8 + $0x4] sm:$0xf]
        %v3371 = vld [vmem:[%s8 + $0x8] sm:$0xf]
        %v3372 = vld [vmem:[%s8 + $0xc] sm:$0xf]
        %v3373 = vld [vmem:[%s8 + $0x10] sm:$0xf]
        %v3374 = vld [vmem:[%s8 + $0x14] sm:$0xf]
        %v3375 = vld [vmem:[%s8 + $0x18] sm:$0xf]
        %v3376 = vld [vmem:[%s8 + $0x1c] sm:$0xf]
        %v3377 = vld [vmem:[%s8 + $0x20] sm:$0xf]
        %v3378 = vld [vmem:[%s8 + $0x24] sm:$0xf]
        %v3379 = vld [vmem:[%s8 + $0x28] sm:$0xf]
        %v3380 = vld [vmem:[%s8 + $0x2c] sm:$0xf]
        %v3381 = vld [vmem:[%s8 + $0x30] sm:$0xf]
        %v3382 = vld [vmem:[%s8 + $0x34] sm:$0xf]
        %v3383 = vld [vmem:[%s8 + $0x38] sm:$0xf]
        %v3384 = vld [vmem:[%s8 + $0x3c] sm:$0xf]
        %v3385 = vld [vmem:[%s8 + $0x40] sm:$0xf]
        %v3386 = vld [vmem:[%s8 + $0x44] sm:$0xf]
        %v3387 = vld [vmem:[%s8 + $0x48] sm:$0xf]
        %v3388 = vld [vmem:[%s8 + $0x4c] sm:$0xf]
        %v3389 = vld [vmem:[%s8 + $0x50] sm:$0xf]
        %v3390 = vld [vmem:[%s8 + $0x54] sm:$0xf]
        %v3391 = vld [vmem:[%s8 + $0x58] sm:$0xf]
        %v3392 = vld [vmem:[%s8 + $0x5c] sm:$0xf]
        %v3393 = vld [vmem:[%s8 + $0x60] sm:$0xf]
        %v3394 = vld [vmem:[%s8 + $0x64] sm:$0xf]
        %v3395 = vld [vmem:[%s8 + $0x68] sm:$0xf]
        %v3396 = vld [vmem:[%s8 + $0x6c] sm:$0xf]
        %v3397 = vld [vmem:[%s8 + $0x70] sm:$0xf]
        %v3398 = vld [vmem:[%s8 + $0x74] sm:$0xf]
        %v3399 = vld [vmem:[%s8 + $0x78] sm:$0xf]
        %v3400 = vld [vmem:[%s8 + $0x7c] sm:$0xf]
        %v3401 = vld [vmem:[%s8 + $0x80] sm:$0xf]
        %v3402 = vld [vmem:[%s8 + $0x84] sm:$0xf]
        %v3403 = vld [vmem:[%s8 + $0x88] sm:$0xf]
        %v3404 = vld [vmem:[%s8 + $0x8c] sm:$0xf]
        %v3405 = vld [vmem:[%s8 + $0x90] sm:$0xf]
        %v3406 = vld [vmem:[%s8 + $0x94] sm:$0xf]
        %v3407 = vld [vmem:[%s8 + $0x98] sm:$0xf]
        %v3408 = vld [vmem:[%s8 + $0x9c] sm:$0xf]
        %v3409 = vld [vmem:[%s8 + $0xa0] sm:$0xf]
        %v3410 = vld [vmem:[%s8 + $0xa4] sm:$0xf]
        %v3411 = vld [vmem:[%s8 + $0xa8] sm:$0xf]
        %v3412 = vld [vmem:[%s8 + $0xac] sm:$0xf]
        %v3413 = vld [vmem:[%s8 + $0xb0] sm:$0xf]
        %v3414 = vld [vmem:[%s8 + $0xb4] sm:$0xf]
        %v3415 = vld [vmem:[%s8 + $0xb8] sm:$0xf]
        %v3416 = vld [vmem:[%s8 + $0xbc] sm:$0xf]
        %v3417 = vld [vmem:[%s8 + $0xc0] sm:$0xf]
        %v3418 = vld [vmem:[%s8 + $0xc4] sm:$0xf]
        %v3419 = vld [vmem:[%s8 + $0xc8] sm:$0xf]
        %v3420 = vld [vmem:[%s8 + $0xcc] sm:$0xf]
        %v3421 = vld [vmem:[%s8 + $0xd0] sm:$0xf]
        %v3422 = vld [vmem:[%s8 + $0xd4] sm:$0xf]
        %v3423 = vld [vmem:[%s8 + $0xd8] sm:$0xf]
        %v3424 = vld [vmem:[%s8 + $0xdc] sm:$0xf]
        %v3425 = vld [vmem:[%s8 + $0xe0] sm:$0xf]
        %v3426 = vld [vmem:[%s8 + $0xe4] sm:$0xf]
        %v3427 = vld [vmem:[%s8 + $0xe8] sm:$0xf]
        %v3428 = vld [vmem:[%s8 + $0xec] sm:$0xf]
        %v3429 = vld [vmem:[%s8 + $0xf0] sm:$0xf]
        %v3430 = vld [vmem:[%s8 + $0xf4] sm:$0xf]
        %v3431 = vld [vmem:[%s8 + $0xf8] sm:$0xf]
        %v3432 = vld [vmem:[%s8 + $0xfc] sm:$0xf]
        %v3433 = vld [vmem:[%s8 + $0x100] sm:$0xf]
        %v3434 = vld [vmem:[%s8 + $0x104] sm:$0xf]
        %v3435 = vld [vmem:[%s8 + $0x108] sm:$0xf]
        %v3436 = vld [vmem:[%s8 + $0x10c] sm:$0xf]
        %v3437 = vld [vmem:[%s8 + $0x110] sm:$0xf]
        %v3438 = vld [vmem:[%s8 + $0x114] sm:$0xf]
        %v3439 = vld [vmem:[%s8 + $0x118] sm:$0xf]
        %v3440 = vld [vmem:[%s8 + $0x11c] sm:$0xf]
        %v3441 = vld [vmem:[%s8 + $0x120] sm:$0xf]
        %v3442 = vld [vmem:[%s8 + $0x124] sm:$0xf]
        %v3443 = vld [vmem:[%s8 + $0x128] sm:$0xf]
        %v3444 = vld [vmem:[%s8 + $0x12c] sm:$0xf]
        %v3445 = vld [vmem:[%s8 + $0x130] sm:$0xf]
        %v3446 = vld [vmem:[%s8 + $0x134] sm:$0xf]
        %v3447 = vld [vmem:[%s8 + $0x138] sm:$0xf]
        %v3448 = vld [vmem:[%s8 + $0x13c] sm:$0xf]
        %v3449 = vld [vmem:[%s8 + $0x140] sm:$0xf]
        %v3450 = vld [vmem:[%s8 + $0x144] sm:$0xf]
        %v3451 = vld [vmem:[%s8 + $0x148] sm:$0xf]
        %v3452 = vld [vmem:[%s8 + $0x14c] sm:$0xf]
        %v3453 = vld [vmem:[%s8 + $0x150] sm:$0xf]
        %v3454 = vld [vmem:[%s8 + $0x154] sm:$0xf]
        %v3455 = vld [vmem:[%s8 + $0x158] sm:$0xf]
        %v3456 = vld [vmem:[%s8 + $0x15c] sm:$0xf]
        %v3457 = vld [vmem:[%s8 + $0x160] sm:$0xf]
        %v3458 = vld [vmem:[%s8 + $0x164] sm:$0xf]
        %v3459 = vld [vmem:[%s8 + $0x168] sm:$0xf]
        %v3460 = vld [vmem:[%s8 + $0x16c] sm:$0xf]
        %v3461 = vld [vmem:[%s8 + $0x170] sm:$0xf]
        %v3462 = vld [vmem:[%s8 + $0x174] sm:$0xf]
        %v3463 = vld [vmem:[%s8 + $0x178] sm:$0xf]
        %v3464 = vld [vmem:[%s8 + $0x17c] sm:$0xf]
        %v3465 = vld [vmem:[%s8 + $0x180] sm:$0xf]
        %v3466 = vld [vmem:[%s8 + $0x184] sm:$0xf]
        %v3467 = vld [vmem:[%s8 + $0x188] sm:$0xf]
        %v3468 = vld [vmem:[%s8 + $0x18c] sm:$0xf]
        %v3469 = vld [vmem:[%s8 + $0x190] sm:$0xf]
        %v3470 = vld [vmem:[%s8 + $0x194] sm:$0xf]
        %v3471 = vld [vmem:[%s8 + $0x198] sm:$0xf]
        %v3472 = vld [vmem:[%s8 + $0x19c] sm:$0xf]
        %v3473 = vld [vmem:[%s8 + $0x1a0] sm:$0xf]
        %v3474 = vld [vmem:[%s8 + $0x1a4] sm:$0xf]
        %v3475 = vld [vmem:[%s8 + $0x1a8] sm:$0xf]
        %v3476 = vld [vmem:[%s8 + $0x1ac] sm:$0xf]
        %v3477 = vld [vmem:[%s8 + $0x1b0] sm:$0xf]
        %v3478 = vld [vmem:[%s8 + $0x1b4] sm:$0xf]
        %v3479 = vld [vmem:[%s8 + $0x1b8] sm:$0xf]
        %v3480 = vld [vmem:[%s8 + $0x1bc] sm:$0xf]
        %v3481 = vld [vmem:[%s8 + $0x1c0] sm:$0xf]
        %v3482 = vld [vmem:[%s8 + $0x1c4] sm:$0xf]
        %v3483 = vld [vmem:[%s8 + $0x1c8] sm:$0xf]
        %v3484 = vld [vmem:[%s8 + $0x1cc] sm:$0xf]
        %v3485 = vld [vmem:[%s8 + $0x1d0] sm:$0xf]
        %v3486 = vld [vmem:[%s8 + $0x1d4] sm:$0xf]
        %v3487 = vld [vmem:[%s8 + $0x1d8] sm:$0xf]
        %v3488 = vld [vmem:[%s8 + $0x1dc] sm:$0xf]
        %v3489 = vld [vmem:[%s8 + $0x1e0] sm:$0xf]
        %v3490 = vld [vmem:[%s8 + $0x1e4] sm:$0xf]
        %v3491 = vld [vmem:[%s8 + $0x1e8] sm:$0xf]
        %v3492 = vld [vmem:[%s8 + $0x1ec] sm:$0xf]
        %v3493 = vld [vmem:[%s8 + $0x1f0] sm:$0xf]
        %v3494 = vld [vmem:[%s8 + $0x1f4] sm:$0xf]
        %v3495 = vld [vmem:[%s8 + $0x1f8] sm:$0xf]
        %v3496 = vld [vmem:[%s8 + $0x1fc] sm:$0xf]
        %v3498 = vlaneseq
        %v3499 = vshrl.u32 %v3498, 7
        %v3500 = vsub.s32 0, %v3499
        %v3501 = vrot.slane %v3162, %v3500
        %v3631 = vunpack.c.l.b16 %v3369
        %v3632 = vunpack.c.l.b16 %v3370
        %v3633 = vunpack.c.l.b16 %v3371
        %v3634 = vunpack.c.l.b16 %v3372
        %v3635 = vunpack.c.l.b16 %v3373
        %v3636 = vunpack.c.l.b16 %v3374
        %v3637 = vunpack.c.l.b16 %v3375
        %v3638 = vunpack.c.l.b16 %v3376
        %v3639 = vunpack.c.l.b16 %v3377
        %v3640 = vunpack.c.l.b16 %v3378
        %v3641 = vunpack.c.l.b16 %v3379
        %v3642 = vunpack.c.l.b16 %v3380
        %v3643 = vunpack.c.l.b16 %v3381
        %v3644 = vunpack.c.l.b16 %v3382
        %v3645 = vunpack.c.l.b16 %v3383
        %v3646 = vunpack.c.l.b16 %v3384
        %v3647 = vunpack.c.l.b16 %v3385
        %v3648 = vunpack.c.l.b16 %v3386
        %v3649 = vunpack.c.l.b16 %v3387
        %v3650 = vunpack.c.l.b16 %v3388
        %v3651 = vunpack.c.l.b16 %v3389
        %v3652 = vunpack.c.l.b16 %v3390
        %v3653 = vunpack.c.l.b16 %v3391
        %v3654 = vunpack.c.l.b16 %v3392
        %v3655 = vunpack.c.l.b16 %v3393
        %v3656 = vunpack.c.l.b16 %v3394
        %v3657 = vunpack.c.l.b16 %v3395
        %v3658 = vunpack.c.l.b16 %v3396
        %v3659 = vunpack.c.l.b16 %v3397
        %v3660 = vunpack.c.l.b16 %v3398
        %v3661 = vunpack.c.l.b16 %v3399
        %v3662 = vunpack.c.l.b16 %v3400
        %v3663 = vunpack.c.l.b16 %v3401
        %v3664 = vunpack.c.l.b16 %v3402
        %v3665 = vunpack.c.l.b16 %v3403
        %v3666 = vunpack.c.l.b16 %v3404
        %v3667 = vunpack.c.l.b16 %v3405
        %v3668 = vunpack.c.l.b16 %v3406
        %v3669 = vunpack.c.l.b16 %v3407
        %v3670 = vunpack.c.l.b16 %v3408
        %v3671 = vunpack.c.l.b16 %v3409
        %v3672 = vunpack.c.l.b16 %v3410
        %v3673 = vunpack.c.l.b16 %v3411
        %v3674 = vunpack.c.l.b16 %v3412
        %v3675 = vunpack.c.l.b16 %v3413
        %v3676 = vunpack.c.l.b16 %v3414
        %v3677 = vunpack.c.l.b16 %v3415
        %v3678 = vunpack.c.l.b16 %v3416
        %v3679 = vunpack.c.l.b16 %v3417
        %v3680 = vunpack.c.l.b16 %v3418
        %v3681 = vunpack.c.l.b16 %v3419
        %v3682 = vunpack.c.l.b16 %v3420
        %v3683 = vunpack.c.l.b16 %v3421
        %v3684 = vunpack.c.l.b16 %v3422
        %v3685 = vunpack.c.l.b16 %v3423
        %v3686 = vunpack.c.l.b16 %v3424
        %v3687 = vunpack.c.l.b16 %v3425
        %v3688 = vunpack.c.l.b16 %v3426
        %v3689 = vunpack.c.l.b16 %v3427
        %v3690 = vunpack.c.l.b16 %v3428
        %v3691 = vunpack.c.l.b16 %v3429
        %v3692 = vunpack.c.l.b16 %v3430
        %v3693 = vunpack.c.l.b16 %v3431
        %v3694 = vunpack.c.l.b16 %v3432
        %v3695 = vunpack.c.l.b16 %v3433
        %v3696 = vunpack.c.l.b16 %v3434
        %v3697 = vunpack.c.l.b16 %v3435
        %v3698 = vunpack.c.l.b16 %v3436
        %v3699 = vunpack.c.l.b16 %v3437
        %v3700 = vunpack.c.l.b16 %v3438
        %v3701 = vunpack.c.l.b16 %v3439
        %v3702 = vunpack.c.l.b16 %v3440
        %v3703 = vunpack.c.l.b16 %v3441
        %v3704 = vunpack.c.l.b16 %v3442
        %v3705 = vunpack.c.l.b16 %v3443
        %v3706 = vunpack.c.l.b16 %v3444
        %v3707 = vunpack.c.l.b16 %v3445
        %v3708 = vunpack.c.l.b16 %v3446
        %v3709 = vunpack.c.l.b16 %v3447
        %v3710 = vunpack.c.l.b16 %v3448
        %v3711 = vunpack.c.l.b16 %v3449
        %v3712 = vunpack.c.l.b16 %v3450
        %v3713 = vunpack.c.l.b16 %v3451
        %v3714 = vunpack.c.l.b16 %v3452
        %v3715 = vunpack.c.l.b16 %v3453
        %v3716 = vunpack.c.l.b16 %v3454
        %v3717 = vunpack.c.l.b16 %v3455
        %v3718 = vunpack.c.l.b16 %v3456
        %v3719 = vunpack.c.l.b16 %v3457
        %v3720 = vunpack.c.l.b16 %v3458
        %v3721 = vunpack.c.l.b16 %v3459
        %v3722 = vunpack.c.l.b16 %v3460
        %v3723 = vunpack.c.l.b16 %v3461
        %v3724 = vunpack.c.l.b16 %v3462
        %v3725 = vunpack.c.l.b16 %v3463
        %v3726 = vunpack.c.l.b16 %v3464
        %v3727 = vunpack.c.l.b16 %v3465
        %v3728 = vunpack.c.l.b16 %v3466
        %v3729 = vunpack.c.l.b16 %v3467
        %v3730 = vunpack.c.l.b16 %v3468
        %v3731 = vunpack.c.l.b16 %v3469
        %v3732 = vunpack.c.l.b16 %v3470
        %v3733 = vunpack.c.l.b16 %v3471
        %v3734 = vunpack.c.l.b16 %v3472
        %v3735 = vunpack.c.l.b16 %v3473
        %v3736 = vunpack.c.l.b16 %v3474
        %v3737 = vunpack.c.l.b16 %v3475
        %v3738 = vunpack.c.l.b16 %v3476
        %v3739 = vunpack.c.l.b16 %v3477
        %v3740 = vunpack.c.l.b16 %v3478
        %v3741 = vunpack.c.l.b16 %v3479
        %v3742 = vunpack.c.l.b16 %v3480
        %v3743 = vunpack.c.l.b16 %v3481
        %v3744 = vunpack.c.l.b16 %v3482
        %v3745 = vunpack.c.l.b16 %v3483
        %v3746 = vunpack.c.l.b16 %v3484
        %v3747 = vunpack.c.l.b16 %v3485
        %v3748 = vunpack.c.l.b16 %v3486
        %v3749 = vunpack.c.l.b16 %v3487
        %v3750 = vunpack.c.l.b16 %v3488
        %v3751 = vunpack.c.l.b16 %v3489
        %v3752 = vunpack.c.l.b16 %v3490
        %v3753 = vunpack.c.l.b16 %v3491
        %v3754 = vunpack.c.l.b16 %v3492
        %v3755 = vunpack.c.l.b16 %v3493
        %v3756 = vunpack.c.l.b16 %v3494
        %v3757 = vunpack.c.l.b16 %v3495
        %v3758 = vunpack.c.l.b16 %v3496
        %v3759 = vpack.c.b16 %v3632, %v3631
        %v3760 = vpack.c.b16 %v3634, %v3633
        %v3761 = vpack.c.b16 %v3636, %v3635
        %v3762 = vpack.c.b16 %v3638, %v3637
        %v3763 = vpack.c.b16 %v3640, %v3639
        %v3764 = vpack.c.b16 %v3642, %v3641
        %v3765 = vpack.c.b16 %v3644, %v3643
        %v3766 = vpack.c.b16 %v3646, %v3645
        %v3767 = vpack.c.b16 %v3648, %v3647
        %v3768 = vpack.c.b16 %v3650, %v3649
        %v3769 = vpack.c.b16 %v3652, %v3651
        %v3770 = vpack.c.b16 %v3654, %v3653
        %v3771 = vpack.c.b16 %v3656, %v3655
        %v3772 = vpack.c.b16 %v3658, %v3657
        %v3773 = vpack.c.b16 %v3660, %v3659
        %v3774 = vpack.c.b16 %v3662, %v3661
        %v3775 = vpack.c.b16 %v3664, %v3663
        %v3776 = vpack.c.b16 %v3666, %v3665
        %v3777 = vpack.c.b16 %v3668, %v3667
        %v3778 = vpack.c.b16 %v3670, %v3669
        %v3779 = vpack.c.b16 %v3672, %v3671
        %v3780 = vpack.c.b16 %v3674, %v3673
        %v3781 = vpack.c.b16 %v3676, %v3675
        %v3782 = vpack.c.b16 %v3678, %v3677
        %v3783 = vpack.c.b16 %v3680, %v3679
        %v3784 = vpack.c.b16 %v3682, %v3681
        %v3785 = vpack.c.b16 %v3684, %v3683
        %v3786 = vpack.c.b16 %v3686, %v3685
        %v3787 = vpack.c.b16 %v3688, %v3687
        %v3788 = vpack.c.b16 %v3690, %v3689
        %v3789 = vpack.c.b16 %v3692, %v3691
        %v3790 = vpack.c.b16 %v3694, %v3693
        %v3791 = vpack.c.b16 %v3696, %v3695
        %v3792 = vpack.c.b16 %v3698, %v3697
        %v3793 = vpack.c.b16 %v3700, %v3699
        %v3794 = vpack.c.b16 %v3702, %v3701
        %v3795 = vpack.c.b16 %v3704, %v3703
        %v3796 = vpack.c.b16 %v3706, %v3705
        %v3797 = vpack.c.b16 %v3708, %v3707
        %v3798 = vpack.c.b16 %v3710, %v3709
        %v3799 = vpack.c.b16 %v3712, %v3711
        %v3800 = vpack.c.b16 %v3714, %v3713
        %v3801 = vpack.c.b16 %v3716, %v3715
        %v3802 = vpack.c.b16 %v3718, %v3717
        %v3803 = vpack.c.b16 %v3720, %v3719
        %v3804 = vpack.c.b16 %v3722, %v3721
        %v3805 = vpack.c.b16 %v3724, %v3723
        %v3806 = vpack.c.b16 %v3726, %v3725
        %v3807 = vpack.c.b16 %v3728, %v3727
        %v3808 = vpack.c.b16 %v3730, %v3729
        %v3809 = vpack.c.b16 %v3732, %v3731
        %v3810 = vpack.c.b16 %v3734, %v3733
        %v3811 = vpack.c.b16 %v3736, %v3735
        %v3812 = vpack.c.b16 %v3738, %v3737
        %v3813 = vpack.c.b16 %v3740, %v3739
        %v3814 = vpack.c.b16 %v3742, %v3741
        %v3815 = vpack.c.b16 %v3744, %v3743
        %v3816 = vpack.c.b16 %v3746, %v3745
        %v3817 = vpack.c.b16 %v3748, %v3747
        %v3818 = vpack.c.b16 %v3750, %v3749
        %v3819 = vpack.c.b16 %v3752, %v3751
        %v3820 = vpack.c.b16 %v3754, %v3753
        %v3821 = vpack.c.b16 %v3756, %v3755
        %v3822 = vpack.c.b16 %v3758, %v3757
        %3887 = vmatprep.subr.bf16.mxu0 0
        %3888 = vmatpush1.bf16.msra.mxu0 %v3759
        %3889 = vmatprep.subr.bf16.mxu0 0
        %3890 = vmatpush1.bf16.msra.mxu0 %v3760
        %3891 = vmatprep.subr.bf16.mxu0 0
        %3892 = vmatpush1.bf16.msra.mxu0 %v3761
        %3893 = vmatprep.subr.bf16.mxu0 0
        %3894 = vmatpush1.bf16.msra.mxu0 %v3762
        %3895 = vmatprep.subr.bf16.mxu0 0
        %3896 = vmatpush1.bf16.msra.mxu0 %v3763
        %3897 = vmatprep.subr.bf16.mxu0 0
        %3898 = vmatpush1.bf16.msra.mxu0 %v3764
        %3899 = vmatprep.subr.bf16.mxu0 0
        %3900 = vmatpush1.bf16.msra.mxu0 %v3765
        %3901 = vmatprep.subr.bf16.mxu0 0
        %3902 = vmatpush1.bf16.msra.mxu0 %v3766
        %3903 = vmatprep.subr.bf16.mxu0 0
        %3904 = vmatpush1.bf16.msra.mxu0 %v3767
        %3905 = vmatprep.subr.bf16.mxu0 0
        %3906 = vmatpush1.bf16.msra.mxu0 %v3768
        %3907 = vmatprep.subr.bf16.mxu0 0
        %3908 = vmatpush1.bf16.msra.mxu0 %v3769
        %3909 = vmatprep.subr.bf16.mxu0 0
        %3910 = vmatpush1.bf16.msra.mxu0 %v3770
        %3911 = vmatprep.subr.bf16.mxu0 0
        %3912 = vmatpush1.bf16.msra.mxu0 %v3771
        %3913 = vmatprep.subr.bf16.mxu0 0
        %3914 = vmatpush1.bf16.msra.mxu0 %v3772
        %3915 = vmatprep.subr.bf16.mxu0 0
        %3916 = vmatpush1.bf16.msra.mxu0 %v3773
        %3917 = vmatprep.subr.bf16.mxu0 0
        %3918 = vmatpush1.bf16.msra.mxu0 %v3774
        %3919 = vmatprep.mubr.bf16.mxu0 %v3338
        %3920 = vmatmul.mubr.bf16.gmra.mrb[0].mxu0 %v3337
        %v3921 = vpop.f32.mrb[0].mxu0
        %v3922 = vadd.f32 %v3501, %v3921
        %v3923 = vpop.f32.mrb[0].mxu0
        %v3924 = vpop.f32.mrb[0].mxu0
        %v3925 = vadd.f32 %v3501, %v3924
        %v3926 = vpop.f32.mrb[0].mxu0
        %3927 = vmatprep.mubr.bf16.mxu0 %v3346
        %3928 = vmatmul.mubr.bf16.gmra.mrb[0].mxu0 %v3345
        %v3929 = vpop.f32.mrb[0].mxu0
        %v3930 = vadd.f32 %v3501, %v3929
        %v3931 = vpop.f32.mrb[0].mxu0
        %v3932 = vpop.f32.mrb[0].mxu0
        %v3933 = vadd.f32 %v3501, %v3932
        %v3934 = vpop.f32.mrb[0].mxu0
        %3935 = vmatprep.mubr.bf16.mxu0 %v3354
        %3936 = vmatmul.mubr.bf16.gmra.mrb[0].mxu0 %v3353
        %v3937 = vpop.f32.mrb[0].mxu0
        %v3938 = vadd.f32 %v3501, %v3937
        %v3939 = vpop.f32.mrb[0].mxu0
        %v3940 = vpop.f32.mrb[0].mxu0
        %v3941 = vadd.f32 %v3501, %v3940
        %v3942 = vpop.f32.mrb[0].mxu0
        %3943 = vmatprep.mubr.bf16.mxu0 %v3362
        %3944 = vmatmul.mubr.bf16.gmra.mrb[0].mxu0 %v3361
        %v3945 = vpop.f32.mrb[0].mxu0
        %v3946 = vadd.f32 %v3501, %v3945
        %v3947 = vpop.f32.mrb[0].mxu0
        %v3948 = vpop.f32.mrb[0].mxu0
        %v3949 = vpop.f32.mrb[0].mxu0
        %3950 = vdwg.mxu0
        %3951 = vmatprep.subr.bf16.mxu0 0
        %3952 = vmatpush1.bf16.msra.mxu0 %v3775
        %3953 = vmatprep.subr.bf16.mxu0 0
        %3954 = vmatpush1.bf16.msra.mxu0 %v3776
        %3955 = vmatprep.subr.bf16.mxu0 0
        %3956 = vmatpush1.bf16.msra.mxu0 %v3777
        %3957 = vmatprep.subr.bf16.mxu0 0
        %3958 = vmatpush1.bf16.msra.mxu0 %v3778
        %3959 = vmatprep.subr.bf16.mxu0 0
        %3960 = vmatpush1.bf16.msra.mxu0 %v3779
        %3961 = vmatprep.subr.bf16.mxu0 0
        %3962 = vmatpush1.bf16.msra.mxu0 %v3780
        %3963 = vmatprep.subr.bf16.mxu0 0
        %3964 = vmatpush1.bf16.msra.mxu0 %v3781
        %3965 = vmatprep.subr.bf16.mxu0 0
        %3966 = vmatpush1.bf16.msra.mxu0 %v3782
        %3967 = vmatprep.subr.bf16.mxu0 0
        %3968 = vmatpush1.bf16.msra.mxu0 %v3783
        %3969 = vmatprep.subr.bf16.mxu0 0
        %3970 = vmatpush1.bf16.msra.mxu0 %v3784
        %3971 = vmatprep.subr.bf16.mxu0 0
        %3972 = vmatpush1.bf16.msra.mxu0 %v3785
        %3973 = vmatprep.subr.bf16.mxu0 0
        %3974 = vmatpush1.bf16.msra.mxu0 %v3786
        %3975 = vmatprep.subr.bf16.mxu0 0
        %3976 = vmatpush1.bf16.msra.mxu0 %v3787
        %3977 = vmatprep.subr.bf16.mxu0 0
        %3978 = vmatpush1.bf16.msra.mxu0 %v3788
        %3979 = vmatprep.subr.bf16.mxu0 0
        %3980 = vmatpush1.bf16.msra.mxu0 %v3789
        %3981 = vmatprep.subr.bf16.mxu0 0
        %3982 = vmatpush1.bf16.msra.mxu0 %v3790
        %3983 = vmatprep.mubr.bf16.mxu0 %v3340
        %3984 = vmatmul.mubr.bf16.gmra.mrb[0].mxu0 %v3339
        %v3985 = vpop.f32.mrb[0].mxu0
        %v3986 = vadd.f32 %v3922, %v3985
        %v3987 = vpop.f32.mrb[0].mxu0
        %v3988 = vpop.f32.mrb[0].mxu0
        %v3989 = vadd.f32 %v3925, %v3988
        %v3990 = vpop.f32.mrb[0].mxu0
        %3991 = vmatprep.mubr.bf16.mxu0 %v3348
        %3992 = vmatmul.mubr.bf16.gmra.mrb[0].mxu0 %v3347
        %v3993 = vpop.f32.mrb[0].mxu0
        %v3994 = vadd.f32 %v3930, %v3993
        %v3995 = vpop.f32.mrb[0].mxu0
        %v3996 = vpop.f32.mrb[0].mxu0
        %v3997 = vadd.f32 %v3933, %v3996
        %v3998 = vpop.f32.mrb[0].mxu0
        %3999 = vmatprep.mubr.bf16.mxu0 %v3356
        %4000 = vmatmul.mubr.bf16.gmra.mrb[0].mxu0 %v3355
        %v4001 = vpop.f32.mrb[0].mxu0
        %v4002 = vadd.f32 %v3938, %v4001
        %v4003 = vpop.f32.mrb[0].mxu0
        %v4004 = vpop.f32.mrb[0].mxu0
        %v4005 = vadd.f32 %v3941, %v4004
        %v4006 = vpop.f32.mrb[0].mxu0
        %4007 = vmatprep.mubr.bf16.mxu0 %v3364
        %4008 = vmatmul.mubr.bf16.gmra.mrb[0].mxu0 %v3363
        %v4009 = vpop.f32.mrb[0].mxu0
        %v4010 = vadd.f32 %v3946, %v4009
        %v4011 = vpop.f32.mrb[0].mxu0
        %v4012 = vpop.f32.mrb[0].mxu0
        %v4013 = vpop.f32.mrb[0].mxu0
        %4014 = vdwg.mxu0
        %4015 = vmatprep.subr.bf16.mxu0 0
        %4016 = vmatpush1.bf16.msra.mxu0 %v3791
        %4017 = vmatprep.subr.bf16.mxu0 0
        %4018 = vmatpush1.bf16.msra.mxu0 %v3792
        %4019 = vmatprep.subr.bf16.mxu0 0
        %4020 = vmatpush1.bf16.msra.mxu0 %v3793
        %4021 = vmatprep.subr.bf16.mxu0 0
        %4022 = vmatpush1.bf16.msra.mxu0 %v3794
        %4023 = vmatprep.subr.bf16.mxu0 0
        %4024 = vmatpush1.bf16.msra.mxu0 %v3795
        %4025 = vmatprep.subr.bf16.mxu0 0
        %4026 = vmatpush1.bf16.msra.mxu0 %v3796
        %4027 = vmatprep.subr.bf16.mxu0 0
        %4028 = vmatpush1.bf16.msra.mxu0 %v3797
        %4029 = vmatprep.subr.bf16.mxu0 0
        %4030 = vmatpush1.bf16.msra.mxu0 %v3798
        %4031 = vmatprep.subr.bf16.mxu0 0
        %4032 = vmatpush1.bf16.msra.mxu0 %v3799
        %4033 = vmatprep.subr.bf16.mxu0 0
        %4034 = vmatpush1.bf16.msra.mxu0 %v3800
        %4035 = vmatprep.subr.bf16.mxu0 0
        %4036 = vmatpush1.bf16.msra.mxu0 %v3801
        %4037 = vmatprep.subr.bf16.mxu0 0
        %4038 = vmatpush1.bf16.msra.mxu0 %v3802
        %4039 = vmatprep.subr.bf16.mxu0 0
        %4040 = vmatpush1.bf16.msra.mxu0 %v3803
        %4041 = vmatprep.subr.bf16.mxu0 0
        %4042 = vmatpush1.bf16.msra.mxu0 %v3804
        %4043 = vmatprep.subr.bf16.mxu0 0
        %4044 = vmatpush1.bf16.msra.mxu0 %v3805
        %4045 = vmatprep.subr.bf16.mxu0 0
        %4046 = vmatpush1.bf16.msra.mxu0 %v3806
        %4047 = vmatprep.mubr.bf16.mxu0 %v3342
        %4048 = vmatmul.mubr.bf16.gmra.mrb[0].mxu0 %v3341
        %v4049 = vpop.f32.mrb[0].mxu0
        %v4050 = vadd.f32 %v3986, %v4049
        %v4051 = vpop.f32.mrb[0].mxu0
        %v4052 = vpop.f32.mrb[0].mxu0
        %v4053 = vadd.f32 %v3989, %v4052
        %v4054 = vpop.f32.mrb[0].mxu0
        %4055 = vmatprep.mubr.bf16.mxu0 %v3350
        %4056 = vmatmul.mubr.bf16.gmra.mrb[0].mxu0 %v3349
        %v4057 = vpop.f32.mrb[0].mxu0
        %v4058 = vadd.f32 %v3994, %v4057
        %v4059 = vpop.f32.mrb[0].mxu0
        %v4060 = vpop.f32.mrb[0].mxu0
        %v4061 = vadd.f32 %v3997, %v4060
        %v4062 = vpop.f32.mrb[0].mxu0
        %4063 = vmatprep.mubr.bf16.mxu0 %v3358
        %4064 = vmatmul.mubr.bf16.gmra.mrb[0].mxu0 %v3357
        %v4065 = vpop.f32.mrb[0].mxu0
        %v4066 = vadd.f32 %v4002, %v4065
        %v4067 = vpop.f32.mrb[0].mxu0
        %v4068 = vpop.f32.mrb[0].mxu0
        %v4069 = vadd.f32 %v4005, %v4068
        %v4070 = vpop.f32.mrb[0].mxu0
        %4071 = vmatprep.mubr.bf16.mxu0 %v3366
        %4072 = vmatmul.mubr.bf16.gmra.mrb[0].mxu0 %v3365
        %v4073 = vpop.f32.mrb[0].mxu0
        %v4074 = vadd.f32 %v4010, %v4073
        %v4075 = vpop.f32.mrb[0].mxu0
        %v4076 = vpop.f32.mrb[0].mxu0
        %v4077 = vpop.f32.mrb[0].mxu0
        %4078 = vdwg.mxu0
        %4079 = vmatprep.subr.bf16.mxu0 0
        %4080 = vmatpush1.bf16.msra.mxu0 %v3807
        %4081 = vmatprep.subr.bf16.mxu0 0
        %4082 = vmatpush1.bf16.msra.mxu0 %v3808
        %4083 = vmatprep.subr.bf16.mxu0 0
        %4084 = vmatpush1.bf16.msra.mxu0 %v3809
        %4085 = vmatprep.subr.bf16.mxu0 0
        %4086 = vmatpush1.bf16.msra.mxu0 %v3810
        %4087 = vmatprep.subr.bf16.mxu0 0
        %4088 = vmatpush1.bf16.msra.mxu0 %v3811
        %4089 = vmatprep.subr.bf16.mxu0 0
        %4090 = vmatpush1.bf16.msra.mxu0 %v3812
        %4091 = vmatprep.subr.bf16.mxu0 0
        %4092 = vmatpush1.bf16.msra.mxu0 %v3813
        %4093 = vmatprep.subr.bf16.mxu0 0
        %4094 = vmatpush1.bf16.msra.mxu0 %v3814
        %4095 = vmatprep.subr.bf16.mxu0 0
        %4096 = vmatpush1.bf16.msra.mxu0 %v3815
        %4097 = vmatprep.subr.bf16.mxu0 0
        %4098 = vmatpush1.bf16.msra.mxu0 %v3816
        %4099 = vmatprep.subr.bf16.mxu0 0
        %4100 = vmatpush1.bf16.msra.mxu0 %v3817
        %4101 = vmatprep.subr.bf16.mxu0 0
        %4102 = vmatpush1.bf16.msra.mxu0 %v3818
        %4103 = vmatprep.subr.bf16.mxu0 0
        %4104 = vmatpush1.bf16.msra.mxu0 %v3819
        %4105 = vmatprep.subr.bf16.mxu0 0
        %4106 = vmatpush1.bf16.msra.mxu0 %v3820
        %4107 = vmatprep.subr.bf16.mxu0 0
        %4108 = vmatpush1.bf16.msra.mxu0 %v3821
        %4109 = vmatprep.subr.bf16.mxu0 0
        %4110 = vmatpush1.bf16.msra.mxu0 %v3822
        %4111 = vmatprep.mubr.bf16.mxu0 %v3344
        %4112 = vmatmul.mubr.bf16.gmra.mrb[0].mxu0 %v3343
        %v4113 = vpop.f32.mrb[0].mxu0
        %v4114 = vadd.f32 %v4050, %v4113
        %v4115 = vpop.f32.mrb[0].mxu0
        %v4116 = vpop.f32.mrb[0].mxu0
        %v4117 = vadd.f32 %v4053, %v4116
        %v4118 = vpop.f32.mrb[0].mxu0
        %4119 = vmatprep.mubr.bf16.mxu0 %v3352
        %4120 = vmatmul.mubr.bf16.gmra.mrb[0].mxu0 %v3351
        %v4121 = vpop.f32.mrb[0].mxu0
        %v4122 = vadd.f32 %v4058, %v4121
        %v4123 = vpop.f32.mrb[0].mxu0
        %v4124 = vpop.f32.mrb[0].mxu0
        %v4125 = vadd.f32 %v4061, %v4124
        %v4126 = vpop.f32.mrb[0].mxu0
        %4127 = vmatprep.mubr.bf16.mxu0 %v3360
        %4128 = vmatmul.mubr.bf16.gmra.mrb[0].mxu0 %v3359
        %v4129 = vpop.f32.mrb[0].mxu0
        %v4130 = vadd.f32 %v4066, %v4129
        %v4131 = vpop.f32.mrb[0].mxu0
        %v4132 = vpop.f32.mrb[0].mxu0
        %v4133 = vadd.f32 %v4069, %v4132
        %v4134 = vpop.f32.mrb[0].mxu0
        %4135 = vmatprep.mubr.bf16.mxu0 %v3368
        %4136 = vmatmul.mubr.bf16.gmra.mrb[0].mxu0 %v3367
        %v4137 = vpop.f32.mrb[0].mxu0
        %v4138 = vadd.f32 %v4074, %v4137
        %v4139 = vpop.f32.mrb[0].mxu0
        %v4140 = vpop.f32.mrb[0].mxu0
        %v4141 = vpop.f32.mrb[0].mxu0
        %4142 = vdwg.mxu0
        %vm4143 = vcmp.ge.f32.partialorder %v4114, 0.0
        %vm4144 = vcmp.ge.f32.partialorder %v4117, 0.0
        %vm4145 = vcmp.ge.f32.partialorder %v4122, 0.0
        %vm4146 = vcmp.ge.f32.partialorder %v4125, 0.0
        %vm4147 = vcmp.ge.f32.partialorder %v4130, 0.0
        %vm4148 = vcmp.ge.f32.partialorder %v4133, 0.0
        %vm4149 = vcmp.ge.f32.partialorder %v4138, 0.0
        %v4150 = vmul.f32 %v4114, 0.01
        %v4151 = vmul.f32 %v4117, 0.01
        %v4152 = vmul.f32 %v4122, 0.01
        %v4153 = vmul.f32 %v4125, 0.01
        %v4154 = vmul.f32 %v4130, 0.01
        %v4155 = vmul.f32 %v4133, 0.01
        %v4156 = vmul.f32 %v4138, 0.01
        %v4157 = vsel %vm4143, %v4114, %v4150
        %v4158 = vsel %vm4144, %v4117, %v4151
        %v4159 = vsel %vm4145, %v4122, %v4152
        %v4160 = vsel %vm4146, %v4125, %v4153
        %v4161 = vsel %vm4147, %v4130, %v4154
        %v4162 = vsel %vm4148, %v4133, %v4155
        %v4163 = vsel %vm4149, %v4138, %v4156
        %4164 = vst [vmem:[#allocation2] sm:$0x3] -inf
        %4165 = vst [vmem:[#allocation2 + $0x2] sm:$0xff] %v4157
        %4166 = vst [vmem:[#allocation2 + $0xa] sm:$0xff] %v4158
        %4167 = vst [vmem:[#allocation2 + $0x12] sm:$0xff] %v4159
        %4168 = vst [vmem:[#allocation2 + $0x1a] sm:$0xff] %v4160
        %4169 = vst [vmem:[#allocation2 + $0x22] sm:$0xff] %v4161
        %4170 = vst [vmem:[#allocation2 + $0x2a] sm:$0xff] %v4162
        %4171 = vst [vmem:[#allocation2 + $0x32] sm:$0x3] %v4163
        %v4172 = vld [vmem:[#allocation2] ss:$4 sm:$0xff]
        %s4173 = scalar_lea.vmem [#allocation2], 32
        %v4174 = vld [vmem:[%s4173] ss:$4 sm:$0x1f]
        %v4175 = vld [vmem:[%s1309] ss:$4 sm:$0xff]
        %s4176 = scalar_lea.vmem [#allocation2], 33
        %v4177 = vld [vmem:[%s4176] ss:$4 sm:$0x1f]
        %v4178 = vmax.f32 %v4172, %v4175
        %v4179 = vmax.f32 %v4174, %v4177
        %v4180 = vld [vmem:[%s1339] ss:$4 sm:$0xff]
        %s4181 = scalar_lea.vmem [#allocation2], 34
        %v4182 = vld [vmem:[%s4181] ss:$4 sm:$0x1f]
        %v4183 = vmax.f32 %v4178, %v4180
        %v4184 = vmax.f32 %v4179, %v4182
        %v4185 = vld [vmem:[%s1369] ss:$4 sm:$0xff]
        %s4186 = scalar_lea.vmem [#allocation2], 35
        %v4187 = vld [vmem:[%s4186] ss:$4 sm:$0x1f]
        %v4188 = vmax.f32 %v4183, %v4185
        %v4189 = vmax.f32 %v4184, %v4187
        %v4190 = vld [vmem:[%s593] sm:$0xff]
        %v4191 = vld [vmem:[%s593 + $0x8] sm:$0xff]
        %v4192 = vld [vmem:[%s593 + $0x10] sm:$0xff]
        %v4193 = vld [vmem:[%s593 + $0x18] sm:$0xff]
        %v4194 = vld [vmem:[%s593 + $0x20] sm:$0xff]
        %v4195 = vld [vmem:[%s593 + $0x28] sm:$0xff]
        %v4196 = vld [vmem:[%s593 + $0x30] sm:$0xff]
        %v4197 = vld [vmem:[%s593 + $0x38] sm:$0xff]
        %v4198 = vld [vmem:[%s593 + $0x40] sm:$0xff]
        %v4199 = vld [vmem:[%s593 + $0x48] sm:$0xff]
        %v4200 = vld [vmem:[%s10] sm:$0xf]
        %v4201 = vld [vmem:[%s10 + $0x4] sm:$0xf]
        %v4202 = vld [vmem:[%s10 + $0x8] sm:$0xf]
        %v4203 = vld [vmem:[%s10 + $0xc] sm:$0xf]
        %v4204 = vld [vmem:[%s10 + $0x10] sm:$0xf]
        %v4205 = vld [vmem:[%s10 + $0x14] sm:$0xf]
        %v4206 = vld [vmem:[%s10 + $0x18] sm:$0xf]
        %v4207 = vld [vmem:[%s10 + $0x1c] sm:$0xf]
        %v4208 = vld [vmem:[%s10 + $0x20] sm:$0xf]
        %v4209 = vld [vmem:[%s10 + $0x24] sm:$0xf]
        %v4210 = vld [vmem:[%s10 + $0x28] sm:$0xf]
        %v4211 = vld [vmem:[%s10 + $0x2c] sm:$0xf]
        %v4212 = vld [vmem:[%s10 + $0x30] sm:$0xf]
        %v4213 = vld [vmem:[%s10 + $0x34] sm:$0xf]
        %v4214 = vld [vmem:[%s10 + $0x38] sm:$0xf]
        %v4215 = vld [vmem:[%s10 + $0x3c] sm:$0xf]
        %v4216 = vld [vmem:[%s10 + $0x40] sm:$0xf]
        %v4217 = vld [vmem:[%s10 + $0x44] sm:$0xf]
        %v4218 = vld [vmem:[%s10 + $0x48] sm:$0xf]
        %v4219 = vld [vmem:[%s10 + $0x4c] sm:$0xf]
        %v4220 = vld [vmem:[%s10 + $0x50] sm:$0xf]
        %v4221 = vld [vmem:[%s10 + $0x54] sm:$0xf]
        %v4222 = vld [vmem:[%s10 + $0x58] sm:$0xf]
        %v4223 = vld [vmem:[%s10 + $0x5c] sm:$0xf]
        %v4224 = vld [vmem:[%s10 + $0x60] sm:$0xf]
        %v4225 = vld [vmem:[%s10 + $0x64] sm:$0xf]
        %v4226 = vld [vmem:[%s10 + $0x68] sm:$0xf]
        %v4227 = vld [vmem:[%s10 + $0x6c] sm:$0xf]
        %v4228 = vld [vmem:[%s10 + $0x70] sm:$0xf]
        %v4229 = vld [vmem:[%s10 + $0x74] sm:$0xf]
        %v4230 = vld [vmem:[%s10 + $0x78] sm:$0xf]
        %v4231 = vld [vmem:[%s10 + $0x7c] sm:$0xf]
        %v4232 = vld [vmem:[%s10 + $0x80] sm:$0xf]
        %v4233 = vld [vmem:[%s10 + $0x84] sm:$0xf]
        %v4234 = vld [vmem:[%s10 + $0x88] sm:$0xf]
        %v4235 = vld [vmem:[%s10 + $0x8c] sm:$0xf]
        %v4236 = vld [vmem:[%s10 + $0x90] sm:$0xf]
        %v4237 = vld [vmem:[%s10 + $0x94] sm:$0xf]
        %v4238 = vld [vmem:[%s10 + $0x98] sm:$0xf]
        %v4239 = vld [vmem:[%s10 + $0x9c] sm:$0xf]
        %v4240 = vld [vmem:[%s10 + $0xa0] sm:$0xf]
        %v4241 = vld [vmem:[%s10 + $0xa4] sm:$0xf]
        %v4242 = vld [vmem:[%s10 + $0xa8] sm:$0xf]
        %v4243 = vld [vmem:[%s10 + $0xac] sm:$0xf]
        %v4244 = vld [vmem:[%s10 + $0xb0] sm:$0xf]
        %v4245 = vld [vmem:[%s10 + $0xb4] sm:$0xf]
        %v4246 = vld [vmem:[%s10 + $0xb8] sm:$0xf]
        %v4247 = vld [vmem:[%s10 + $0xbc] sm:$0xf]
        %v4248 = vld [vmem:[%s10 + $0xc0] sm:$0xf]
        %v4249 = vld [vmem:[%s10 + $0xc4] sm:$0xf]
        %v4250 = vld [vmem:[%s10 + $0xc8] sm:$0xf]
        %v4251 = vld [vmem:[%s10 + $0xcc] sm:$0xf]
        %v4252 = vld [vmem:[%s10 + $0xd0] sm:$0xf]
        %v4253 = vld [vmem:[%s10 + $0xd4] sm:$0xf]
        %v4254 = vld [vmem:[%s10 + $0xd8] sm:$0xf]
        %v4255 = vld [vmem:[%s10 + $0xdc] sm:$0xf]
        %v4256 = vld [vmem:[%s10 + $0xe0] sm:$0xf]
        %v4257 = vld [vmem:[%s10 + $0xe4] sm:$0xf]
        %v4258 = vld [vmem:[%s10 + $0xe8] sm:$0xf]
        %v4259 = vld [vmem:[%s10 + $0xec] sm:$0xf]
        %v4260 = vld [vmem:[%s10 + $0xf0] sm:$0xf]
        %v4261 = vld [vmem:[%s10 + $0xf4] sm:$0xf]
        %v4262 = vld [vmem:[%s10 + $0xf8] sm:$0xf]
        %v4263 = vld [vmem:[%s10 + $0xfc] sm:$0xf]
        %v4264 = vld [vmem:[%s11] sm:$0x1]
        %v4266 = vlaneseq
        %v4267 = vshrl.u32 %v4266, 7
        %v4268 = vsub.s32 0, %v4267
        %v4269 = vrot.slane %v4264, %v4268
        %v4281 = vunpack.c.l.b16 %v4190
        %v4282 = vunpack.c.h.b16 %v4190
        %v4283 = vunpack.c.l.b16 %v4191
        %v4284 = vunpack.c.h.b16 %v4191
        %v4285 = vunpack.c.l.b16 %v4192
        %v4286 = vunpack.c.h.b16 %v4192
        %v4287 = vunpack.c.l.b16 %v4193
        %v4288 = vunpack.c.h.b16 %v4193
        %v4289 = vunpack.c.l.b16 %v4194
        %v4290 = vunpack.c.h.b16 %v4194
        %v4291 = vunpack.c.l.b16 %v4195
        %v4292 = vunpack.c.h.b16 %v4195
        %v4293 = vunpack.c.l.b16 %v4196
        %v4294 = vunpack.c.h.b16 %v4196
        %v4295 = vunpack.c.l.b16 %v4197
        %v4296 = vunpack.c.h.b16 %v4197
        %v4297 = vunpack.c.l.b16 %v4198
        %v4298 = vunpack.c.h.b16 %v4198
        %v4299 = vunpack.c.l.b16 %v4199
        %v4300 = vunpack.c.h.b16 %v4199
        %v4301 = vpack.c.b16 %v4285, %v4281
        %v4302 = vpack.c.b16 %v4286, %v4282
        %v4303 = vpack.c.b16 %v4287, %v4283
        %v4304 = vpack.c.b16 %v4288, %v4284
        %v4305 = vpack.c.b16 %v4293, %v4289
        %v4306 = vpack.c.b16 %v4294, %v4290
        %v4307 = vpack.c.b16 %v4295, %v4291
        %v4308 = vpack.c.b16 %v4296, %v4292
        %v4309 = vpack.c.b16 %v4297, %v4297
        %v4310 = vpack.c.b16 %v4298, %v4298
        %v4311 = vpack.c.b16 %v4299, %v4299
        %v4312 = vpack.c.b16 %v4300, %v4300
        %v4389 = vunpack.c.l.b16 %v4200
        %v4390 = vunpack.c.l.b16 %v4201
        %v4391 = vunpack.c.l.b16 %v4202
        %v4392 = vunpack.c.l.b16 %v4203
        %v4393 = vunpack.c.l.b16 %v4204
        %v4394 = vunpack.c.l.b16 %v4205
        %v4395 = vunpack.c.l.b16 %v4206
        %v4396 = vunpack.c.l.b16 %v4207
        %v4397 = vunpack.c.l.b16 %v4208
        %v4398 = vunpack.c.l.b16 %v4209
        %v4399 = vunpack.c.l.b16 %v4210
        %v4400 = vunpack.c.l.b16 %v4211
        %v4401 = vunpack.c.l.b16 %v4212
        %v4402 = vunpack.c.l.b16 %v4213
        %v4403 = vunpack.c.l.b16 %v4214
        %v4404 = vunpack.c.l.b16 %v4215
        %v4405 = vunpack.c.l.b16 %v4216
        %v4406 = vunpack.c.l.b16 %v4217
        %v4407 = vunpack.c.l.b16 %v4218
        %v4408 = vunpack.c.l.b16 %v4219
        %v4409 = vunpack.c.l.b16 %v4220
        %v4410 = vunpack.c.l.b16 %v4221
        %v4411 = vunpack.c.l.b16 %v4222
        %v4412 = vunpack.c.l.b16 %v4223
        %v4413 = vunpack.c.l.b16 %v4224
        %v4414 = vunpack.c.l.b16 %v4225
        %v4415 = vunpack.c.l.b16 %v4226
        %v4416 = vunpack.c.l.b16 %v4227
        %v4417 = vunpack.c.l.b16 %v4228
        %v4418 = vunpack.c.l.b16 %v4229
        %v4419 = vunpack.c.l.b16 %v4230
        %v4420 = vunpack.c.l.b16 %v4231
        %v4421 = vunpack.c.l.b16 %v4232
        %v4422 = vunpack.c.l.b16 %v4233
        %v4423 = vunpack.c.l.b16 %v4234
        %v4424 = vunpack.c.l.b16 %v4235
        %v4425 = vunpack.c.l.b16 %v4236
        %v4426 = vunpack.c.l.b16 %v4237
        %v4427 = vunpack.c.l.b16 %v4238
        %v4428 = vunpack.c.l.b16 %v4239
        %v4429 = vunpack.c.l.b16 %v4240
        %v4430 = vunpack.c.l.b16 %v4241
        %v4431 = vunpack.c.l.b16 %v4242
        %v4432 = vunpack.c.l.b16 %v4243
        %v4433 = vunpack.c.l.b16 %v4244
        %v4434 = vunpack.c.l.b16 %v4245
        %v4435 = vunpack.c.l.b16 %v4246
        %v4436 = vunpack.c.l.b16 %v4247
        %v4437 = vunpack.c.l.b16 %v4248
        %v4438 = vunpack.c.l.b16 %v4249
        %v4439 = vunpack.c.l.b16 %v4250
        %v4440 = vunpack.c.l.b16 %v4251
        %v4441 = vunpack.c.l.b16 %v4252
        %v4442 = vunpack.c.l.b16 %v4253
        %v4443 = vunpack.c.l.b16 %v4254
        %v4444 = vunpack.c.l.b16 %v4255
        %v4445 = vunpack.c.l.b16 %v4256
        %v4446 = vunpack.c.l.b16 %v4257
        %v4447 = vunpack.c.l.b16 %v4258
        %v4448 = vunpack.c.l.b16 %v4259
        %v4449 = vunpack.c.l.b16 %v4260
        %v4450 = vunpack.c.l.b16 %v4261
        %v4451 = vunpack.c.l.b16 %v4262
        %v4452 = vunpack.c.l.b16 %v4263
        %v4453 = vpack.c.b16 %v4390, %v4389
        %v4454 = vpack.c.b16 %v4392, %v4391
        %v4455 = vpack.c.b16 %v4394, %v4393
        %v4456 = vpack.c.b16 %v4396, %v4395
        %v4457 = vpack.c.b16 %v4398, %v4397
        %v4458 = vpack.c.b16 %v4400, %v4399
        %v4459 = vpack.c.b16 %v4402, %v4401
        %v4460 = vpack.c.b16 %v4404, %v4403
        %v4461 = vpack.c.b16 %v4406, %v4405
        %v4462 = vpack.c.b16 %v4408, %v4407
        %v4463 = vpack.c.b16 %v4410, %v4409
        %v4464 = vpack.c.b16 %v4412, %v4411
        %v4465 = vpack.c.b16 %v4414, %v4413
        %v4466 = vpack.c.b16 %v4416, %v4415
        %v4467 = vpack.c.b16 %v4418, %v4417
        %v4468 = vpack.c.b16 %v4420, %v4419
        %v4469 = vpack.c.b16 %v4422, %v4421
        %v4470 = vpack.c.b16 %v4424, %v4423
        %v4471 = vpack.c.b16 %v4426, %v4425
        %v4472 = vpack.c.b16 %v4428, %v4427
        %v4473 = vpack.c.b16 %v4430, %v4429
        %v4474 = vpack.c.b16 %v4432, %v4431
        %v4475 = vpack.c.b16 %v4434, %v4433
        %v4476 = vpack.c.b16 %v4436, %v4435
        %v4477 = vpack.c.b16 %v4438, %v4437
        %v4478 = vpack.c.b16 %v4440, %v4439
        %v4479 = vpack.c.b16 %v4442, %v4441
        %v4480 = vpack.c.b16 %v4444, %v4443
        %v4481 = vpack.c.b16 %v4446, %v4445
        %v4482 = vpack.c.b16 %v4448, %v4447
        %v4483 = vpack.c.b16 %v4450, %v4449
        %v4484 = vpack.c.b16 %v4452, %v4451
        %4517 = vmatprep.subr.bf16.mxu0 0
        %4518 = vmatpush1.bf16.msra.mxu0 %v4453
        %4519 = vmatprep.subr.bf16.mxu0 0
        %4520 = vmatpush1.bf16.msra.mxu0 %v4454
        %4521 = vmatprep.subr.bf16.mxu0 0
        %4522 = vmatpush1.bf16.msra.mxu0 %v4455
        %4523 = vmatprep.subr.bf16.mxu0 0
        %4524 = vmatpush1.bf16.msra.mxu0 %v4456
        %4525 = vmatprep.subr.bf16.mxu0 0
        %4526 = vmatpush1.bf16.msra.mxu0 %v4457
        %4527 = vmatprep.subr.bf16.mxu0 0
        %4528 = vmatpush1.bf16.msra.mxu0 %v4458
        %4529 = vmatprep.subr.bf16.mxu0 0
        %4530 = vmatpush1.bf16.msra.mxu0 %v4459
        %4531 = vmatprep.subr.bf16.mxu0 0
        %4532 = vmatpush1.bf16.msra.mxu0 %v4460
        %4533 = vmatprep.subr.bf16.mxu0 0
        %4534 = vmatpush1.bf16.msra.mxu0 %v4461
        %4535 = vmatprep.subr.bf16.mxu0 0
        %4536 = vmatpush1.bf16.msra.mxu0 %v4462
        %4537 = vmatprep.subr.bf16.mxu0 0
        %4538 = vmatpush1.bf16.msra.mxu0 %v4463
        %4539 = vmatprep.subr.bf16.mxu0 0
        %4540 = vmatpush1.bf16.msra.mxu0 %v4464
        %4541 = vmatprep.subr.bf16.mxu0 0
        %4542 = vmatpush1.bf16.msra.mxu0 %v4465
        %4543 = vmatprep.subr.bf16.mxu0 0
        %4544 = vmatpush1.bf16.msra.mxu0 %v4466
        %4545 = vmatprep.subr.bf16.mxu0 0
        %4546 = vmatpush1.bf16.msra.mxu0 %v4467
        %4547 = vmatprep.subr.bf16.mxu0 0
        %4548 = vmatpush1.bf16.msra.mxu0 %v4468
        %4549 = vmatprep.mubr.bf16.mxu0 %v4302
        %4550 = vmatmul.mubr.bf16.gmra.mrb[0].mxu0 %v4301
        %v4551 = vpop.f32.mrb[0].mxu0
        %v4552 = vadd.f32 %v4269, %v4551
        %v4553 = vpop.f32.mrb[0].mxu0
        %v4554 = vpop.f32.mrb[0].mxu0
        %v4555 = vadd.f32 %v4269, %v4554
        %v4556 = vpop.f32.mrb[0].mxu0
        %4557 = vmatprep.mubr.bf16.mxu0 %v4306
        %4558 = vmatmul.mubr.bf16.gmra.mrb[0].mxu0 %v4305
        %v4559 = vpop.f32.mrb[0].mxu0
        %v4560 = vadd.f32 %v4269, %v4559
        %v4561 = vpop.f32.mrb[0].mxu0
        %v4562 = vpop.f32.mrb[0].mxu0
        %v4563 = vadd.f32 %v4269, %v4562
        %v4564 = vpop.f32.mrb[0].mxu0
        %4565 = vmatprep.mubr.bf16.mxu0 %v4310
        %4566 = vmatmul.mubr.bf16.gmra.mrb[0].mxu0 %v4309
        %v4567 = vpop.f32.mrb[0].mxu0
        %v4568 = vadd.f32 %v4269, %v4567
        %v4569 = vpop.f32.mrb[0].mxu0
        %v4570 = vpop.f32.mrb[0].mxu0
        %v4571 = vpop.f32.mrb[0].mxu0
        %4572 = vdwg.mxu0
        %4573 = vmatprep.subr.bf16.mxu0 0
        %4574 = vmatpush1.bf16.msra.mxu0 %v4469
        %4575 = vmatprep.subr.bf16.mxu0 0
        %4576 = vmatpush1.bf16.msra.mxu0 %v4470
        %4577 = vmatprep.subr.bf16.mxu0 0
        %4578 = vmatpush1.bf16.msra.mxu0 %v4471
        %4579 = vmatprep.subr.bf16.mxu0 0
        %4580 = vmatpush1.bf16.msra.mxu0 %v4472
        %4581 = vmatprep.subr.bf16.mxu0 0
        %4582 = vmatpush1.bf16.msra.mxu0 %v4473
        %4583 = vmatprep.subr.bf16.mxu0 0
        %4584 = vmatpush1.bf16.msra.mxu0 %v4474
        %4585 = vmatprep.subr.bf16.mxu0 0
        %4586 = vmatpush1.bf16.msra.mxu0 %v4475
        %4587 = vmatprep.subr.bf16.mxu0 0
        %4588 = vmatpush1.bf16.msra.mxu0 %v4476
        %4589 = vmatprep.subr.bf16.mxu0 0
        %4590 = vmatpush1.bf16.msra.mxu0 %v4477
        %4591 = vmatprep.subr.bf16.mxu0 0
        %4592 = vmatpush1.bf16.msra.mxu0 %v4478
        %4593 = vmatprep.subr.bf16.mxu0 0
        %4594 = vmatpush1.bf16.msra.mxu0 %v4479
        %4595 = vmatprep.subr.bf16.mxu0 0
        %4596 = vmatpush1.bf16.msra.mxu0 %v4480
        %4597 = vmatprep.subr.bf16.mxu0 0
        %4598 = vmatpush1.bf16.msra.mxu0 %v4481
        %4599 = vmatprep.subr.bf16.mxu0 0
        %4600 = vmatpush1.bf16.msra.mxu0 %v4482
        %4601 = vmatprep.subr.bf16.mxu0 0
        %4602 = vmatpush1.bf16.msra.mxu0 %v4483
        %4603 = vmatprep.subr.bf16.mxu0 0
        %4604 = vmatpush1.bf16.msra.mxu0 %v4484
        %4605 = vmatprep.mubr.bf16.mxu0 %v4304
        %4606 = vmatmul.mubr.bf16.gmra.mrb[0].mxu0 %v4303
        %v4607 = vpop.f32.mrb[0].mxu0
        %v4608 = vadd.f32 %v4552, %v4607
        %v4609 = vpop.f32.mrb[0].mxu0
        %v4610 = vpop.f32.mrb[0].mxu0
        %v4611 = vadd.f32 %v4555, %v4610
        %v4612 = vpop.f32.mrb[0].mxu0
        %4613 = vmatprep.mubr.bf16.mxu0 %v4308
        %4614 = vmatmul.mubr.bf16.gmra.mrb[0].mxu0 %v4307
        %v4615 = vpop.f32.mrb[0].mxu0
        %v4616 = vadd.f32 %v4560, %v4615
        %v4617 = vpop.f32.mrb[0].mxu0
        %v4618 = vpop.f32.mrb[0].mxu0
        %v4619 = vadd.f32 %v4563, %v4618
        %v4620 = vpop.f32.mrb[0].mxu0
        %4621 = vmatprep.mubr.bf16.mxu0 %v4312
        %4622 = vmatmul.mubr.bf16.gmra.mrb[0].mxu0 %v4311
        %v4623 = vpop.f32.mrb[0].mxu0
        %v4624 = vadd.f32 %v4568, %v4623
        %v4625 = vpop.f32.mrb[0].mxu0
        %v4626 = vpop.f32.mrb[0].mxu0
        %v4627 = vpop.f32.mrb[0].mxu0
        %4628 = vdwg.mxu0
        %vm4629 = vcmp.ge.f32.partialorder %v4608, 0.0
        %vm4630 = vcmp.ge.f32.partialorder %v4611, 0.0
        %vm4631 = vcmp.ge.f32.partialorder %v4616, 0.0
        %vm4632 = vcmp.ge.f32.partialorder %v4619, 0.0
        %vm4633 = vcmp.ge.f32.partialorder %v4624, 0.0
        %v4634 = vmul.f32 %v4608, 0.01
        %v4635 = vmul.f32 %v4611, 0.01
        %v4636 = vmul.f32 %v4616, 0.01
        %v4637 = vmul.f32 %v4619, 0.01
        %v4638 = vmul.f32 %v4624, 0.01
        %v4639 = vsel %vm4629, %v4608, %v4634
        %v4640 = vsel %vm4630, %v4611, %v4635
        %v4641 = vsel %vm4631, %v4616, %v4636
        %v4642 = vsel %vm4632, %v4619, %v4637
        %v4643 = vsel %vm4633, %v4624, %v4638
        %vm4644 = vcmask 517120
        %4645 = vst.msk [vmem:[#allocation2] sm:$0x3] %vm4644, -inf
        %4646 = vst.msk [vmem:[#allocation2 + $0x2] sm:$0xff] %vm799, %v4639
        %4647 = vst.msk [vmem:[#allocation2 + $0xa] sm:$0xff] %vm799, %v4640
        %4648 = vst.msk [vmem:[#allocation2 + $0x12] sm:$0xff] %vm799, %v4641
        %4649 = vst.msk [vmem:[#allocation2 + $0x1a] sm:$0xff] %vm799, %v4642
        %4650 = vst.msk [vmem:[#allocation2 + $0x22] sm:$0xff] %vm799, %v4643
        %4651 = vst.msk [vmem:[#allocation2 + $0x2a] sm:$0x3] %vm4644, -inf
        %v4652 = vld [vmem:[#allocation2] ss:$4 sm:$0xff]
        %v4653 = vld [vmem:[%s4173] ss:$4 sm:$0x7]
        %v4654 = vld [vmem:[%s1309] ss:$4 sm:$0xff]
        %v4655 = vld [vmem:[%s4176] ss:$4 sm:$0x7]
        %v4656 = vmax.f32 %v4652, %v4654
        %v4657 = vmax.f32 %v4653, %v4655
        %v4658 = vld [vmem:[%s1339] ss:$4 sm:$0xff]
        %v4659 = vld [vmem:[%s4181] ss:$4 sm:$0x7]
        %v4660 = vmax.f32 %v4656, %v4658
        %v4661 = vmax.f32 %v4657, %v4659
        %v4662 = vld [vmem:[%s1369] ss:$4 sm:$0xff]
        %v4663 = vld [vmem:[%s4186] ss:$4 sm:$0x7]
        %v4664 = vmax.f32 %v4660, %v4662
        %v4665 = vmax.f32 %v4661, %v4663
        %v4666 = vld [vmem:[%s13] sm:$0x1]
        %v4669 = vrot.slane %v4664, 4
        %v4670 = vrot.slane %v4665, 4
        %v4671 = vsel %vm1526, %v4669, %v4670
        %v4674 = vsel %vm1526, 0.0, %v4669
        %v4675 = vsel %vm1550, %v4671, 0.0
        %v4678 = vrot.slane %v4674, 1
        %v4679 = vrot.slane %v4675, 1
        %v4680 = vsel %vm1550, %v4678, %v4679
        %4681 = vrot.lane.b32.xlu0 %v4680, 64
        %v4682 = vpop.permute.xlu0 %4681
        %4683 = vrot.lane.b32.xlu0 %v4679, 64
        %v4684 = vpop.permute.xlu0 %4683
        %v4687 = vrot.slane %v4674, 2
        %v4688 = vrot.slane %v4675, 2
        %v4689 = vsel %vm1582, %v4687, %v4688
        %v4692 = vrot.slane %v4674, 3
        %v4693 = vrot.slane %v4675, 3
        %v4694 = vsel %vm1602, %v4692, %v4693
        %v4695 = vrot.slane 0.0, 3
        %v4696 = vsel %vm1602, %v4693, %v4695
        %4697 = vrot.lane.b32.xlu0 %v4694, 64
        %v4698 = vpop.permute.xlu0 %4697
        %4699 = vrot.lane.b32.xlu0 %v4696, 64
        %v4700 = vpop.permute.xlu0 %4699
        %v4703 = vrot.slane %v4674, 4
        %v4704 = vrot.slane %v4675, 4
        %v4705 = vsel %vm1526, %v4703, %v4704
        %v4706 = vrot.slane 0.0, 4
        %v4707 = vsel %vm1526, %v4704, %v4706
        %v4710 = vrot.slane %v4674, 5
        %v4711 = vrot.slane %v4675, 5
        %v4712 = vsel %vm1546, %v4710, %v4711
        %v4713 = vrot.slane 0.0, 5
        %v4714 = vsel %vm1546, %v4711, %v4713
        %4715 = vrot.lane.b32.xlu0 %v4712, 64
        %v4716 = vpop.permute.xlu0 %4715
        %4717 = vrot.lane.b32.xlu0 %v4714, 64
        %v4718 = vpop.permute.xlu0 %4717
        %v4721 = vsel %vm799, %v4674, %v4682
        %v4722 = vsel %vm799, %v4675, %v4684
        %v4723 = vsel %vm799, %v4689, %v4698
        %v4724 = vsel %vm799, %v4688, %v4700
        %v4725 = vsel %vm799, %v4705, %v4716
        %v4726 = vsel %vm799, %v4707, %v4718
        %v4727 = vpack.c.bf16 %v4722, %v4721
        %v4728 = vpack.c.bf16 %v4724, %v4723
        %v4729 = vpack.c.bf16 %v4726, %v4725
        %v4730 = vld [vmem:[%s12] sm:$0xf]
        %v4731 = vld [vmem:[%s12 + $0x4] sm:$0xf]
        %v4732 = vld [vmem:[%s12 + $0x8] sm:$0xf]
        %v4733 = vld [vmem:[%s12 + $0xc] sm:$0xf]
        %v4734 = vld [vmem:[%s12 + $0x10] sm:$0xf]
        %v4735 = vld [vmem:[%s12 + $0x14] sm:$0xf]
        %v4736 = vld [vmem:[%s12 + $0x18] sm:$0xf]
        %v4737 = vld [vmem:[%s12 + $0x1c] sm:$0xf]
        %v4738 = vld [vmem:[%s12 + $0x20] sm:$0xf]
        %v4739 = vld [vmem:[%s12 + $0x24] sm:$0xf]
        %v4740 = vld [vmem:[%s12 + $0x28] sm:$0xf]
        %v4741 = vld [vmem:[%s12 + $0x2c] sm:$0xf]
        %v4742 = vld [vmem:[%s12 + $0x30] sm:$0xf]
        %v4743 = vld [vmem:[%s12 + $0x34] sm:$0xf]
        %v4744 = vld [vmem:[%s12 + $0x38] sm:$0xf]
        %v4745 = vld [vmem:[%s12 + $0x3c] sm:$0xf]
        %v4746 = vld [vmem:[%s12 + $0x40] sm:$0xf]
        %v4747 = vld [vmem:[%s12 + $0x44] sm:$0xf]
        %v4748 = vld [vmem:[%s12 + $0x48] sm:$0xf]
        %v4749 = vld [vmem:[%s12 + $0x4c] sm:$0xf]
        %v4750 = vld [vmem:[%s12 + $0x50] sm:$0xf]
        %v4751 = vld [vmem:[%s12 + $0x54] sm:$0xf]
        %v4752 = vld [vmem:[%s12 + $0x58] sm:$0xf]
        %v4753 = vld [vmem:[%s12 + $0x5c] sm:$0xf]
        %v4754 = vld [vmem:[%s12 + $0x60] sm:$0xf]
        %v4755 = vld [vmem:[%s12 + $0x64] sm:$0xf]
        %v4756 = vld [vmem:[%s12 + $0x68] sm:$0xf]
        %v4757 = vld [vmem:[%s12 + $0x6c] sm:$0xf]
        %v4758 = vld [vmem:[%s12 + $0x70] sm:$0xf]
        %v4759 = vld [vmem:[%s12 + $0x74] sm:$0xf]
        %v4760 = vld [vmem:[%s12 + $0x78] sm:$0xf]
        %v4761 = vld [vmem:[%s12 + $0x7c] sm:$0xf]
        %v4762 = vld [vmem:[%s12 + $0x80] sm:$0xf]
        %v4763 = vld [vmem:[%s12 + $0x84] sm:$0xf]
        %v4764 = vld [vmem:[%s12 + $0x88] sm:$0xf]
        %v4765 = vld [vmem:[%s12 + $0x8c] sm:$0xf]
        %v4766 = vld [vmem:[%s12 + $0x90] sm:$0xf]
        %v4767 = vld [vmem:[%s12 + $0x94] sm:$0xf]
        %v4768 = vld [vmem:[%s12 + $0x98] sm:$0xf]
        %v4769 = vld [vmem:[%s12 + $0x9c] sm:$0xf]
        %v4770 = vld [vmem:[%s12 + $0xa0] sm:$0xf]
        %v4771 = vld [vmem:[%s12 + $0xa4] sm:$0xf]
        %v4772 = vld [vmem:[%s12 + $0xa8] sm:$0xf]
        %v4773 = vld [vmem:[%s12 + $0xac] sm:$0xf]
        %v4774 = vld [vmem:[%s12 + $0xb0] sm:$0xf]
        %v4775 = vld [vmem:[%s12 + $0xb4] sm:$0xf]
        %v4776 = vld [vmem:[%s12 + $0xb8] sm:$0xf]
        %v4777 = vld [vmem:[%s12 + $0xbc] sm:$0xf]
        %v4779 = vlaneseq
        %v4780 = vshrl.u32 %v4779, 7
        %v4781 = vsub.s32 0, %v4780
        %v4782 = vrot.slane %v4666, %v4781
        %v4832 = vunpack.c.l.b16 %v4730
        %v4833 = vunpack.c.l.b16 %v4731
        %v4834 = vunpack.c.l.b16 %v4732
        %v4835 = vunpack.c.l.b16 %v4733
        %v4836 = vunpack.c.l.b16 %v4734
        %v4837 = vunpack.c.l.b16 %v4735
        %v4838 = vunpack.c.l.b16 %v4736
        %v4839 = vunpack.c.l.b16 %v4737
        %v4840 = vunpack.c.l.b16 %v4738
        %v4841 = vunpack.c.l.b16 %v4739
        %v4842 = vunpack.c.l.b16 %v4740
        %v4843 = vunpack.c.l.b16 %v4741
        %v4844 = vunpack.c.l.b16 %v4742
        %v4845 = vunpack.c.l.b16 %v4743
        %v4846 = vunpack.c.l.b16 %v4744
        %v4847 = vunpack.c.l.b16 %v4745
        %v4848 = vunpack.c.l.b16 %v4746
        %v4849 = vunpack.c.l.b16 %v4747
        %v4850 = vunpack.c.l.b16 %v4748
        %v4851 = vunpack.c.l.b16 %v4749
        %v4852 = vunpack.c.l.b16 %v4750
        %v4853 = vunpack.c.l.b16 %v4751
        %v4854 = vunpack.c.l.b16 %v4752
        %v4855 = vunpack.c.l.b16 %v4753
        %v4856 = vunpack.c.l.b16 %v4754
        %v4857 = vunpack.c.l.b16 %v4755
        %v4858 = vunpack.c.l.b16 %v4756
        %v4859 = vunpack.c.l.b16 %v4757
        %v4860 = vunpack.c.l.b16 %v4758
        %v4861 = vunpack.c.l.b16 %v4759
        %v4862 = vunpack.c.l.b16 %v4760
        %v4863 = vunpack.c.l.b16 %v4761
        %v4864 = vunpack.c.l.b16 %v4762
        %v4865 = vunpack.c.l.b16 %v4763
        %v4866 = vunpack.c.l.b16 %v4764
        %v4867 = vunpack.c.l.b16 %v4765
        %v4868 = vunpack.c.l.b16 %v4766
        %v4869 = vunpack.c.l.b16 %v4767
        %v4870 = vunpack.c.l.b16 %v4768
        %v4871 = vunpack.c.l.b16 %v4769
        %v4872 = vunpack.c.l.b16 %v4770
        %v4873 = vunpack.c.l.b16 %v4771
        %v4874 = vunpack.c.l.b16 %v4772
        %v4875 = vunpack.c.l.b16 %v4773
        %v4876 = vunpack.c.l.b16 %v4774
        %v4877 = vunpack.c.l.b16 %v4775
        %v4878 = vunpack.c.l.b16 %v4776
        %v4879 = vunpack.c.l.b16 %v4777
        %v4880 = vpack.c.b16 %v4833, %v4832
        %v4881 = vpack.c.b16 %v4835, %v4834
        %v4882 = vpack.c.b16 %v4837, %v4836
        %v4883 = vpack.c.b16 %v4839, %v4838
        %v4884 = vpack.c.b16 %v4841, %v4840
        %v4885 = vpack.c.b16 %v4843, %v4842
        %v4886 = vpack.c.b16 %v4845, %v4844
        %v4887 = vpack.c.b16 %v4847, %v4846
        %v4888 = vpack.c.b16 %v4849, %v4848
        %v4889 = vpack.c.b16 %v4851, %v4850
        %v4890 = vpack.c.b16 %v4853, %v4852
        %v4891 = vpack.c.b16 %v4855, %v4854
        %v4892 = vpack.c.b16 %v4857, %v4856
        %v4893 = vpack.c.b16 %v4859, %v4858
        %v4894 = vpack.c.b16 %v4861, %v4860
        %v4895 = vpack.c.b16 %v4863, %v4862
        %v4896 = vpack.c.b16 %v4865, %v4864
        %v4897 = vpack.c.b16 %v4867, %v4866
        %v4898 = vpack.c.b16 %v4869, %v4868
        %v4899 = vpack.c.b16 %v4871, %v4870
        %v4900 = vpack.c.b16 %v4873, %v4872
        %v4901 = vpack.c.b16 %v4875, %v4874
        %v4902 = vpack.c.b16 %v4877, %v4876
        %v4903 = vpack.c.b16 %v4879, %v4878
        %4928 = vmatprep.subr.bf16.mxu0 0
        %4929 = vmatpush1.bf16.msra.mxu0 %v4880
        %4930 = vmatprep.subr.bf16.mxu0 0
        %4931 = vmatpush1.bf16.msra.mxu0 %v4881
        %4932 = vmatprep.subr.bf16.mxu0 0
        %4933 = vmatpush1.bf16.msra.mxu0 %v4882
        %4934 = vmatprep.subr.bf16.mxu0 0
        %4935 = vmatpush1.bf16.msra.mxu0 %v4883
        %4936 = vmatprep.subr.bf16.mxu0 0
        %4937 = vmatpush1.bf16.msra.mxu0 %v4884
        %4938 = vmatprep.subr.bf16.mxu0 0
        %4939 = vmatpush1.bf16.msra.mxu0 %v4885
        %4940 = vmatprep.subr.bf16.mxu0 0
        %4941 = vmatpush1.bf16.msra.mxu0 %v4886
        %4942 = vmatprep.subr.bf16.mxu0 0
        %4943 = vmatpush1.bf16.msra.mxu0 %v4887
        %4944 = vmatprep.subr.bf16.mxu0 0
        %4945 = vmatpush1.bf16.msra.mxu0 %v4888
        %4946 = vmatprep.subr.bf16.mxu0 0
        %4947 = vmatpush1.bf16.msra.mxu0 %v4889
        %4948 = vmatprep.subr.bf16.mxu0 0
        %4949 = vmatpush1.bf16.msra.mxu0 %v4890
        %4950 = vmatprep.subr.bf16.mxu0 0
        %4951 = vmatpush1.bf16.msra.mxu0 %v4891
        %4952 = vmatprep.subr.bf16.mxu0 0
        %4953 = vmatpush1.bf16.msra.mxu0 %v4892
        %4954 = vmatprep.subr.bf16.mxu0 0
        %4955 = vmatpush1.bf16.msra.mxu0 %v4893
        %4956 = vmatprep.subr.bf16.mxu0 0
        %4957 = vmatpush1.bf16.msra.mxu0 %v4894
        %4958 = vmatprep.subr.bf16.mxu0 0
        %4959 = vmatpush1.bf16.msra.mxu0 %v4895
        %4960 = vmatprep.mubr.bf16.mxu0 %v4728
        %4961 = vmatmul.mubr.bf16.gmra.mrb[0].mxu0 %v4727
        %v4962 = vpop.f32.mrb[0].mxu0
        %v4963 = vadd.f32 %v4782, %v4962
        %v4964 = vpop.f32.mrb[0].mxu0
        %v4965 = vpop.f32.mrb[0].mxu0
        %v4966 = vadd.f32 %v4782, %v4965
        %v4967 = vpop.f32.mrb[0].mxu0
        %4968 = vdwg.mxu0
        %4969 = vmatprep.subr.bf16.mxu0 0
        %4970 = vmatpush1.bf16.msra.mxu0 %v4896
        %4971 = vmatprep.subr.bf16.mxu0 0
        %4972 = vmatpush1.bf16.msra.mxu0 %v4897
        %4973 = vmatprep.subr.bf16.mxu0 0
        %4974 = vmatpush1.bf16.msra.mxu0 %v4898
        %4975 = vmatprep.subr.bf16.mxu0 0
        %4976 = vmatpush1.bf16.msra.mxu0 %v4899
        %4977 = vmatprep.subr.bf16.mxu0 0
        %4978 = vmatpush1.bf16.msra.mxu0 %v4900
        %4979 = vmatprep.subr.bf16.mxu0 0
        %4980 = vmatpush1.bf16.msra.mxu0 %v4901
        %4981 = vmatprep.subr.bf16.mxu0 0
        %4982 = vmatpush1.bf16.msra.mxu0 %v4902
        %4983 = vmatprep.subr.bf16.mxu0 0
        %4984 = vmatpush1.bf16.msra.mxu0 %v4903
        %4985 = vmatprep.subr.bf16.mxu0 0
        %4986 = vmatpush1.bf16.msra.mxu0 0
        %4987 = vmatprep.subr.bf16.mxu0 0
        %4988 = vmatpush1.bf16.msra.mxu0 0
        %4989 = vmatprep.subr.bf16.mxu0 0
        %4990 = vmatpush1.bf16.msra.mxu0 0
        %4991 = vmatprep.subr.bf16.mxu0 0
        %4992 = vmatpush1.bf16.msra.mxu0 0
        %4993 = vmatprep.subr.bf16.mxu0 0
        %4994 = vmatpush1.bf16.msra.mxu0 0
        %4995 = vmatprep.subr.bf16.mxu0 0
        %4996 = vmatpush1.bf16.msra.mxu0 0
        %4997 = vmatprep.subr.bf16.mxu0 0
        %4998 = vmatpush1.bf16.msra.mxu0 0
        %4999 = vmatprep.subr.bf16.mxu0 0
        %5000 = vmatpush1.bf16.msra.mxu0 0
        %5001 = vmatprep.mubr.bf16.mxu0 0
        %5002 = vmatmul.mubr.bf16.gmra.mrb[0].mxu0 %v4729
        %v5003 = vpop.f32.mrb[0].mxu0
        %v5004 = vadd.f32 %v4963, %v5003
        %v5005 = vpop.f32.mrb[0].mxu0
        %v5006 = vpop.f32.mrb[0].mxu0
        %v5007 = vadd.f32 %v4966, %v5006
        %v5008 = vpop.f32.mrb[0].mxu0
        %5009 = vdwg.mxu0
        %vm5010 = vcmp.ge.f32.partialorder %v5004, 0.0
        %vm5011 = vcmp.ge.f32.partialorder %v5007, 0.0
        %v5012 = vmul.f32 %v5004, 0.01
        %v5013 = vmul.f32 %v5007, 0.01
        %v5014 = vsel %vm5010, %v5004, %v5012
        %v5015 = vsel %vm5011, %v5007, %v5013
        %v5016 = vld [vmem:[%s15] sm:$0x1]
        %v5019 = vrot.slane %v5014, 4
        %v5020 = vrot.slane %v5015, 4
        %v5021 = vsel %vm1526, %v5019, %v5020
        %v5025 = vsel %vm1526, 0.0, %v5019
        %v5026 = vsel %vm1684, %v5020, 0.0
        %v5029 = vrot.slane %v5025, 1
        %v5030 = vrot.slane %v5021, 1
        %v5031 = vsel %vm1550, %v5029, %v5030
        %v5032 = vrot.slane %v5026, 1
        %v5033 = vsel %vm1550, %v5030, %v5032
        %v5037 = vrot.slane %v5025, 2
        %v5038 = vrot.slane %v5021, 2
        %v5039 = vsel %vm1582, %v5037, %v5038
        %v5040 = vrot.slane %v5026, 2
        %v5041 = vsel %vm1582, %v5038, %v5040
        %v5045 = vrot.slane %v5025, 3
        %v5046 = vrot.slane %v5021, 3
        %v5047 = vsel %vm1602, %v5045, %v5046
        %v5048 = vrot.slane %v5026, 3
        %v5049 = vsel %vm1602, %v5046, %v5048
        %v5053 = vrot.slane %v5025, 4
        %v5054 = vrot.slane %v5021, 4
        %v5055 = vsel %vm1526, %v5053, %v5054
        %v5056 = vrot.slane %v5026, 4
        %v5057 = vsel %vm1526, %v5054, %v5056
        %v5061 = vrot.slane %v5025, 5
        %v5062 = vrot.slane %v5021, 5
        %v5063 = vsel %vm1546, %v5061, %v5062
        %v5064 = vrot.slane %v5026, 5
        %v5065 = vsel %vm1546, %v5062, %v5064
        %v5069 = vpack.c.bf16 %v5021, %v5025
        %v5070 = vpack.c.bf16 %v5033, %v5031
        %v5071 = vpack.c.bf16 %v5041, %v5039
        %v5072 = vpack.c.bf16 %v5049, %v5047
        %v5073 = vpack.c.bf16 %v5057, %v5055
        %v5074 = vpack.c.bf16 %v5065, %v5063
        %v5075 = vpack.c.bf16 %v5026, %v5026
        %v5076 = vpack.c.bf16 %v5032, %v5032
        %v5077 = vpack.c.bf16 %v5040, %v5040
        %v5078 = vpack.c.bf16 %v5048, %v5048
        %v5079 = vpack.c.bf16 %v5056, %v5056
        %v5080 = vpack.c.bf16 %v5064, %v5064
        %v5081 = vld [vmem:[%s14] sm:$0xf]
        %v5082 = vld [vmem:[%s14 + $0x4] sm:$0xf]
        %v5083 = vld [vmem:[%s14 + $0x8] sm:$0xf]
        %v5084 = vld [vmem:[%s14 + $0xc] sm:$0xf]
        %v5085 = vld [vmem:[%s14 + $0x10] sm:$0xf]
        %v5086 = vld [vmem:[%s14 + $0x14] sm:$0xf]
        %v5087 = vld [vmem:[%s14 + $0x18] sm:$0xf]
        %v5088 = vld [vmem:[%s14 + $0x1c] sm:$0xf]
        %v5089 = vld [vmem:[%s14 + $0x20] sm:$0xf]
        %v5090 = vld [vmem:[%s14 + $0x24] sm:$0xf]
        %v5091 = vld [vmem:[%s14 + $0x28] sm:$0xf]
        %v5092 = vld [vmem:[%s14 + $0x2c] sm:$0xf]
        %v5093 = vld [vmem:[%s14 + $0x30] sm:$0xf]
        %v5094 = vld [vmem:[%s14 + $0x34] sm:$0xf]
        %v5095 = vld [vmem:[%s14 + $0x38] sm:$0xf]
        %v5096 = vld [vmem:[%s14 + $0x3c] sm:$0xf]
        %v5097 = vld [vmem:[%s14 + $0x40] sm:$0xf]
        %v5098 = vld [vmem:[%s14 + $0x44] sm:$0xf]
        %v5099 = vld [vmem:[%s14 + $0x48] sm:$0xf]
        %v5100 = vld [vmem:[%s14 + $0x4c] sm:$0xf]
        %v5101 = vld [vmem:[%s14 + $0x50] sm:$0xf]
        %v5102 = vld [vmem:[%s14 + $0x54] sm:$0xf]
        %v5103 = vld [vmem:[%s14 + $0x58] sm:$0xf]
        %v5104 = vld [vmem:[%s14 + $0x5c] sm:$0xf]
        %v5105 = vld [vmem:[%s14 + $0x60] sm:$0xf]
        %v5106 = vld [vmem:[%s14 + $0x64] sm:$0xf]
        %v5107 = vld [vmem:[%s14 + $0x68] sm:$0xf]
        %v5108 = vld [vmem:[%s14 + $0x6c] sm:$0xf]
        %v5109 = vld [vmem:[%s14 + $0x70] sm:$0xf]
        %v5110 = vld [vmem:[%s14 + $0x74] sm:$0xf]
        %v5111 = vld [vmem:[%s14 + $0x78] sm:$0xf]
        %v5112 = vld [vmem:[%s14 + $0x7c] sm:$0xf]
        %v5113 = vld [vmem:[%s14 + $0x80] sm:$0xf]
        %v5114 = vld [vmem:[%s14 + $0x84] sm:$0xf]
        %v5115 = vld [vmem:[%s14 + $0x88] sm:$0xf]
        %v5116 = vld [vmem:[%s14 + $0x8c] sm:$0xf]
        %v5117 = vld [vmem:[%s14 + $0x90] sm:$0xf]
        %v5118 = vld [vmem:[%s14 + $0x94] sm:$0xf]
        %v5119 = vld [vmem:[%s14 + $0x98] sm:$0xf]
        %v5120 = vld [vmem:[%s14 + $0x9c] sm:$0xf]
        %v5121 = vld [vmem:[%s14 + $0xa0] sm:$0xf]
        %v5122 = vld [vmem:[%s14 + $0xa4] sm:$0xf]
        %v5123 = vld [vmem:[%s14 + $0xa8] sm:$0xf]
        %v5124 = vld [vmem:[%s14 + $0xac] sm:$0xf]
        %v5125 = vld [vmem:[%s14 + $0xb0] sm:$0xf]
        %v5126 = vld [vmem:[%s14 + $0xb4] sm:$0xf]
        %v5127 = vld [vmem:[%s14 + $0xb8] sm:$0xf]
        %v5128 = vld [vmem:[%s14 + $0xbc] sm:$0xf]
        %v5129 = vld [vmem:[%s14 + $0xc0] sm:$0xf]
        %v5130 = vld [vmem:[%s14 + $0xc4] sm:$0xf]
        %v5131 = vld [vmem:[%s14 + $0xc8] sm:$0xf]
        %v5132 = vld [vmem:[%s14 + $0xcc] sm:$0xf]
        %v5133 = vld [vmem:[%s14 + $0xd0] sm:$0xf]
        %v5134 = vld [vmem:[%s14 + $0xd4] sm:$0xf]
        %v5135 = vld [vmem:[%s14 + $0xd8] sm:$0xf]
        %v5136 = vld [vmem:[%s14 + $0xdc] sm:$0xf]
        %v5137 = vld [vmem:[%s14 + $0xe0] sm:$0xf]
        %v5138 = vld [vmem:[%s14 + $0xe4] sm:$0xf]
        %v5139 = vld [vmem:[%s14 + $0xe8] sm:$0xf]
        %v5140 = vld [vmem:[%s14 + $0xec] sm:$0xf]
        %v5141 = vld [vmem:[%s14 + $0xf0] sm:$0xf]
        %v5142 = vld [vmem:[%s14 + $0xf4] sm:$0xf]
        %v5143 = vld [vmem:[%s14 + $0xf8] sm:$0xf]
        %v5144 = vld [vmem:[%s14 + $0xfc] sm:$0xf]
        %v5145 = vld [vmem:[%s14 + $0x100] sm:$0xf]
        %v5146 = vld [vmem:[%s14 + $0x104] sm:$0xf]
        %v5147 = vld [vmem:[%s14 + $0x108] sm:$0xf]
        %v5148 = vld [vmem:[%s14 + $0x10c] sm:$0xf]
        %v5149 = vld [vmem:[%s14 + $0x110] sm:$0xf]
        %v5150 = vld [vmem:[%s14 + $0x114] sm:$0xf]
        %v5151 = vld [vmem:[%s14 + $0x118] sm:$0xf]
        %v5152 = vld [vmem:[%s14 + $0x11c] sm:$0xf]
        %v5153 = vld [vmem:[%s14 + $0x120] sm:$0xf]
        %v5154 = vld [vmem:[%s14 + $0x124] sm:$0xf]
        %v5155 = vld [vmem:[%s14 + $0x128] sm:$0xf]
        %v5156 = vld [vmem:[%s14 + $0x12c] sm:$0xf]
        %v5157 = vld [vmem:[%s14 + $0x130] sm:$0xf]
        %v5158 = vld [vmem:[%s14 + $0x134] sm:$0xf]
        %v5159 = vld [vmem:[%s14 + $0x138] sm:$0xf]
        %v5160 = vld [vmem:[%s14 + $0x13c] sm:$0xf]
        %v5161 = vld [vmem:[%s14 + $0x140] sm:$0xf]
        %v5162 = vld [vmem:[%s14 + $0x144] sm:$0xf]
        %v5163 = vld [vmem:[%s14 + $0x148] sm:$0xf]
        %v5164 = vld [vmem:[%s14 + $0x14c] sm:$0xf]
        %v5165 = vld [vmem:[%s14 + $0x150] sm:$0xf]
        %v5166 = vld [vmem:[%s14 + $0x154] sm:$0xf]
        %v5167 = vld [vmem:[%s14 + $0x158] sm:$0xf]
        %v5168 = vld [vmem:[%s14 + $0x15c] sm:$0xf]
        %v5169 = vld [vmem:[%s14 + $0x160] sm:$0xf]
        %v5170 = vld [vmem:[%s14 + $0x164] sm:$0xf]
        %v5171 = vld [vmem:[%s14 + $0x168] sm:$0xf]
        %v5172 = vld [vmem:[%s14 + $0x16c] sm:$0xf]
        %v5173 = vld [vmem:[%s14 + $0x170] sm:$0xf]
        %v5174 = vld [vmem:[%s14 + $0x174] sm:$0xf]
        %v5175 = vld [vmem:[%s14 + $0x178] sm:$0xf]
        %v5176 = vld [vmem:[%s14 + $0x17c] sm:$0xf]
        %v5178 = vlaneseq
        %v5179 = vshrl.u32 %v5178, 7
        %v5180 = vsub.s32 0, %v5179
        %v5181 = vrot.slane %v5016, %v5180
        %v5279 = vunpack.c.l.b16 %v5081
        %v5280 = vunpack.c.l.b16 %v5082
        %v5281 = vunpack.c.l.b16 %v5083
        %v5282 = vunpack.c.l.b16 %v5084
        %v5283 = vunpack.c.l.b16 %v5085
        %v5284 = vunpack.c.l.b16 %v5086
        %v5285 = vunpack.c.l.b16 %v5087
        %v5286 = vunpack.c.l.b16 %v5088
        %v5287 = vunpack.c.l.b16 %v5089
        %v5288 = vunpack.c.l.b16 %v5090
        %v5289 = vunpack.c.l.b16 %v5091
        %v5290 = vunpack.c.l.b16 %v5092
        %v5291 = vunpack.c.l.b16 %v5093
        %v5292 = vunpack.c.l.b16 %v5094
        %v5293 = vunpack.c.l.b16 %v5095
        %v5294 = vunpack.c.l.b16 %v5096
        %v5295 = vunpack.c.l.b16 %v5097
        %v5296 = vunpack.c.l.b16 %v5098
        %v5297 = vunpack.c.l.b16 %v5099
        %v5298 = vunpack.c.l.b16 %v5100
        %v5299 = vunpack.c.l.b16 %v5101
        %v5300 = vunpack.c.l.b16 %v5102
        %v5301 = vunpack.c.l.b16 %v5103
        %v5302 = vunpack.c.l.b16 %v5104
        %v5303 = vunpack.c.l.b16 %v5105
        %v5304 = vunpack.c.l.b16 %v5106
        %v5305 = vunpack.c.l.b16 %v5107
        %v5306 = vunpack.c.l.b16 %v5108
        %v5307 = vunpack.c.l.b16 %v5109
        %v5308 = vunpack.c.l.b16 %v5110
        %v5309 = vunpack.c.l.b16 %v5111
        %v5310 = vunpack.c.l.b16 %v5112
        %v5311 = vunpack.c.l.b16 %v5113
        %v5312 = vunpack.c.l.b16 %v5114
        %v5313 = vunpack.c.l.b16 %v5115
        %v5314 = vunpack.c.l.b16 %v5116
        %v5315 = vunpack.c.l.b16 %v5117
        %v5316 = vunpack.c.l.b16 %v5118
        %v5317 = vunpack.c.l.b16 %v5119
        %v5318 = vunpack.c.l.b16 %v5120
        %v5319 = vunpack.c.l.b16 %v5121
        %v5320 = vunpack.c.l.b16 %v5122
        %v5321 = vunpack.c.l.b16 %v5123
        %v5322 = vunpack.c.l.b16 %v5124
        %v5323 = vunpack.c.l.b16 %v5125
        %v5324 = vunpack.c.l.b16 %v5126
        %v5325 = vunpack.c.l.b16 %v5127
        %v5326 = vunpack.c.l.b16 %v5128
        %v5327 = vunpack.c.l.b16 %v5129
        %v5328 = vunpack.c.l.b16 %v5130
        %v5329 = vunpack.c.l.b16 %v5131
        %v5330 = vunpack.c.l.b16 %v5132
        %v5331 = vunpack.c.l.b16 %v5133
        %v5332 = vunpack.c.l.b16 %v5134
        %v5333 = vunpack.c.l.b16 %v5135
        %v5334 = vunpack.c.l.b16 %v5136
        %v5335 = vunpack.c.l.b16 %v5137
        %v5336 = vunpack.c.l.b16 %v5138
        %v5337 = vunpack.c.l.b16 %v5139
        %v5338 = vunpack.c.l.b16 %v5140
        %v5339 = vunpack.c.l.b16 %v5141
        %v5340 = vunpack.c.l.b16 %v5142
        %v5341 = vunpack.c.l.b16 %v5143
        %v5342 = vunpack.c.l.b16 %v5144
        %v5343 = vunpack.c.l.b16 %v5145
        %v5344 = vunpack.c.l.b16 %v5146
        %v5345 = vunpack.c.l.b16 %v5147
        %v5346 = vunpack.c.l.b16 %v5148
        %v5347 = vunpack.c.l.b16 %v5149
        %v5348 = vunpack.c.l.b16 %v5150
        %v5349 = vunpack.c.l.b16 %v5151
        %v5350 = vunpack.c.l.b16 %v5152
        %v5351 = vunpack.c.l.b16 %v5153
        %v5352 = vunpack.c.l.b16 %v5154
        %v5353 = vunpack.c.l.b16 %v5155
        %v5354 = vunpack.c.l.b16 %v5156
        %v5355 = vunpack.c.l.b16 %v5157
        %v5356 = vunpack.c.l.b16 %v5158
        %v5357 = vunpack.c.l.b16 %v5159
        %v5358 = vunpack.c.l.b16 %v5160
        %v5359 = vunpack.c.l.b16 %v5161
        %v5360 = vunpack.c.l.b16 %v5162
        %v5361 = vunpack.c.l.b16 %v5163
        %v5362 = vunpack.c.l.b16 %v5164
        %v5363 = vunpack.c.l.b16 %v5165
        %v5364 = vunpack.c.l.b16 %v5166
        %v5365 = vunpack.c.l.b16 %v5167
        %v5366 = vunpack.c.l.b16 %v5168
        %v5367 = vunpack.c.l.b16 %v5169
        %v5368 = vunpack.c.l.b16 %v5170
        %v5369 = vunpack.c.l.b16 %v5171
        %v5370 = vunpack.c.l.b16 %v5172
        %v5371 = vunpack.c.l.b16 %v5173
        %v5372 = vunpack.c.l.b16 %v5174
        %v5373 = vunpack.c.l.b16 %v5175
        %v5374 = vunpack.c.l.b16 %v5176
        %v5375 = vpack.c.b16 %v5280, %v5279
        %v5376 = vpack.c.b16 %v5282, %v5281
        %v5377 = vpack.c.b16 %v5284, %v5283
        %v5378 = vpack.c.b16 %v5286, %v5285
        %v5379 = vpack.c.b16 %v5288, %v5287
        %v5380 = vpack.c.b16 %v5290, %v5289
        %v5381 = vpack.c.b16 %v5292, %v5291
        %v5382 = vpack.c.b16 %v5294, %v5293
        %v5383 = vpack.c.b16 %v5296, %v5295
        %v5384 = vpack.c.b16 %v5298, %v5297
        %v5385 = vpack.c.b16 %v5300, %v5299
        %v5386 = vpack.c.b16 %v5302, %v5301
        %v5387 = vpack.c.b16 %v5304, %v5303
        %v5388 = vpack.c.b16 %v5306, %v5305
        %v5389 = vpack.c.b16 %v5308, %v5307
        %v5390 = vpack.c.b16 %v5310, %v5309
        %v5391 = vpack.c.b16 %v5312, %v5311
        %v5392 = vpack.c.b16 %v5314, %v5313
        %v5393 = vpack.c.b16 %v5316, %v5315
        %v5394 = vpack.c.b16 %v5318, %v5317
        %v5395 = vpack.c.b16 %v5320, %v5319
        %v5396 = vpack.c.b16 %v5322, %v5321
        %v5397 = vpack.c.b16 %v5324, %v5323
        %v5398 = vpack.c.b16 %v5326, %v5325
        %v5399 = vpack.c.b16 %v5328, %v5327
        %v5400 = vpack.c.b16 %v5330, %v5329
        %v5401 = vpack.c.b16 %v5332, %v5331
        %v5402 = vpack.c.b16 %v5334, %v5333
        %v5403 = vpack.c.b16 %v5336, %v5335
        %v5404 = vpack.c.b16 %v5338, %v5337
        %v5405 = vpack.c.b16 %v5340, %v5339
        %v5406 = vpack.c.b16 %v5342, %v5341
        %v5407 = vpack.c.b16 %v5344, %v5343
        %v5408 = vpack.c.b16 %v5346, %v5345
        %v5409 = vpack.c.b16 %v5348, %v5347
        %v5410 = vpack.c.b16 %v5350, %v5349
        %v5411 = vpack.c.b16 %v5352, %v5351
        %v5412 = vpack.c.b16 %v5354, %v5353
        %v5413 = vpack.c.b16 %v5356, %v5355
        %v5414 = vpack.c.b16 %v5358, %v5357
        %v5415 = vpack.c.b16 %v5360, %v5359
        %v5416 = vpack.c.b16 %v5362, %v5361
        %v5417 = vpack.c.b16 %v5364, %v5363
        %v5418 = vpack.c.b16 %v5366, %v5365
        %v5419 = vpack.c.b16 %v5368, %v5367
        %v5420 = vpack.c.b16 %v5370, %v5369
        %v5421 = vpack.c.b16 %v5372, %v5371
        %v5422 = vpack.c.b16 %v5374, %v5373
        %5471 = vmatprep.subr.bf16.mxu0 0
        %5472 = vmatpush1.bf16.msra.mxu0 %v5375
        %5473 = vmatprep.subr.bf16.mxu0 0
        %5474 = vmatpush1.bf16.msra.mxu0 %v5376
        %5475 = vmatprep.subr.bf16.mxu0 0
        %5476 = vmatpush1.bf16.msra.mxu0 %v5377
        %5477 = vmatprep.subr.bf16.mxu0 0
        %5478 = vmatpush1.bf16.msra.mxu0 %v5378
        %5479 = vmatprep.subr.bf16.mxu0 0
        %5480 = vmatpush1.bf16.msra.mxu0 %v5379
        %5481 = vmatprep.subr.bf16.mxu0 0
        %5482 = vmatpush1.bf16.msra.mxu0 %v5380
        %5483 = vmatprep.subr.bf16.mxu0 0
        %5484 = vmatpush1.bf16.msra.mxu0 %v5381
        %5485 = vmatprep.subr.bf16.mxu0 0
        %5486 = vmatpush1.bf16.msra.mxu0 %v5382
        %5487 = vmatprep.subr.bf16.mxu0 0
        %5488 = vmatpush1.bf16.msra.mxu0 %v5383
        %5489 = vmatprep.subr.bf16.mxu0 0
        %5490 = vmatpush1.bf16.msra.mxu0 %v5384
        %5491 = vmatprep.subr.bf16.mxu0 0
        %5492 = vmatpush1.bf16.msra.mxu0 %v5385
        %5493 = vmatprep.subr.bf16.mxu0 0
        %5494 = vmatpush1.bf16.msra.mxu0 %v5386
        %5495 = vmatprep.subr.bf16.mxu0 0
        %5496 = vmatpush1.bf16.msra.mxu0 %v5387
        %5497 = vmatprep.subr.bf16.mxu0 0
        %5498 = vmatpush1.bf16.msra.mxu0 %v5388
        %5499 = vmatprep.subr.bf16.mxu0 0
        %5500 = vmatpush1.bf16.msra.mxu0 %v5389
        %5501 = vmatprep.subr.bf16.mxu0 0
        %5502 = vmatpush1.bf16.msra.mxu0 %v5390
        %5503 = vmatprep.mubr.bf16.mxu0 %v5070
        %5504 = vmatmul.mubr.bf16.gmra.mrb[0].mxu0 %v5069
        %v5505 = vpop.f32.mrb[0].mxu0
        %v5506 = vadd.f32 %v5181, %v5505
        %v5507 = vpop.f32.mrb[0].mxu0
        %v5508 = vpop.f32.mrb[0].mxu0
        %v5509 = vadd.f32 %v5181, %v5508
        %v5510 = vpop.f32.mrb[0].mxu0
        %5511 = vmatprep.mubr.bf16.mxu0 %v5076
        %5512 = vmatmul.mubr.bf16.gmra.mrb[0].mxu0 %v5075
        %v5513 = vpop.f32.mrb[0].mxu0
        %v5514 = vadd.f32 %v5181, %v5513
        %v5515 = vpop.f32.mrb[0].mxu0
        %v5516 = vpop.f32.mrb[0].mxu0
        %v5517 = vpop.f32.mrb[0].mxu0
        %5518 = vdwg.mxu0
        %5519 = vmatprep.subr.bf16.mxu0 0
        %5520 = vmatpush1.bf16.msra.mxu0 %v5391
        %5521 = vmatprep.subr.bf16.mxu0 0
        %5522 = vmatpush1.bf16.msra.mxu0 %v5392
        %5523 = vmatprep.subr.bf16.mxu0 0
        %5524 = vmatpush1.bf16.msra.mxu0 %v5393
        %5525 = vmatprep.subr.bf16.mxu0 0
        %5526 = vmatpush1.bf16.msra.mxu0 %v5394
        %5527 = vmatprep.subr.bf16.mxu0 0
        %5528 = vmatpush1.bf16.msra.mxu0 %v5395
        %5529 = vmatprep.subr.bf16.mxu0 0
        %5530 = vmatpush1.bf16.msra.mxu0 %v5396
        %5531 = vmatprep.subr.bf16.mxu0 0
        %5532 = vmatpush1.bf16.msra.mxu0 %v5397
        %5533 = vmatprep.subr.bf16.mxu0 0
        %5534 = vmatpush1.bf16.msra.mxu0 %v5398
        %5535 = vmatprep.subr.bf16.mxu0 0
        %5536 = vmatpush1.bf16.msra.mxu0 %v5399
        %5537 = vmatprep.subr.bf16.mxu0 0
        %5538 = vmatpush1.bf16.msra.mxu0 %v5400
        %5539 = vmatprep.subr.bf16.mxu0 0
        %5540 = vmatpush1.bf16.msra.mxu0 %v5401
        %5541 = vmatprep.subr.bf16.mxu0 0
        %5542 = vmatpush1.bf16.msra.mxu0 %v5402
        %5543 = vmatprep.subr.bf16.mxu0 0
        %5544 = vmatpush1.bf16.msra.mxu0 %v5403
        %5545 = vmatprep.subr.bf16.mxu0 0
        %5546 = vmatpush1.bf16.msra.mxu0 %v5404
        %5547 = vmatprep.subr.bf16.mxu0 0
        %5548 = vmatpush1.bf16.msra.mxu0 %v5405
        %5549 = vmatprep.subr.bf16.mxu0 0
        %5550 = vmatpush1.bf16.msra.mxu0 %v5406
        %5551 = vmatprep.mubr.bf16.mxu0 %v5072
        %5552 = vmatmul.mubr.bf16.gmra.mrb[0].mxu0 %v5071
        %v5553 = vpop.f32.mrb[0].mxu0
        %v5554 = vadd.f32 %v5506, %v5553
        %v5555 = vpop.f32.mrb[0].mxu0
        %v5556 = vpop.f32.mrb[0].mxu0
        %v5557 = vadd.f32 %v5509, %v5556
        %v5558 = vpop.f32.mrb[0].mxu0
        %5559 = vmatprep.mubr.bf16.mxu0 %v5078
        %5560 = vmatmul.mubr.bf16.gmra.mrb[0].mxu0 %v5077
        %v5561 = vpop.f32.mrb[0].mxu0
        %v5562 = vadd.f32 %v5514, %v5561
        %v5563 = vpop.f32.mrb[0].mxu0
        %v5564 = vpop.f32.mrb[0].mxu0
        %v5565 = vpop.f32.mrb[0].mxu0
        %5566 = vdwg.mxu0
        %5567 = vmatprep.subr.bf16.mxu0 0
        %5568 = vmatpush1.bf16.msra.mxu0 %v5407
        %5569 = vmatprep.subr.bf16.mxu0 0
        %5570 = vmatpush1.bf16.msra.mxu0 %v5408
        %5571 = vmatprep.subr.bf16.mxu0 0
        %5572 = vmatpush1.bf16.msra.mxu0 %v5409
        %5573 = vmatprep.subr.bf16.mxu0 0
        %5574 = vmatpush1.bf16.msra.mxu0 %v5410
        %5575 = vmatprep.subr.bf16.mxu0 0
        %5576 = vmatpush1.bf16.msra.mxu0 %v5411
        %5577 = vmatprep.subr.bf16.mxu0 0
        %5578 = vmatpush1.bf16.msra.mxu0 %v5412
        %5579 = vmatprep.subr.bf16.mxu0 0
        %5580 = vmatpush1.bf16.msra.mxu0 %v5413
        %5581 = vmatprep.subr.bf16.mxu0 0
        %5582 = vmatpush1.bf16.msra.mxu0 %v5414
        %5583 = vmatprep.subr.bf16.mxu0 0
        %5584 = vmatpush1.bf16.msra.mxu0 %v5415
        %5585 = vmatprep.subr.bf16.mxu0 0
        %5586 = vmatpush1.bf16.msra.mxu0 %v5416
        %5587 = vmatprep.subr.bf16.mxu0 0
        %5588 = vmatpush1.bf16.msra.mxu0 %v5417
        %5589 = vmatprep.subr.bf16.mxu0 0
        %5590 = vmatpush1.bf16.msra.mxu0 %v5418
        %5591 = vmatprep.subr.bf16.mxu0 0
        %5592 = vmatpush1.bf16.msra.mxu0 %v5419
        %5593 = vmatprep.subr.bf16.mxu0 0
        %5594 = vmatpush1.bf16.msra.mxu0 %v5420
        %5595 = vmatprep.subr.bf16.mxu0 0
        %5596 = vmatpush1.bf16.msra.mxu0 %v5421
        %5597 = vmatprep.subr.bf16.mxu0 0
        %5598 = vmatpush1.bf16.msra.mxu0 %v5422
        %5599 = vmatprep.mubr.bf16.mxu0 %v5074
        %5600 = vmatmul.mubr.bf16.gmra.mrb[0].mxu0 %v5073
        %v5601 = vpop.f32.mrb[0].mxu0
        %v5602 = vadd.f32 %v5554, %v5601
        %v5603 = vpop.f32.mrb[0].mxu0
        %v5604 = vpop.f32.mrb[0].mxu0
        %v5605 = vadd.f32 %v5557, %v5604
        %v5606 = vpop.f32.mrb[0].mxu0
        %5607 = vmatprep.mubr.bf16.mxu0 %v5080
        %5608 = vmatmul.mubr.bf16.gmra.mrb[0].mxu0 %v5079
        %v5609 = vpop.f32.mrb[0].mxu0
        %v5610 = vadd.f32 %v5562, %v5609
        %v5611 = vpop.f32.mrb[0].mxu0
        %v5612 = vpop.f32.mrb[0].mxu0
        %v5613 = vpop.f32.mrb[0].mxu0
        %5614 = vdwg.mxu0
        %vm5615 = vcmp.ge.f32.partialorder %v5602, 0.0
        %vm5616 = vcmp.ge.f32.partialorder %v5605, 0.0
        %vm5617 = vcmp.ge.f32.partialorder %v5610, 0.0
        %v5618 = vmul.f32 %v5602, 0.01
        %v5619 = vmul.f32 %v5605, 0.01
        %v5620 = vmul.f32 %v5610, 0.01
        %v5621 = vsel %vm5615, %v5602, %v5618
        %v5622 = vsel %vm5616, %v5605, %v5619
        %v5623 = vsel %vm5617, %v5610, %v5620
        %v5624 = vld [vmem:[%s17] sm:$0x1]
        %v5628 = vrot.slane %v5621, 4
        %v5629 = vrot.slane %v5622, 4
        %v5630 = vsel %vm1526, %v5628, %v5629
        %v5631 = vrot.slane %v5623, 4
        %v5632 = vsel %vm1526, %v5629, %v5631
        %v5636 = vsel %vm1526, 0.0, %v5628
        %v5637 = vsel %vm1602, %v5632, 0.0
        %v5640 = vrot.slane %v5636, 1
        %v5641 = vrot.slane %v5630, 1
        %v5642 = vsel %vm1550, %v5640, %v5641
        %v5643 = vrot.slane %v5637, 1
        %v5644 = vsel %vm1550, %v5641, %v5643
        %v5648 = vrot.slane %v5636, 2
        %v5649 = vrot.slane %v5630, 2
        %v5650 = vsel %vm1582, %v5648, %v5649
        %v5651 = vrot.slane %v5637, 2
        %v5652 = vsel %vm1582, %v5649, %v5651
        %v5656 = vrot.slane %v5636, 3
        %v5657 = vrot.slane %v5630, 3
        %v5658 = vsel %vm1602, %v5656, %v5657
        %v5659 = vrot.slane %v5637, 3
        %v5660 = vsel %vm1602, %v5657, %v5659
        %v5664 = vrot.slane %v5636, 4
        %v5665 = vrot.slane %v5630, 4
        %v5666 = vsel %vm1526, %v5664, %v5665
        %v5667 = vrot.slane %v5637, 4
        %v5668 = vsel %vm1526, %v5665, %v5667
        %v5672 = vrot.slane %v5636, 5
        %v5673 = vrot.slane %v5630, 5
        %v5674 = vsel %vm1546, %v5672, %v5673
        %v5675 = vrot.slane %v5637, 5
        %v5676 = vsel %vm1546, %v5673, %v5675
        %v5677 = vsel %vm1546, %v5675, %v4713
        %v5681 = vpack.c.bf16 %v5630, %v5636
        %v5682 = vpack.c.bf16 %v5644, %v5642
        %v5683 = vpack.c.bf16 %v5652, %v5650
        %v5684 = vpack.c.bf16 %v5660, %v5658
        %v5685 = vpack.c.bf16 %v5668, %v5666
        %v5686 = vpack.c.bf16 %v5676, %v5674
        %v5687 = vpack.c.bf16 %v5637, %v5637
        %v5688 = vpack.c.bf16 %v5643, %v5643
        %v5689 = vpack.c.bf16 %v5651, %v5651
        %v5690 = vpack.c.bf16 %v5659, %v5659
        %v5691 = vpack.c.bf16 %v5667, %v5667
        %v5692 = vpack.c.bf16 %v5677, %v5677
        %v5693 = vld [vmem:[%s16] sm:$0xf]
        %v5694 = vld [vmem:[%s16 + $0x4] sm:$0xf]
        %v5695 = vld [vmem:[%s16 + $0x8] sm:$0xf]
        %v5696 = vld [vmem:[%s16 + $0xc] sm:$0xf]
        %v5697 = vld [vmem:[%s16 + $0x10] sm:$0xf]
        %v5698 = vld [vmem:[%s16 + $0x14] sm:$0xf]
        %v5699 = vld [vmem:[%s16 + $0x18] sm:$0xf]
        %v5700 = vld [vmem:[%s16 + $0x1c] sm:$0xf]
        %v5701 = vld [vmem:[%s16 + $0x20] sm:$0xf]
        %v5702 = vld [vmem:[%s16 + $0x24] sm:$0xf]
        %v5703 = vld [vmem:[%s16 + $0x28] sm:$0xf]
        %v5704 = vld [vmem:[%s16 + $0x2c] sm:$0xf]
        %v5705 = vld [vmem:[%s16 + $0x30] sm:$0xf]
        %v5706 = vld [vmem:[%s16 + $0x34] sm:$0xf]
        %v5707 = vld [vmem:[%s16 + $0x38] sm:$0xf]
        %v5708 = vld [vmem:[%s16 + $0x3c] sm:$0xf]
        %v5709 = vld [vmem:[%s16 + $0x40] sm:$0xf]
        %v5710 = vld [vmem:[%s16 + $0x44] sm:$0xf]
        %v5711 = vld [vmem:[%s16 + $0x48] sm:$0xf]
        %v5712 = vld [vmem:[%s16 + $0x4c] sm:$0xf]
        %v5713 = vld [vmem:[%s16 + $0x50] sm:$0xf]
        %v5714 = vld [vmem:[%s16 + $0x54] sm:$0xf]
        %v5715 = vld [vmem:[%s16 + $0x58] sm:$0xf]
        %v5716 = vld [vmem:[%s16 + $0x5c] sm:$0xf]
        %v5717 = vld [vmem:[%s16 + $0x60] sm:$0xf]
        %v5718 = vld [vmem:[%s16 + $0x64] sm:$0xf]
        %v5719 = vld [vmem:[%s16 + $0x68] sm:$0xf]
        %v5720 = vld [vmem:[%s16 + $0x6c] sm:$0xf]
        %v5721 = vld [vmem:[%s16 + $0x70] sm:$0xf]
        %v5722 = vld [vmem:[%s16 + $0x74] sm:$0xf]
        %v5723 = vld [vmem:[%s16 + $0x78] sm:$0xf]
        %v5724 = vld [vmem:[%s16 + $0x7c] sm:$0xf]
        %v5725 = vld [vmem:[%s16 + $0x80] sm:$0xf]
        %v5726 = vld [vmem:[%s16 + $0x84] sm:$0xf]
        %v5727 = vld [vmem:[%s16 + $0x88] sm:$0xf]
        %v5728 = vld [vmem:[%s16 + $0x8c] sm:$0xf]
        %v5729 = vld [vmem:[%s16 + $0x90] sm:$0xf]
        %v5730 = vld [vmem:[%s16 + $0x94] sm:$0xf]
        %v5731 = vld [vmem:[%s16 + $0x98] sm:$0xf]
        %v5732 = vld [vmem:[%s16 + $0x9c] sm:$0xf]
        %v5733 = vld [vmem:[%s16 + $0xa0] sm:$0xf]
        %v5734 = vld [vmem:[%s16 + $0xa4] sm:$0xf]
        %v5735 = vld [vmem:[%s16 + $0xa8] sm:$0xf]
        %v5736 = vld [vmem:[%s16 + $0xac] sm:$0xf]
        %v5737 = vld [vmem:[%s16 + $0xb0] sm:$0xf]
        %v5738 = vld [vmem:[%s16 + $0xb4] sm:$0xf]
        %v5739 = vld [vmem:[%s16 + $0xb8] sm:$0xf]
        %v5740 = vld [vmem:[%s16 + $0xbc] sm:$0xf]
        %v5741 = vld [vmem:[%s16 + $0xc0] sm:$0xf]
        %v5742 = vld [vmem:[%s16 + $0xc4] sm:$0xf]
        %v5743 = vld [vmem:[%s16 + $0xc8] sm:$0xf]
        %v5744 = vld [vmem:[%s16 + $0xcc] sm:$0xf]
        %v5745 = vld [vmem:[%s16 + $0xd0] sm:$0xf]
        %v5746 = vld [vmem:[%s16 + $0xd4] sm:$0xf]
        %v5747 = vld [vmem:[%s16 + $0xd8] sm:$0xf]
        %v5748 = vld [vmem:[%s16 + $0xdc] sm:$0xf]
        %v5749 = vld [vmem:[%s16 + $0xe0] sm:$0xf]
        %v5750 = vld [vmem:[%s16 + $0xe4] sm:$0xf]
        %v5751 = vld [vmem:[%s16 + $0xe8] sm:$0xf]
        %v5752 = vld [vmem:[%s16 + $0xec] sm:$0xf]
        %v5753 = vld [vmem:[%s16 + $0xf0] sm:$0xf]
        %v5754 = vld [vmem:[%s16 + $0xf4] sm:$0xf]
        %v5755 = vld [vmem:[%s16 + $0xf8] sm:$0xf]
        %v5756 = vld [vmem:[%s16 + $0xfc] sm:$0xf]
        %v5757 = vld [vmem:[%s16 + $0x100] sm:$0xf]
        %v5758 = vld [vmem:[%s16 + $0x104] sm:$0xf]
        %v5759 = vld [vmem:[%s16 + $0x108] sm:$0xf]
        %v5760 = vld [vmem:[%s16 + $0x10c] sm:$0xf]
        %v5761 = vld [vmem:[%s16 + $0x110] sm:$0xf]
        %v5762 = vld [vmem:[%s16 + $0x114] sm:$0xf]
        %v5763 = vld [vmem:[%s16 + $0x118] sm:$0xf]
        %v5764 = vld [vmem:[%s16 + $0x11c] sm:$0xf]
        %v5765 = vld [vmem:[%s16 + $0x120] sm:$0xf]
        %v5766 = vld [vmem:[%s16 + $0x124] sm:$0xf]
        %v5767 = vld [vmem:[%s16 + $0x128] sm:$0xf]
        %v5768 = vld [vmem:[%s16 + $0x12c] sm:$0xf]
        %v5769 = vld [vmem:[%s16 + $0x130] sm:$0xf]
        %v5770 = vld [vmem:[%s16 + $0x134] sm:$0xf]
        %v5771 = vld [vmem:[%s16 + $0x138] sm:$0xf]
        %v5772 = vld [vmem:[%s16 + $0x13c] sm:$0xf]
        %v5773 = vld [vmem:[%s16 + $0x140] sm:$0xf]
        %v5774 = vld [vmem:[%s16 + $0x144] sm:$0xf]
        %v5775 = vld [vmem:[%s16 + $0x148] sm:$0xf]
        %v5776 = vld [vmem:[%s16 + $0x14c] sm:$0xf]
        %v5777 = vld [vmem:[%s16 + $0x150] sm:$0xf]
        %v5778 = vld [vmem:[%s16 + $0x154] sm:$0xf]
        %v5779 = vld [vmem:[%s16 + $0x158] sm:$0xf]
        %v5780 = vld [vmem:[%s16 + $0x15c] sm:$0xf]
        %v5781 = vld [vmem:[%s16 + $0x160] sm:$0xf]
        %v5782 = vld [vmem:[%s16 + $0x164] sm:$0xf]
        %v5783 = vld [vmem:[%s16 + $0x168] sm:$0xf]
        %v5784 = vld [vmem:[%s16 + $0x16c] sm:$0xf]
        %v5785 = vld [vmem:[%s16 + $0x170] sm:$0xf]
        %v5786 = vld [vmem:[%s16 + $0x174] sm:$0xf]
        %v5787 = vld [vmem:[%s16 + $0x178] sm:$0xf]
        %v5788 = vld [vmem:[%s16 + $0x17c] sm:$0xf]
        %v5790 = vlaneseq
        %v5791 = vshrl.u32 %v5790, 7
        %v5792 = vsub.s32 0, %v5791
        %v5793 = vrot.slane %v5624, %v5792
        %v5891 = vunpack.c.l.b16 %v5693
        %v5892 = vunpack.c.l.b16 %v5694
        %v5893 = vunpack.c.l.b16 %v5695
        %v5894 = vunpack.c.l.b16 %v5696
        %v5895 = vunpack.c.l.b16 %v5697
        %v5896 = vunpack.c.l.b16 %v5698
        %v5897 = vunpack.c.l.b16 %v5699
        %v5898 = vunpack.c.l.b16 %v5700
        %v5899 = vunpack.c.l.b16 %v5701
        %v5900 = vunpack.c.l.b16 %v5702
        %v5901 = vunpack.c.l.b16 %v5703
        %v5902 = vunpack.c.l.b16 %v5704
        %v5903 = vunpack.c.l.b16 %v5705
        %v5904 = vunpack.c.l.b16 %v5706
        %v5905 = vunpack.c.l.b16 %v5707
        %v5906 = vunpack.c.l.b16 %v5708
        %v5907 = vunpack.c.l.b16 %v5709
        %v5908 = vunpack.c.l.b16 %v5710
        %v5909 = vunpack.c.l.b16 %v5711
        %v5910 = vunpack.c.l.b16 %v5712
        %v5911 = vunpack.c.l.b16 %v5713
        %v5912 = vunpack.c.l.b16 %v5714
        %v5913 = vunpack.c.l.b16 %v5715
        %v5914 = vunpack.c.l.b16 %v5716
        %v5915 = vunpack.c.l.b16 %v5717
        %v5916 = vunpack.c.l.b16 %v5718
        %v5917 = vunpack.c.l.b16 %v5719
        %v5918 = vunpack.c.l.b16 %v5720
        %v5919 = vunpack.c.l.b16 %v5721
        %v5920 = vunpack.c.l.b16 %v5722
        %v5921 = vunpack.c.l.b16 %v5723
        %v5922 = vunpack.c.l.b16 %v5724
        %v5923 = vunpack.c.l.b16 %v5725
        %v5924 = vunpack.c.l.b16 %v5726
        %v5925 = vunpack.c.l.b16 %v5727
        %v5926 = vunpack.c.l.b16 %v5728
        %v5927 = vunpack.c.l.b16 %v5729
        %v5928 = vunpack.c.l.b16 %v5730
        %v5929 = vunpack.c.l.b16 %v5731
        %v5930 = vunpack.c.l.b16 %v5732
        %v5931 = vunpack.c.l.b16 %v5733
        %v5932 = vunpack.c.l.b16 %v5734
        %v5933 = vunpack.c.l.b16 %v5735
        %v5934 = vunpack.c.l.b16 %v5736
        %v5935 = vunpack.c.l.b16 %v5737
        %v5936 = vunpack.c.l.b16 %v5738
        %v5937 = vunpack.c.l.b16 %v5739
        %v5938 = vunpack.c.l.b16 %v5740
        %v5939 = vunpack.c.l.b16 %v5741
        %v5940 = vunpack.c.l.b16 %v5742
        %v5941 = vunpack.c.l.b16 %v5743
        %v5942 = vunpack.c.l.b16 %v5744
        %v5943 = vunpack.c.l.b16 %v5745
        %v5944 = vunpack.c.l.b16 %v5746
        %v5945 = vunpack.c.l.b16 %v5747
        %v5946 = vunpack.c.l.b16 %v5748
        %v5947 = vunpack.c.l.b16 %v5749
        %v5948 = vunpack.c.l.b16 %v5750
        %v5949 = vunpack.c.l.b16 %v5751
        %v5950 = vunpack.c.l.b16 %v5752
        %v5951 = vunpack.c.l.b16 %v5753
        %v5952 = vunpack.c.l.b16 %v5754
        %v5953 = vunpack.c.l.b16 %v5755
        %v5954 = vunpack.c.l.b16 %v5756
        %v5955 = vunpack.c.l.b16 %v5757
        %v5956 = vunpack.c.l.b16 %v5758
        %v5957 = vunpack.c.l.b16 %v5759
        %v5958 = vunpack.c.l.b16 %v5760
        %v5959 = vunpack.c.l.b16 %v5761
        %v5960 = vunpack.c.l.b16 %v5762
        %v5961 = vunpack.c.l.b16 %v5763
        %v5962 = vunpack.c.l.b16 %v5764
        %v5963 = vunpack.c.l.b16 %v5765
        %v5964 = vunpack.c.l.b16 %v5766
        %v5965 = vunpack.c.l.b16 %v5767
        %v5966 = vunpack.c.l.b16 %v5768
        %v5967 = vunpack.c.l.b16 %v5769
        %v5968 = vunpack.c.l.b16 %v5770
        %v5969 = vunpack.c.l.b16 %v5771
        %v5970 = vunpack.c.l.b16 %v5772
        %v5971 = vunpack.c.l.b16 %v5773
        %v5972 = vunpack.c.l.b16 %v5774
        %v5973 = vunpack.c.l.b16 %v5775
        %v5974 = vunpack.c.l.b16 %v5776
        %v5975 = vunpack.c.l.b16 %v5777
        %v5976 = vunpack.c.l.b16 %v5778
        %v5977 = vunpack.c.l.b16 %v5779
        %v5978 = vunpack.c.l.b16 %v5780
        %v5979 = vunpack.c.l.b16 %v5781
        %v5980 = vunpack.c.l.b16 %v5782
        %v5981 = vunpack.c.l.b16 %v5783
        %v5982 = vunpack.c.l.b16 %v5784
        %v5983 = vunpack.c.l.b16 %v5785
        %v5984 = vunpack.c.l.b16 %v5786
        %v5985 = vunpack.c.l.b16 %v5787
        %v5986 = vunpack.c.l.b16 %v5788
        %v5987 = vpack.c.b16 %v5892, %v5891
        %v5988 = vpack.c.b16 %v5894, %v5893
        %v5989 = vpack.c.b16 %v5896, %v5895
        %v5990 = vpack.c.b16 %v5898, %v5897
        %v5991 = vpack.c.b16 %v5900, %v5899
        %v5992 = vpack.c.b16 %v5902, %v5901
        %v5993 = vpack.c.b16 %v5904, %v5903
        %v5994 = vpack.c.b16 %v5906, %v5905
        %v5995 = vpack.c.b16 %v5908, %v5907
        %v5996 = vpack.c.b16 %v5910, %v5909
        %v5997 = vpack.c.b16 %v5912, %v5911
        %v5998 = vpack.c.b16 %v5914, %v5913
        %v5999 = vpack.c.b16 %v5916, %v5915
        %v6000 = vpack.c.b16 %v5918, %v5917
        %v6001 = vpack.c.b16 %v5920, %v5919
        %v6002 = vpack.c.b16 %v5922, %v5921
        %v6003 = vpack.c.b16 %v5924, %v5923
        %v6004 = vpack.c.b16 %v5926, %v5925
        %v6005 = vpack.c.b16 %v5928, %v5927
        %v6006 = vpack.c.b16 %v5930, %v5929
        %v6007 = vpack.c.b16 %v5932, %v5931
        %v6008 = vpack.c.b16 %v5934, %v5933
        %v6009 = vpack.c.b16 %v5936, %v5935
        %v6010 = vpack.c.b16 %v5938, %v5937
        %v6011 = vpack.c.b16 %v5940, %v5939
        %v6012 = vpack.c.b16 %v5942, %v5941
        %v6013 = vpack.c.b16 %v5944, %v5943
        %v6014 = vpack.c.b16 %v5946, %v5945
        %v6015 = vpack.c.b16 %v5948, %v5947
        %v6016 = vpack.c.b16 %v5950, %v5949
        %v6017 = vpack.c.b16 %v5952, %v5951
        %v6018 = vpack.c.b16 %v5954, %v5953
        %v6019 = vpack.c.b16 %v5956, %v5955
        %v6020 = vpack.c.b16 %v5958, %v5957
        %v6021 = vpack.c.b16 %v5960, %v5959
        %v6022 = vpack.c.b16 %v5962, %v5961
        %v6023 = vpack.c.b16 %v5964, %v5963
        %v6024 = vpack.c.b16 %v5966, %v5965
        %v6025 = vpack.c.b16 %v5968, %v5967
        %v6026 = vpack.c.b16 %v5970, %v5969
        %v6027 = vpack.c.b16 %v5972, %v5971
        %v6028 = vpack.c.b16 %v5974, %v5973
        %v6029 = vpack.c.b16 %v5976, %v5975
        %v6030 = vpack.c.b16 %v5978, %v5977
        %v6031 = vpack.c.b16 %v5980, %v5979
        %v6032 = vpack.c.b16 %v5982, %v5981
        %v6033 = vpack.c.b16 %v5984, %v5983
        %v6034 = vpack.c.b16 %v5986, %v5985
        %6083 = vmatprep.subr.bf16.mxu0 0
        %6084 = vmatpush1.bf16.msra.mxu0 %v5987
        %6085 = vmatprep.subr.bf16.mxu0 0
        %6086 = vmatpush1.bf16.msra.mxu0 %v5988
        %6087 = vmatprep.subr.bf16.mxu0 0
        %6088 = vmatpush1.bf16.msra.mxu0 %v5989
        %6089 = vmatprep.subr.bf16.mxu0 0
        %6090 = vmatpush1.bf16.msra.mxu0 %v5990
        %6091 = vmatprep.subr.bf16.mxu0 0
        %6092 = vmatpush1.bf16.msra.mxu0 %v5991
        %6093 = vmatprep.subr.bf16.mxu0 0
        %6094 = vmatpush1.bf16.msra.mxu0 %v5992
        %6095 = vmatprep.subr.bf16.mxu0 0
        %6096 = vmatpush1.bf16.msra.mxu0 %v5993
        %6097 = vmatprep.subr.bf16.mxu0 0
        %6098 = vmatpush1.bf16.msra.mxu0 %v5994
        %6099 = vmatprep.subr.bf16.mxu0 0
        %6100 = vmatpush1.bf16.msra.mxu0 %v5995
        %6101 = vmatprep.subr.bf16.mxu0 0
        %6102 = vmatpush1.bf16.msra.mxu0 %v5996
        %6103 = vmatprep.subr.bf16.mxu0 0
        %6104 = vmatpush1.bf16.msra.mxu0 %v5997
        %6105 = vmatprep.subr.bf16.mxu0 0
        %6106 = vmatpush1.bf16.msra.mxu0 %v5998
        %6107 = vmatprep.subr.bf16.mxu0 0
        %6108 = vmatpush1.bf16.msra.mxu0 %v5999
        %6109 = vmatprep.subr.bf16.mxu0 0
        %6110 = vmatpush1.bf16.msra.mxu0 %v6000
        %6111 = vmatprep.subr.bf16.mxu0 0
        %6112 = vmatpush1.bf16.msra.mxu0 %v6001
        %6113 = vmatprep.subr.bf16.mxu0 0
        %6114 = vmatpush1.bf16.msra.mxu0 %v6002
        %6115 = vmatprep.mubr.bf16.mxu0 %v5682
        %6116 = vmatmul.mubr.bf16.gmra.mrb[0].mxu0 %v5681
        %v6117 = vpop.f32.mrb[0].mxu0
        %v6118 = vadd.f32 %v5793, %v6117
        %v6119 = vpop.f32.mrb[0].mxu0
        %v6120 = vpop.f32.mrb[0].mxu0
        %v6121 = vadd.f32 %v5793, %v6120
        %v6122 = vpop.f32.mrb[0].mxu0
        %6123 = vmatprep.mubr.bf16.mxu0 %v5688
        %6124 = vmatmul.mubr.bf16.gmra.mrb[0].mxu0 %v5687
        %v6125 = vpop.f32.mrb[0].mxu0
        %v6126 = vadd.f32 %v5793, %v6125
        %v6127 = vpop.f32.mrb[0].mxu0
        %v6128 = vpop.f32.mrb[0].mxu0
        %v6129 = vpop.f32.mrb[0].mxu0
        %6130 = vdwg.mxu0
        %6131 = vmatprep.subr.bf16.mxu0 0
        %6132 = vmatpush1.bf16.msra.mxu0 %v6003
        %6133 = vmatprep.subr.bf16.mxu0 0
        %6134 = vmatpush1.bf16.msra.mxu0 %v6004
        %6135 = vmatprep.subr.bf16.mxu0 0
        %6136 = vmatpush1.bf16.msra.mxu0 %v6005
        %6137 = vmatprep.subr.bf16.mxu0 0
        %6138 = vmatpush1.bf16.msra.mxu0 %v6006
        %6139 = vmatprep.subr.bf16.mxu0 0
        %6140 = vmatpush1.bf16.msra.mxu0 %v6007
        %6141 = vmatprep.subr.bf16.mxu0 0
        %6142 = vmatpush1.bf16.msra.mxu0 %v6008
        %6143 = vmatprep.subr.bf16.mxu0 0
        %6144 = vmatpush1.bf16.msra.mxu0 %v6009
        %6145 = vmatprep.subr.bf16.mxu0 0
        %6146 = vmatpush1.bf16.msra.mxu0 %v6010
        %6147 = vmatprep.subr.bf16.mxu0 0
        %6148 = vmatpush1.bf16.msra.mxu0 %v6011
        %6149 = vmatprep.subr.bf16.mxu0 0
        %6150 = vmatpush1.bf16.msra.mxu0 %v6012
        %6151 = vmatprep.subr.bf16.mxu0 0
        %6152 = vmatpush1.bf16.msra.mxu0 %v6013
        %6153 = vmatprep.subr.bf16.mxu0 0
        %6154 = vmatpush1.bf16.msra.mxu0 %v6014
        %6155 = vmatprep.subr.bf16.mxu0 0
        %6156 = vmatpush1.bf16.msra.mxu0 %v6015
        %6157 = vmatprep.subr.bf16.mxu0 0
        %6158 = vmatpush1.bf16.msra.mxu0 %v6016
        %6159 = vmatprep.subr.bf16.mxu0 0
        %6160 = vmatpush1.bf16.msra.mxu0 %v6017
        %6161 = vmatprep.subr.bf16.mxu0 0
        %6162 = vmatpush1.bf16.msra.mxu0 %v6018
        %6163 = vmatprep.mubr.bf16.mxu0 %v5684
        %6164 = vmatmul.mubr.bf16.gmra.mrb[0].mxu0 %v5683
        %v6165 = vpop.f32.mrb[0].mxu0
        %v6166 = vadd.f32 %v6118, %v6165
        %v6167 = vpop.f32.mrb[0].mxu0
        %v6168 = vpop.f32.mrb[0].mxu0
        %v6169 = vadd.f32 %v6121, %v6168
        %v6170 = vpop.f32.mrb[0].mxu0
        %6171 = vmatprep.mubr.bf16.mxu0 %v5690
        %6172 = vmatmul.mubr.bf16.gmra.mrb[0].mxu0 %v5689
        %v6173 = vpop.f32.mrb[0].mxu0
        %v6174 = vadd.f32 %v6126, %v6173
        %v6175 = vpop.f32.mrb[0].mxu0
        %v6176 = vpop.f32.mrb[0].mxu0
        %v6177 = vpop.f32.mrb[0].mxu0
        %6178 = vdwg.mxu0
        %6179 = vmatprep.subr.bf16.mxu0 0
        %6180 = vmatpush1.bf16.msra.mxu0 %v6019
        %6181 = vmatprep.subr.bf16.mxu0 0
        %6182 = vmatpush1.bf16.msra.mxu0 %v6020
        %6183 = vmatprep.subr.bf16.mxu0 0
        %6184 = vmatpush1.bf16.msra.mxu0 %v6021
        %6185 = vmatprep.subr.bf16.mxu0 0
        %6186 = vmatpush1.bf16.msra.mxu0 %v6022
        %6187 = vmatprep.subr.bf16.mxu0 0
        %6188 = vmatpush1.bf16.msra.mxu0 %v6023
        %6189 = vmatprep.subr.bf16.mxu0 0
        %6190 = vmatpush1.bf16.msra.mxu0 %v6024
        %6191 = vmatprep.subr.bf16.mxu0 0
        %6192 = vmatpush1.bf16.msra.mxu0 %v6025
        %6193 = vmatprep.subr.bf16.mxu0 0
        %6194 = vmatpush1.bf16.msra.mxu0 %v6026
        %6195 = vmatprep.subr.bf16.mxu0 0
        %6196 = vmatpush1.bf16.msra.mxu0 %v6027
        %6197 = vmatprep.subr.bf16.mxu0 0
        %6198 = vmatpush1.bf16.msra.mxu0 %v6028
        %6199 = vmatprep.subr.bf16.mxu0 0
        %6200 = vmatpush1.bf16.msra.mxu0 %v6029
        %6201 = vmatprep.subr.bf16.mxu0 0
        %6202 = vmatpush1.bf16.msra.mxu0 %v6030
        %6203 = vmatprep.subr.bf16.mxu0 0
        %6204 = vmatpush1.bf16.msra.mxu0 %v6031
        %6205 = vmatprep.subr.bf16.mxu0 0
        %6206 = vmatpush1.bf16.msra.mxu0 %v6032
        %6207 = vmatprep.subr.bf16.mxu0 0
        %6208 = vmatpush1.bf16.msra.mxu0 %v6033
        %6209 = vmatprep.subr.bf16.mxu0 0
        %6210 = vmatpush1.bf16.msra.mxu0 %v6034
        %6211 = vmatprep.mubr.bf16.mxu0 %v5686
        %6212 = vmatmul.mubr.bf16.gmra.mrb[0].mxu0 %v5685
        %v6213 = vpop.f32.mrb[0].mxu0
        %v6214 = vadd.f32 %v6166, %v6213
        %v6215 = vpop.f32.mrb[0].mxu0
        %v6216 = vpop.f32.mrb[0].mxu0
        %v6217 = vadd.f32 %v6169, %v6216
        %v6218 = vpop.f32.mrb[0].mxu0
        %6219 = vmatprep.mubr.bf16.mxu0 %v5692
        %6220 = vmatmul.mubr.bf16.gmra.mrb[0].mxu0 %v5691
        %v6221 = vpop.f32.mrb[0].mxu0
        %v6222 = vadd.f32 %v6174, %v6221
        %v6223 = vpop.f32.mrb[0].mxu0
        %v6224 = vpop.f32.mrb[0].mxu0
        %v6225 = vpop.f32.mrb[0].mxu0
        %6226 = vdwg.mxu0
        %vm6227 = vcmp.ge.f32.partialorder %v6214, 0.0
        %vm6228 = vcmp.ge.f32.partialorder %v6217, 0.0
        %vm6229 = vcmp.ge.f32.partialorder %v6222, 0.0
        %v6230 = vmul.f32 %v6214, 0.01
        %v6231 = vmul.f32 %v6217, 0.01
        %v6232 = vmul.f32 %v6222, 0.01
        %v6233 = vsel %vm6227, %v6214, %v6230
        %v6234 = vsel %vm6228, %v6217, %v6231
        %v6235 = vsel %vm6229, %v6222, %v6232
        %6236 = vst [vmem:[#allocation2] sm:$0x1] -inf
        %6237 = vst [vmem:[#allocation2 + $0x1] sm:$0xff] %v6233
        %6238 = vst [vmem:[#allocation2 + $0x9] sm:$0xff] %v6234
        %6239 = vst [vmem:[#allocation2 + $0x11] sm:$0xf] %v6235
        %6240 = vst [vmem:[#allocation2 + $0x15] sm:$0x1] -inf
        %v6241 = vld [vmem:[#allocation2] ss:$2 sm:$0xff]
        %s6242 = scalar_lea.vmem [#allocation2], 16
        %v6243 = vld [vmem:[%s6242] ss:$2 sm:$0x7]
        %v6244 = vld [vmem:[%s1309] ss:$2 sm:$0xff]
        %s6245 = scalar_lea.vmem [#allocation2], 17
        %v6246 = vld [vmem:[%s6245] ss:$2 sm:$0x7]
        %v6247 = vmax.f32 %v6241, %v6244
        %v6248 = vmax.f32 %v6243, %v6246
        %6249 = vst [vmem:[%s583] sm:$0xff] %v4188
        %6250 = vst [vmem:[%s583 + $0x8] sm:$0x1f] %v4189
        %6251 = vst [vmem:[%s583 + $0xd] sm:$0xff] %v6247
        %6252 = vst [vmem:[%s583 + $0x15] sm:$0x7] %v6248
        %s6253 = sand.u32 %s428, 1
        %s6254 = scalar_lea.sflag [#allocation4], %s6253
        %s6255 = sand.u32 %s428, 1
        %s6256 = smul.addr %s6255, 24
        %s6257 = scalar_lea.vmem [#allocation3], %s6256
        // Predicated region
        $region93: #{temporal_feature_eeg.1} parent=91 // pred_check
          %p6258 = pneg %p438
        $region94: #{temporal_feature_eeg.1} parent=91 // pred_check_branch
          %6260 = sbr.rel (%p6258) target = $region96
        $region95: #{temporal_feature_eeg.1} parent=91 // pred_region
          %s6262 = ssub.s32 384, 384
          %6263 = vsyncadd %s6254, %s6262
          %s6264 = smul.addr %s32, 3
          %s6265 = smul.addr %s6264, 128
          %s6266 = scalar_lea.hbm %s18, %s6265
          %s6267 = sshll.u32 %s6257, 4
          %s6268 = int_to_ptr.vmem [resolvable:$true] %s6267
          %6273 = dma.vmem_to_hbm [thread:$0]  %s6268, 384, %s6266, %s6254, 128, 128, 8
        $region96: #{temporal_feature_eeg.1} parent=91 // pred_fallthru
          _
      $region92: #{temporal_feature_eeg.1} parent=5 // pred_fallthru
        _
      %p6274 = scmp.le.s32.totalorder 2, %s27
      // Predicated region
      $region97: #{temporal_feature_eeg.1} parent=5 // pred_check
        %p6275 = pneg %p6274
      $region98: #{temporal_feature_eeg.1} parent=5 // pred_check_branch
        %6277 = sbr.rel (%p6275) target = $region100
      $region99: #{temporal_feature_eeg.1} parent=5 // pred_region
        %s6278 = ssub.s32 %s27, 2
        // Predicated region
        $region101: #{temporal_feature_eeg.1} parent=99 // pred_check
          %p6279 = pneg %p444
        $region102: #{temporal_feature_eeg.1} parent=99 // pred_check_branch
          %6281 = sbr.rel (%p6279) target = $region104
        $region103: #{temporal_feature_eeg.1} parent=99 // pred_region
          %s6282 = sand.u32 %s429, 1
          %s6283 = scalar_lea.sflag [#allocation4], %s6282
          %s6284 = sand.u32 %s429, 1
          %s6285 = smul.addr %s6284, 24
          %s6286 = scalar_lea.vmem [#allocation3], %s6285
          %6287 = dma.done %s6283, 384
        $region104: #{temporal_feature_eeg.1} parent=99 // pred_fallthru
          _
      $region100: #{temporal_feature_eeg.1} parent=5 // pred_fallthru
        _
    $region6: #{temporal_feature_eeg.1} parent=1 // loop_footer
      %s31 = sadd.s32 1, %s27
    $region7: #{temporal_feature_eeg.1} parent=1 // loop_footer_branch
      %26 = sbr.rel target = $region3
    $region8: #{temporal_feature_eeg.1} parent=1 // loop_exit
      _
    %6288 = vsyncpa [#allocation4], 1
    %s6289 = scalar_lea.sflag [#allocation4], 1
    %6290 = vsyncpa %s6289, 1

</llo_original>
